<compile_context>
chip_gen: v7x
topology: tpu7x:2x2x1
jax: 0.10.0
libtpu: 0.0.40
codegen_flags: <defaults>
</compile_context>

<pallas_src>
import jax
import jax.numpy as jnp
from jax.experimental import pallas as pl
from jax.experimental.pallas import tpu as pltpu

QMAX = 127.0  # symmetric 8-bit fake-quantization (abs-max scaling)


# ----------------------------------------------------------------------------- helpers
def _default_operand_dtype():
    """int8 where the MXU has an integer mode (v4/v5e/v5p/v6e); bf16 on v7x/older."""
    try:
        kind = jax.devices()[0].device_kind.lower()
    except Exception:
        return jnp.bfloat16
    if "7" in kind or "v2" in kind or "v3" in kind:
        return jnp.bfloat16          # v7x MXU has no integer mode (and skip fp8: can't
    return jnp.int8                  # represent int8 levels exactly)


def _vmem_capacity_bytes():
    try:
        return int(pltpu.get_tpu_info().vmem_capacity_bytes)
    except Exception:
        return 64 * 1024 * 1024      # v7x floor -> safe default on every generation


def _quantize_weight(w, op_dtype):
    """Per-output-channel symmetric int8 quantization of a (in, out) weight.

    Returns (integer values in `op_dtype` -- exact for |q| <= 128, f32 scales (1, out)).
    Done once outside the kernel (quantizer_2 / quantizer_4 are loop-invariant).
    """
    s = jnp.max(jnp.abs(w), axis=0, keepdims=True) / QMAX            # (1, out)
    s = jnp.where(s == 0.0, 1.0, s)                                  # guard all-zero cols
    q = jnp.clip(jnp.round(w / s), -128.0, 127.0)
    return q.astype(op_dtype), s.astype(jnp.float32)


def _pick_token_tile(B, T, D, F, weight_bytes, vmem_budget):
    """Largest token tile that (a) fits the VMEM budget, (b) fills the MXU rows
    (R = B*TM >= 256) and (c) leaves >= 2 grid steps for v7x's two TensorCores."""
    def tile_bytes(tm):
        r = B * tm
        io = 2 * 2 * (B * tm * D * 4)        # x + out tiles, double-buffered, f32
        inter = r * F * 8 + r * D * 8        # h'/q_h and accumulator temporaries
        return weight_bytes + io + inter

    cands = [tm for tm in range(8, T + 1, 8) if T % tm == 0] or [T]

    def score(tm):
        return (tile_bytes(tm) <= vmem_budget,   # must fit VMEM
                B * tm >= 256,                   # fill 256-wide MXU rows
                T // tm >= 2,                    # feed both v7x TensorCores
                tm)                              # then: as large as possible

    return max(cands, key=score)


# ------------------------------------------------------------------------------ kernel
def ffn_kernel(x_ref, w1q_ref, s1_ref, w2q_ref, s2_ref, o_ref):
    # NOTE: per-token scales (quantizer_1/3) need the FULL batch and full feature row;
    # only the token axis is ever tiled -> each tile sees all of B, D and F.
    x = x_ref[...]                                        # (B, TM, D) f32
    B, TM, D = x.shape
    F = w1q_ref.shape[1]
    R = B * TM

    integer_mxu = jnp.issubdtype(w1q_ref.dtype, jnp.integer)
    op_dtype = w1q_ref.dtype                              # int8 (v5e/v6e) or bf16 (v7x)
    acc_dtype = jnp.int32 if integer_mxu else jnp.float32

    # ---- quantizer_1: per-token abs-max scale, stats over (batch, d_model) ----
    s_x = jnp.max(jnp.abs(x), axis=(0, 2), keepdims=True) / QMAX     # (1, TM, 1)
    s_x = jnp.where(s_x == 0.0, 1.0, s_x)
    inv_sx = 1.0 / s_x                                    # tiny tensor: exact & ~free
    q_x = jnp.clip(jnp.round(x * inv_sx), -128.0, 127.0)  # integer values, f32

    # ---- matmul 1 on the MXU (int8/int32 on v5e/v6e, bf16-int/f32 on v7x) ----
    acc1 = jnp.dot(q_x.reshape(R, D).astype(op_dtype), w1q_ref[...],
                   preferred_element_type=acc_dtype)                  # (R, F)
    # Scale cancellation: omit '* s_x' here (q_h below is invariant to the positive
    # per-token scalar); fold s_x into the final dequant instead.
    h = jnp.maximum(acc1.astype(jnp.float32).reshape(B, TM, F) * s1_ref[...], 0.0)

    # ---- quantizer_3: per-token abs-max on hidden; h >= 0 after ReLU -> no abs ----
    s_h = jnp.max(h, axis=(0, 2), keepdims=True) / QMAX              # (1, TM, 1)
    s_h = jnp.where(s_h == 0.0, 1.0, s_h)
    inv_sh = 1.0 / s_h
    q_h = jnp.clip(jnp.round(h * inv_sh), -128.0, 127.0)

    # TODO(synk): nn.Dropout(0.1) is identity in eval/inference; training-mode
    # random dropout is not implemented here.

    # ---- matmul 2 ----
    acc2 = jnp.dot(q_h.reshape(R, F).astype(op_dtype), w2q_ref[...],
                   preferred_element_type=acc_dtype)                  # (R, D)
    out = acc2.astype(jnp.float32).reshape(B, TM, D) * (s_x * s_h) * s2_ref[...]
    o_ref[...] = out.astype(o_ref.dtype)


# ----------------------------------------------------------------------------- wrapper
def positionwise_ffn(x, w1, w2, tm=None, operand_dtype=None,
                     single_buffer_weights=True, out_dtype=jnp.float32):
    B, T, D = x.shape
    F = w1.shape[1]
    assert w1.shape == (D, F) and w2.shape == (F, D)

    if operand_dtype is None:
        operand_dtype = _default_operand_dtype()

    # Hoist weight fake-quant (quantizer_2 / quantizer_4) out of the kernel.
    w1q, s1 = _quantize_weight(w1, operand_dtype)    # (D, F) ints, (1, F) f32
    w2q, s2 = _quantize_weight(w2, operand_dtype)    # (F, D) ints, (1, D) f32

    w_itemsize = jnp.dtype(operand_dtype).itemsize
    weight_bytes = 2 * D * F * w_itemsize + (F + D) * 4
    if not single_buffer_weights:
        weight_bytes *= 2

    vmem_budget = (_vmem_capacity_bytes() * 3) // 4      # leave headroom for the compiler

    TM = tm if tm is not None else _pick_token_tile(B, T, D, F, weight_bytes, vmem_budget)
    assert T % TM == 0, "token tile must divide the sequence length"
    grid = (T // TM,)

    wmode = pl.Buffered(1) if single_buffer_weights else None

    def _resident(shape):
        if wmode is not None:
            return pl.BlockSpec(shape, lambda i: (0,) * len(shape), pipeline_mode=wmode)
        return pl.BlockSpec(shape, lambda i: (0,) * len(shape))

    cost = pl.CostEstimate(
        flops=int(4 * B * T * D * F),                          # two (R,D)x(D,F) matmuls
        transcendentals=int(2 * B * T),                        # per-token reciprocals
        bytes_accessed=int(B * T * D * 4                       # x load
                           + B * T * D * jnp.dtype(out_dtype).itemsize   # out store
                           + 2 * D * F * w_itemsize + (F + D) * 4),      # weights+scales
    )

    return pl.pallas_call(
        ffn_kernel,
        out_shape=jax.ShapeDtypeStruct((B, T, D), out_dtype),
        grid=grid,
        in_specs=[
            pl.BlockSpec((B, TM, D), lambda i: (0, i, 0)),   # x: tiled over tokens only
            _resident((D, F)),                               # W1q: resident, 1-buffered
            _resident((1, F)),                               # s_w1
            _resident((F, D)),                               # W2q
            _resident((1, D)),                               # s_w2
        ],
        out_specs=pl.BlockSpec((B, TM, D), lambda i: (0, i, 0)),
        compiler_params=pltpu.CompilerParams(
            dimension_semantics=("parallel",),
            vmem_limit_bytes=int(vmem_budget)),
        cost_estimate=cost,
    )(x, w1q, s1, w2q, s2)


# --------------------------------------------------------------------------- reference
def _reference_ffn(x, w1, w2):
    """Pure-JAX reference of the original quant-dequant-then-matmul semantics."""
    def fq(v, axes):
        s = jnp.max(jnp.abs(v), axis=axes, keepdims=True) / QMAX
        s = jnp.where(s == 0.0, 1.0, s)
        return jnp.clip(jnp.round(v / s), -128.0, 127.0) * s

    xq = fq(x, (0, 2))
    w1q = fq(w1, (0,))
    h = jnp.maximum(jnp.einsum('btd,df->btf', xq, w1q,
                               precision=jax.lax.Precision.HIGHEST), 0.0)
    hq = fq(h, (0, 2))
    w2q = fq(w2, (0,))
    return jnp.einsum('btf,fd->btd', hq, w2q,
                      precision=jax.lax.Precision.HIGHEST)


if __name__ == "__main__":
    # Small, lane-dense demo shapes: last dims multiples of 128 avoid masked stores;
    # T=256 with the auto TM=128 gives R=B*TM=256 (full MXU rows) and 2 grid steps
    # (both v7x TensorCores busy).
    B, T, d_model, d_ff = 2, 256, 128, 256

    key = jax.random.PRNGKey(0)
    kx, kw1, kw2 = jax.random.split(key, 3)
    x = jax.random.normal(kx, (B, T, d_model), dtype=jnp.float32)
    w1 = jax.random.normal(kw1, (d_model, d_ff), dtype=jnp.float32)
    w2 = jax.random.normal(kw2, (d_ff, d_model), dtype=jnp.float32)

    try:
        out = positionwise_ffn(x, w1, w2)
        out = jax.block_until_ready(out)
    except Exception:
        # Robust fallback: portable bf16-integer MXU path, default double buffering.
        out = positionwise_ffn(x, w1, w2, operand_dtype=jnp.bfloat16,
                               single_buffer_weights=False)
        out = jax.block_until_ready(out)

    assert out.shape == (B, T, d_model) and out.dtype == jnp.float32
    assert bool(jnp.all(jnp.isfinite(out)))

    # Check against the quant-dequant fp32 reference.  With exact scale reciprocals
    # and exact int32 accumulation the only differences are rare single-level
    # quantization flips from FP associativity; tolerance stays loose for those.
    ref = _reference_ffn(x, w1, w2)
    rel_err = float(jnp.max(jnp.abs(out - ref)) / (jnp.std(ref) + 1e-6))
    assert rel_err < 0.25, f"relative error too large: {rel_err}"
    print("KERNEL_OK")
</pallas_src>

<mosaic_0001>
module attributes {stable_mosaic.version = 11 : i64} {
  func.func @ffn_kernel(%arg0: i32, %arg1: memref<2x128x128xf32, #tpu.memory_space<vmem>>, %arg2: memref<128x256xi8, #tpu.memory_space<vmem>>, %arg3: memref<1x256xf32, #tpu.memory_space<vmem>>, %arg4: memref<256x128xi8, #tpu.memory_space<vmem>>, %arg5: memref<1x128xf32, #tpu.memory_space<vmem>>, %arg6: memref<2x128x128xf32, #tpu.memory_space<vmem>>) attributes {dimension_semantics = [#tpu.dimension_semantics<parallel>], iteration_bounds = array<i64: 2>, scalar_prefetch = 0 : i64, scratch_operands = 0 : i64, tpu.core_type = #tpu.core_type<tc>, window_params = [{transform_indices = @transform_0, window_bounds = array<i64: 2, 128, 128>}, {pipeline_mode = #tpu.pipeline_mode<synchronous>, transform_indices = @transform_1, window_bounds = array<i64: 128, 256>}, {pipeline_mode = #tpu.pipeline_mode<synchronous>, transform_indices = @transform_2, window_bounds = array<i64: 1, 256>}, {pipeline_mode = #tpu.pipeline_mode<synchronous>, transform_indices = @transform_3, window_bounds = array<i64: 256, 128>}, {pipeline_mode = #tpu.pipeline_mode<synchronous>, transform_indices = @transform_4, window_bounds = array<i64: 1, 128>}, {transform_indices = @transform_5, window_bounds = array<i64: 2, 128, 128>}]} {
    %c0 = arith.constant 0 : index
    %c0_0 = arith.constant 0 : index
    %c0_1 = arith.constant 0 : index
    %0 = vector.load %arg1[%c0, %c0_0, %c0_1] : memref<2x128x128xf32, #tpu.memory_space<vmem>>, vector<2x128x128xf32>
    %1 = math.absf %0 : vector<2x128x128xf32>
    %cst = arith.constant dense<0xFF800000> : vector<128xf32>
    %2 = vector.multi_reduction <maximumf>, %1, %cst [0, 2] : vector<2x128x128xf32> to vector<128xf32>
    %3 = vector.shape_cast %2 : vector<128xf32> to vector<1x128x1xf32>
    %cst_2 = arith.constant 1.270000e+02 : f32
    %4 = vector.broadcast %cst_2 : f32 to vector<1x128x1xf32>
    %5 = arith.divf %3, %4 : vector<1x128x1xf32>
    %cst_3 = arith.constant 0.000000e+00 : f32
    %6 = vector.broadcast %cst_3 : f32 to vector<1x128x1xf32>
    %7 = arith.cmpf oeq, %5, %6 : vector<1x128x1xf32>
    %cst_4 = arith.constant 1.000000e+00 : f32
    %8 = vector.broadcast %cst_4 : f32 to vector<1x128x1xf32>
    %9 = arith.select %7, %8, %5 : vector<1x128x1xi1>, vector<1x128x1xf32>
    %cst_5 = arith.constant 1.000000e+00 : f32
    %10 = vector.broadcast %cst_5 : f32 to vector<1x128x1xf32>
    %11 = arith.divf %10, %9 : vector<1x128x1xf32>
    %12 = vector.broadcast %11 : vector<1x128x1xf32> to vector<2x128x128xf32>
    %13 = arith.mulf %0, %12 : vector<2x128x128xf32>
    %14 = math.roundeven %13 : vector<2x128x128xf32>
    %cst_6 = arith.constant -1.280000e+02 : f32
    %cst_7 = arith.constant 1.270000e+02 : f32
    %15 = vector.broadcast %cst_6 : f32 to vector<2x128x128xf32>
    %16 = arith.maximumf %15, %14 : vector<2x128x128xf32>
    %17 = vector.broadcast %cst_7 : f32 to vector<2x128x128xf32>
    %18 = arith.minimumf %17, %16 : vector<2x128x128xf32>
    %19 = vector.shape_cast %18 : vector<2x128x128xf32> to vector<256x128xf32>
    %20 = arith.fptosi %19 : vector<256x128xf32> to vector<256x128xi8>
    %c0_8 = arith.constant 0 : index
    %c0_9 = arith.constant 0 : index
    %21 = vector.load %arg2[%c0_8, %c0_9] : memref<128x256xi8, #tpu.memory_space<vmem>>, vector<128x256xi8>
    %cst_10 = arith.constant dense<0> : vector<256x256xi32>
    %22 = tpu.matmul %20, %21, %cst_10 {dimension_numbers = #tpu.dot_dimension_numbers<[1], [0], [0], [1], [0, 0, 1, 1], [], []>} : vector<256x128xi8>, vector<128x256xi8>, vector<256x256xi32> -> vector<256x256xi32>
    %23 = arith.sitofp %22 : vector<256x256xi32> to vector<256x256xf32>
    %24 = vector.shape_cast %23 : vector<256x256xf32> to vector<2x128x256xf32>
    %c0_11 = arith.constant 0 : index
    %c0_12 = arith.constant 0 : index
    %25 = vector.load %arg3[%c0_11, %c0_12] : memref<1x256xf32, #tpu.memory_space<vmem>>, vector<1x256xf32>
    %26 = vector.shape_cast %25 : vector<1x256xf32> to vector<1x1x256xf32>
    %27 = vector.broadcast %26 : vector<1x1x256xf32> to vector<2x128x256xf32>
    %28 = arith.mulf %24, %27 : vector<2x128x256xf32>
    %cst_13 = arith.constant 0.000000e+00 : f32
    %29 = vector.broadcast %cst_13 : f32 to vector<2x128x256xf32>
    %30 = arith.maximumf %28, %29 : vector<2x128x256xf32>
    %cst_14 = arith.constant dense<0xFF800000> : vector<128xf32>
    %31 = vector.multi_reduction <maximumf>, %30, %cst_14 [0, 2] : vector<2x128x256xf32> to vector<128xf32>
    %32 = vector.shape_cast %31 : vector<128xf32> to vector<1x128x1xf32>
    %cst_15 = arith.constant 1.270000e+02 : f32
    %33 = vector.broadcast %cst_15 : f32 to vector<1x128x1xf32>
    %34 = arith.divf %32, %33 : vector<1x128x1xf32>
    %cst_16 = arith.constant 0.000000e+00 : f32
    %35 = vector.broadcast %cst_16 : f32 to vector<1x128x1xf32>
    %36 = arith.cmpf oeq, %34, %35 : vector<1x128x1xf32>
    %cst_17 = arith.constant 1.000000e+00 : f32
    %37 = vector.broadcast %cst_17 : f32 to vector<1x128x1xf32>
    %38 = arith.select %36, %37, %34 : vector<1x128x1xi1>, vector<1x128x1xf32>
    %cst_18 = arith.constant 1.000000e+00 : f32
    %39 = vector.broadcast %cst_18 : f32 to vector<1x128x1xf32>
    %40 = arith.divf %39, %38 : vector<1x128x1xf32>
    %41 = vector.broadcast %40 : vector<1x128x1xf32> to vector<2x128x256xf32>
    %42 = arith.mulf %30, %41 : vector<2x128x256xf32>
    %43 = math.roundeven %42 : vector<2x128x256xf32>
    %cst_19 = arith.constant -1.280000e+02 : f32
    %cst_20 = arith.constant 1.270000e+02 : f32
    %44 = vector.broadcast %cst_19 : f32 to vector<2x128x256xf32>
    %45 = arith.maximumf %44, %43 : vector<2x128x256xf32>
    %46 = vector.broadcast %cst_20 : f32 to vector<2x128x256xf32>
    %47 = arith.minimumf %46, %45 : vector<2x128x256xf32>
    %48 = vector.shape_cast %47 : vector<2x128x256xf32> to vector<256x256xf32>
    %49 = arith.fptosi %48 : vector<256x256xf32> to vector<256x256xi8>
    %c0_21 = arith.constant 0 : index
    %c0_22 = arith.constant 0 : index
    %50 = vector.load %arg4[%c0_21, %c0_22] : memref<256x128xi8, #tpu.memory_space<vmem>>, vector<256x128xi8>
    %cst_23 = arith.constant dense<0> : vector<256x128xi32>
    %51 = tpu.matmul %49, %50, %cst_23 {dimension_numbers = #tpu.dot_dimension_numbers<[1], [0], [0], [1], [0, 0, 1, 1], [], []>} : vector<256x256xi8>, vector<256x128xi8>, vector<256x128xi32> -> vector<256x128xi32>
    %52 = arith.sitofp %51 : vector<256x128xi32> to vector<256x128xf32>
    %53 = vector.shape_cast %52 : vector<256x128xf32> to vector<2x128x128xf32>
    %54 = arith.mulf %9, %38 : vector<1x128x1xf32>
    %55 = vector.broadcast %54 : vector<1x128x1xf32> to vector<2x128x128xf32>
    %56 = arith.mulf %53, %55 : vector<2x128x128xf32>
    %c0_24 = arith.constant 0 : index
    %c0_25 = arith.constant 0 : index
    %57 = vector.load %arg5[%c0_24, %c0_25] : memref<1x128xf32, #tpu.memory_space<vmem>>, vector<1x128xf32>
    %58 = vector.shape_cast %57 : vector<1x128xf32> to vector<1x1x128xf32>
    %59 = vector.broadcast %58 : vector<1x1x128xf32> to vector<2x128x128xf32>
    %60 = arith.mulf %56, %59 : vector<2x128x128xf32>
    %c0_26 = arith.constant 0 : index
    %c0_27 = arith.constant 0 : index
    %c0_28 = arith.constant 0 : index
    %61 = vector.load %arg6[%c0_26, %c0_27, %c0_28] : memref<2x128x128xf32, #tpu.memory_space<vmem>>, vector<2x128x128xf32>
    tpu.vector_store %arg6[%c0_26, %c0_27, %c0_28], %60 {strides = array<i32>} : memref<2x128x128xf32, #tpu.memory_space<vmem>>, vector<2x128x128xf32>,
    return
  }
  func.func @transform_0(%arg0: i32) -> (i32, i32, i32) {
    %c0_i32 = arith.constant 0 : i32
    %c0_i32_0 = arith.constant 0 : i32
    %c0_i32_1 = arith.constant 0 : i32
    return %c0_i32, %arg0, %c0_i32_0 : i32, i32, i32
  }
  func.func @transform_1(%arg0: i32) -> (i32, i32) {
    %c0_i32 = arith.constant 0 : i32
    %c0_i32_0 = arith.constant 0 : i32
    %c0_i32_1 = arith.constant 0 : i32
    return %c0_i32, %c0_i32_0 : i32, i32
  }
  func.func @transform_2(%arg0: i32) -> (i32, i32) {
    %c0_i32 = arith.constant 0 : i32
    %c0_i32_0 = arith.constant 0 : i32
    %c0_i32_1 = arith.constant 0 : i32
    return %c0_i32, %c0_i32_0 : i32, i32
  }
  func.func @transform_3(%arg0: i32) -> (i32, i32) {
    %c0_i32 = arith.constant 0 : i32
    %c0_i32_0 = arith.constant 0 : i32
    %c0_i32_1 = arith.constant 0 : i32
    return %c0_i32, %c0_i32_0 : i32, i32
  }
  func.func @transform_4(%arg0: i32) -> (i32, i32) {
    %c0_i32 = arith.constant 0 : i32
    %c0_i32_0 = arith.constant 0 : i32
    %c0_i32_1 = arith.constant 0 : i32
    return %c0_i32, %c0_i32_0 : i32, i32
  }
  func.func @transform_5(%arg0: i32) -> (i32, i32, i32) {
    %c0_i32 = arith.constant 0 : i32
    %c0_i32_0 = arith.constant 0 : i32
    %c0_i32_1 = arith.constant 0 : i32
    return %c0_i32, %arg0, %c0_i32_0 : i32, i32, i32
  }
}

module attributes {stable_mosaic.version = 11 : i64} {
  func.func @ffn_kernel(%arg0: i32, %arg1: memref<2x128x128xf32, #tpu.memory_space<vmem>>, %arg2: memref<128x256xbf16, #tpu.memory_space<vmem>>, %arg3: memref<1x256xf32, #tpu.memory_space<vmem>>, %arg4: memref<256x128xbf16, #tpu.memory_space<vmem>>, %arg5: memref<1x128xf32, #tpu.memory_space<vmem>>, %arg6: memref<2x128x128xf32, #tpu.memory_space<vmem>>) attributes {dimension_semantics = [#tpu.dimension_semantics<parallel>], iteration_bounds = array<i64: 2>, scalar_prefetch = 0 : i64, scratch_operands = 0 : i64, tpu.core_type = #tpu.core_type<tc>, window_params = [{transform_indices = @transform_0, window_bounds = array<i64: 2, 128, 128>}, {pipeline_mode = #tpu.pipeline_mode<synchronous>, transform_indices = @transform_1, window_bounds = array<i64: 128, 256>}, {pipeline_mode = #tpu.pipeline_mode<synchronous>, transform_indices = @transform_2, window_bounds = array<i64: 1, 256>}, {pipeline_mode = #tpu.pipeline_mode<synchronous>, transform_indices = @transform_3, window_bounds = array<i64: 256, 128>}, {pipeline_mode = #tpu.pipeline_mode<synchronous>, transform_indices = @transform_4, window_bounds = array<i64: 1, 128>}, {transform_indices = @transform_5, window_bounds = array<i64: 2, 128, 128>}]} {
    %c0 = arith.constant 0 : index
    %c0_0 = arith.constant 0 : index
    %c0_1 = arith.constant 0 : index
    %0 = vector.load %arg1[%c0, %c0_0, %c0_1] : memref<2x128x128xf32, #tpu.memory_space<vmem>>, vector<2x128x128xf32>
    %1 = math.absf %0 : vector<2x128x128xf32>
    %cst = arith.constant dense<0xFF800000> : vector<128xf32>
    %2 = vector.multi_reduction <maximumf>, %1, %cst [0, 2] : vector<2x128x128xf32> to vector<128xf32>
    %3 = vector.shape_cast %2 : vector<128xf32> to vector<1x128x1xf32>
    %cst_2 = arith.constant 1.270000e+02 : f32
    %4 = vector.broadcast %cst_2 : f32 to vector<1x128x1xf32>
    %5 = arith.divf %3, %4 : vector<1x128x1xf32>
    %cst_3 = arith.constant 0.000000e+00 : f32
    %6 = vector.broadcast %cst_3 : f32 to vector<1x128x1xf32>
    %7 = arith.cmpf oeq, %5, %6 : vector<1x128x1xf32>
    %cst_4 = arith.constant 1.000000e+00 : f32
    %8 = vector.broadcast %cst_4 : f32 to vector<1x128x1xf32>
    %9 = arith.select %7, %8, %5 : vector<1x128x1xi1>, vector<1x128x1xf32>
    %cst_5 = arith.constant 1.000000e+00 : f32
    %10 = vector.broadcast %cst_5 : f32 to vector<1x128x1xf32>
    %11 = arith.divf %10, %9 : vector<1x128x1xf32>
    %12 = vector.broadcast %11 : vector<1x128x1xf32> to vector<2x128x128xf32>
    %13 = arith.mulf %0, %12 : vector<2x128x128xf32>
    %14 = math.roundeven %13 : vector<2x128x128xf32>
    %cst_6 = arith.constant -1.280000e+02 : f32
    %cst_7 = arith.constant 1.270000e+02 : f32
    %15 = vector.broadcast %cst_6 : f32 to vector<2x128x128xf32>
    %16 = arith.maximumf %15, %14 : vector<2x128x128xf32>
    %17 = vector.broadcast %cst_7 : f32 to vector<2x128x128xf32>
    %18 = arith.minimumf %17, %16 : vector<2x128x128xf32>
    %19 = vector.shape_cast %18 : vector<2x128x128xf32> to vector<256x128xf32>
    %20 = arith.truncf %19 : vector<256x128xf32> to vector<256x128xbf16>
    %c0_8 = arith.constant 0 : index
    %c0_9 = arith.constant 0 : index
    %21 = vector.load %arg2[%c0_8, %c0_9] : memref<128x256xbf16, #tpu.memory_space<vmem>>, vector<128x256xbf16>
    %cst_10 = arith.constant dense<0.000000e+00> : vector<256x256xf32>
    %22 = tpu.matmul %20, %21, %cst_10 {dimension_numbers = #tpu.dot_dimension_numbers<[1], [0], [0], [1], [0, 0, 1, 1], [], []>} : vector<256x128xbf16>, vector<128x256xbf16>, vector<256x256xf32> -> vector<256x256xf32>
    %23 = vector.shape_cast %22 : vector<256x256xf32> to vector<2x128x256xf32>
    %c0_11 = arith.constant 0 : index
    %c0_12 = arith.constant 0 : index
    %24 = vector.load %arg3[%c0_11, %c0_12] : memref<1x256xf32, #tpu.memory_space<vmem>>, vector<1x256xf32>
    %25 = vector.shape_cast %24 : vector<1x256xf32> to vector<1x1x256xf32>
    %26 = vector.broadcast %25 : vector<1x1x256xf32> to vector<2x128x256xf32>
    %27 = arith.mulf %23, %26 : vector<2x128x256xf32>
    %cst_13 = arith.constant 0.000000e+00 : f32
    %28 = vector.broadcast %cst_13 : f32 to vector<2x128x256xf32>
    %29 = arith.maximumf %27, %28 : vector<2x128x256xf32>
    %cst_14 = arith.constant dense<0xFF800000> : vector<128xf32>
    %30 = vector.multi_reduction <maximumf>, %29, %cst_14 [0, 2] : vector<2x128x256xf32> to vector<128xf32>
    %31 = vector.shape_cast %30 : vector<128xf32> to vector<1x128x1xf32>
    %cst_15 = arith.constant 1.270000e+02 : f32
    %32 = vector.broadcast %cst_15 : f32 to vector<1x128x1xf32>
    %33 = arith.divf %31, %32 : vector<1x128x1xf32>
    %cst_16 = arith.constant 0.000000e+00 : f32
    %34 = vector.broadcast %cst_16 : f32 to vector<1x128x1xf32>
    %35 = arith.cmpf oeq, %33, %34 : vector<1x128x1xf32>
    %cst_17 = arith.constant 1.000000e+00 : f32
    %36 = vector.broadcast %cst_17 : f32 to vector<1x128x1xf32>
    %37 = arith.select %35, %36, %33 : vector<1x128x1xi1>, vector<1x128x1xf32>
    %cst_18 = arith.constant 1.000000e+00 : f32
    %38 = vector.broadcast %cst_18 : f32 to vector<1x128x1xf32>
    %39 = arith.divf %38, %37 : vector<1x128x1xf32>
    %40 = vector.broadcast %39 : vector<1x128x1xf32> to vector<2x128x256xf32>
    %41 = arith.mulf %29, %40 : vector<2x128x256xf32>
    %42 = math.roundeven %41 : vector<2x128x256xf32>
    %cst_19 = arith.constant -1.280000e+02 : f32
    %cst_20 = arith.constant 1.270000e+02 : f32
    %43 = vector.broadcast %cst_19 : f32 to vector<2x128x256xf32>
    %44 = arith.maximumf %43, %42 : vector<2x128x256xf32>
    %45 = vector.broadcast %cst_20 : f32 to vector<2x128x256xf32>
    %46 = arith.minimumf %45, %44 : vector<2x128x256xf32>
    %47 = vector.shape_cast %46 : vector<2x128x256xf32> to vector<256x256xf32>
    %48 = arith.truncf %47 : vector<256x256xf32> to vector<256x256xbf16>
    %c0_21 = arith.constant 0 : index
    %c0_22 = arith.constant 0 : index
    %49 = vector.load %arg4[%c0_21, %c0_22] : memref<256x128xbf16, #tpu.memory_space<vmem>>, vector<256x128xbf16>
    %cst_23 = arith.constant dense<0.000000e+00> : vector<256x128xf32>
    %50 = tpu.matmul %48, %49, %cst_23 {dimension_numbers = #tpu.dot_dimension_numbers<[1], [0], [0], [1], [0, 0, 1, 1], [], []>} : vector<256x256xbf16>, vector<256x128xbf16>, vector<256x128xf32> -> vector<256x128xf32>
    %51 = vector.shape_cast %50 : vector<256x128xf32> to vector<2x128x128xf32>
    %52 = arith.mulf %9, %37 : vector<1x128x1xf32>
    %53 = vector.broadcast %52 : vector<1x128x1xf32> to vector<2x128x128xf32>
    %54 = arith.mulf %51, %53 : vector<2x128x128xf32>
    %c0_24 = arith.constant 0 : index
    %c0_25 = arith.constant 0 : index
    %55 = vector.load %arg5[%c0_24, %c0_25] : memref<1x128xf32, #tpu.memory_space<vmem>>, vector<1x128xf32>
    %56 = vector.shape_cast %55 : vector<1x128xf32> to vector<1x1x128xf32>
    %57 = vector.broadcast %56 : vector<1x1x128xf32> to vector<2x128x128xf32>
    %58 = arith.mulf %54, %57 : vector<2x128x128xf32>
    %c0_26 = arith.constant 0 : index
    %c0_27 = arith.constant 0 : index
    %c0_28 = arith.constant 0 : index
    %59 = vector.load %arg6[%c0_26, %c0_27, %c0_28] : memref<2x128x128xf32, #tpu.memory_space<vmem>>, vector<2x128x128xf32>
    tpu.vector_store %arg6[%c0_26, %c0_27, %c0_28], %58 {strides = array<i32>} : memref<2x128x128xf32, #tpu.memory_space<vmem>>, vector<2x128x128xf32>,
    return
  }
  func.func @transform_0(%arg0: i32) -> (i32, i32, i32) {
    %c0_i32 = arith.constant 0 : i32
    %c0_i32_0 = arith.constant 0 : i32
    %c0_i32_1 = arith.constant 0 : i32
    return %c0_i32, %arg0, %c0_i32_0 : i32, i32, i32
  }
  func.func @transform_1(%arg0: i32) -> (i32, i32) {
    %c0_i32 = arith.constant 0 : i32
    %c0_i32_0 = arith.constant 0 : i32
    %c0_i32_1 = arith.constant 0 : i32
    return %c0_i32, %c0_i32_0 : i32, i32
  }
  func.func @transform_2(%arg0: i32) -> (i32, i32) {
    %c0_i32 = arith.constant 0 : i32
    %c0_i32_0 = arith.constant 0 : i32
    %c0_i32_1 = arith.constant 0 : i32
    return %c0_i32, %c0_i32_0 : i32, i32
  }
  func.func @transform_3(%arg0: i32) -> (i32, i32) {
    %c0_i32 = arith.constant 0 : i32
    %c0_i32_0 = arith.constant 0 : i32
    %c0_i32_1 = arith.constant 0 : i32
    return %c0_i32, %c0_i32_0 : i32, i32
  }
  func.func @transform_4(%arg0: i32) -> (i32, i32) {
    %c0_i32 = arith.constant 0 : i32
    %c0_i32_0 = arith.constant 0 : i32
    %c0_i32_1 = arith.constant 0 : i32
    return %c0_i32, %c0_i32_0 : i32, i32
  }
  func.func @transform_5(%arg0: i32) -> (i32, i32, i32) {
    %c0_i32 = arith.constant 0 : i32
    %c0_i32_0 = arith.constant 0 : i32
    %c0_i32_1 = arith.constant 0 : i32
    return %c0_i32, %arg0, %c0_i32_0 : i32, i32, i32
  }
}

</mosaic_0001>

<llo_original>
// kernel: tpu_custom_call.1
$region0: #{tpu_custom_call.1}
  #allocation0 [shape = 'u32[]', space=smem, size = 0x4, offset = 0x4, fixed_abs, tag = 'smem constant byte address 0x4 - core index']
  #allocation1 [shape = 'u32[144,128]{1,0:T(1,128)}', space=vmem, size = 0x12000, scoped, tag = 'internal scratch']
  #allocation9 [shape = 's32[]', space=sflag, size = 0x4, offset = 0, fixed_abs, tag = 'sflag constant byte address 0x0 - dummy sync flag']
  #allocation11 [shape = 's32[]', space=sflag, size = 0x4, offset = 0, fixed_abs, tag = 'sflag constant byte address 0x0 - dummy sync flag']
  %s0 = inlined_call_operand.hbm [shape: f32[2,256,128], index: 0, kind: input, shape index: {}]
  %s1 = inlined_call_operand.hbm [shape: s8[128,256], index: 1, kind: input, shape index: {}]
  %s2 = inlined_call_operand.vmem [shape: f32[1,256], index: 2, kind: input, shape index: {}]
  %s3 = inlined_call_operand.hbm [shape: s8[256,128], index: 3, kind: input, shape index: {}]
  %s4 = inlined_call_operand.vmem [shape: f32[1,128], index: 4, kind: input, shape index: {}]
  %s5 = inlined_call_operand.hbm [shape: f32[2,256,128], index: 5, kind: output, shape index: {}]
  %s6 = sld [smem:[#allocation0]]
  $region65: #{tpu_custom_call.1} parent=0
    _
  %s8 = ssub.s32 1, %s6
  %s9 = scalar_select 0, %s8, %s6
  $region1: #{tpu_custom_call.1} parent=0
    #allocation2 [shape = 'u8[262144]{0}', space=vmem, size = 0x40000, scoped, tag = 'input window, operand 0']
    #allocation3 [shape = 's32[2]{0}', space=sflag, size = 0x8, scoped, tag = 'scoped memory for tpu_custom_call.1']
    #allocation4 [shape = 's32[2]{0}', space=sflag, size = 0x8, scoped, tag = 'scoped memory for tpu_custom_call.1']
    #allocation5 [shape = 'u8[32768]{0}', space=vmem, size = 0x8000, scoped, tag = 'input window, operand 1, single buffered']
    #allocation6 [shape = 's32[1]{0}', space=sflag, size = 0x4, scoped, tag = 'scoped memory for tpu_custom_call.1']
    #allocation7 [shape = 'u8[32768]{0}', space=vmem, size = 0x8000, scoped, tag = 'input window, operand 3, single buffered']
    #allocation8 [shape = 'u8[262144]{0}', space=vmem, size = 0x40000, scoped, tag = 'output window, operand 0']
    %10 = vsyncpa [#allocation3], 0
    %s11 = scalar_lea.sflag [#allocation3], 1
    %12 = vsyncpa %s11, 0
    %13 = vsyncpa [#allocation6], 0
    %14 = vsyncpa [#allocation4], 0
    %s15 = scalar_lea.sflag [#allocation4], 1
    %16 = vsyncpa %s15, 0
    loop: start=0, step=1, limit=4
    $region2: #{tpu_custom_call.1} parent=1 // loop_pre_header
      _
    $region3: #{tpu_custom_call.1} parent=1 // loop_header
      %s18 = sphi 0, %s22
      %p19 = scmp.ge.s32.totalorder %s18, 4
      %s28 = sphi 0, %s30
      %s31 = sphi 0, %s28
      %s32 = sphi 0, %s31
      %s48 = sphi 0, %s32
      %s52 = sphi 0, %s52
      %s54 = sphi 0, %s52
      %s55 = sphi 0, %s54
      %s69 = sphi 0, %s55
      %s73 = sphi 0, %s73
      %s75 = sphi 0, %s73
      %s76 = sphi 0, %s75
      %s90 = sphi 0, %s76
      %s94 = sphi 0, %s94
      %s96 = sphi 0, %s94
      %s97 = sphi 0, %s96
      %s111 = sphi 0, %s97
      %s115 = sphi 0, %s115
      %s117 = sphi 0, %s115
      %s118 = sphi 0, %s117
      %s132 = sphi 0, %s118
      %s138 = sphi 0, %s140
      %s141 = sphi 0, %s138
      %s142 = sphi 0, %s141
      %s158 = sphi 0, %s142
    $region4: #{tpu_custom_call.1} parent=1 // loop_header_branch
      %21 = sbr.rel (%p19) target = $region8
    $region5: #{tpu_custom_call.1} parent=1 // loop_body
      %s23 = ssub.s32 %s18, 1
      %s24 = ssub.s32 %s18, 2
      %s25 = sadd.s32 %s18, 1
      %s26 = ssub.s32 %s18, %s25
      %p27 = scmp.eq.s32.totalorder %s26, 0
      %s29 = sadd.s32 %s28, 1
      %s30 = scalar_select %p27, %s28, %s29
      %p33 = pneg %p27
      %p34 = scmp.eq.s32.totalorder %s18, 1
      %p35 = por %p33, %p34
      %p36 = scmp.ne.s32.totalorder %s28, %s31
      %p37 = scmp.eq.s32.totalorder %s18, 0
      %p38 = por %p36, %p37
      %p39 = scmp.ne.s32.totalorder %s28, %s31
      %p40 = scmp.eq.s32.totalorder %s23, 1
      %p41 = por %p39, %p40
      %p42 = scmp.ne.s32.totalorder %s31, %s32
      %p43 = scmp.eq.s32.totalorder %s23, 0
      %p44 = por %p42, %p43
      %p45 = scmp.ne.s32.totalorder %s31, %s32
      %p46 = scmp.eq.s32.totalorder %s24, 1
      %p47 = por %p45, %p46
      %p49 = scmp.ne.s32.totalorder %s32, %s48
      %p50 = scmp.eq.s32.totalorder %s24, 0
      %p51 = por %p49, %p50
      %s53 = sadd.s32 %s52, 1
      %p56 = scmp.eq.s32.totalorder %s18, 1
      %p57 = scmp.ne.s32.totalorder %s52, %s54
      %p58 = scmp.eq.s32.totalorder %s18, 0
      %p59 = por %p57, %p58
      %p60 = scmp.ne.s32.totalorder %s52, %s54
      %p61 = scmp.eq.s32.totalorder %s23, 1
      %p62 = por %p60, %p61
      %p63 = scmp.ne.s32.totalorder %s54, %s55
      %p64 = scmp.eq.s32.totalorder %s23, 0
      %p65 = por %p63, %p64
      %p66 = scmp.ne.s32.totalorder %s54, %s55
      %p67 = scmp.eq.s32.totalorder %s24, 1
      %p68 = por %p66, %p67
      %p70 = scmp.ne.s32.totalorder %s55, %s69
      %p71 = scmp.eq.s32.totalorder %s24, 0
      %p72 = por %p70, %p71
      %s74 = sadd.s32 %s73, 1
      %p77 = scmp.eq.s32.totalorder %s18, 1
      %p78 = scmp.ne.s32.totalorder %s73, %s75
      %p79 = scmp.eq.s32.totalorder %s18, 0
      %p80 = por %p78, %p79
      %p81 = scmp.ne.s32.totalorder %s73, %s75
      %p82 = scmp.eq.s32.totalorder %s23, 1
      %p83 = por %p81, %p82
      %p84 = scmp.ne.s32.totalorder %s75, %s76
      %p85 = scmp.eq.s32.totalorder %s23, 0
      %p86 = por %p84, %p85
      %p87 = scmp.ne.s32.totalorder %s75, %s76
      %p88 = scmp.eq.s32.totalorder %s24, 1
      %p89 = por %p87, %p88
      %p91 = scmp.ne.s32.totalorder %s76, %s90
      %p92 = scmp.eq.s32.totalorder %s24, 0
      %p93 = por %p91, %p92
      %s95 = sadd.s32 %s94, 1
      %p98 = scmp.eq.s32.totalorder %s18, 1
      %p99 = scmp.ne.s32.totalorder %s94, %s96
      %p100 = scmp.eq.s32.totalorder %s18, 0
      %p101 = por %p99, %p100
      %p102 = scmp.ne.s32.totalorder %s94, %s96
      %p103 = scmp.eq.s32.totalorder %s23, 1
      %p104 = por %p102, %p103
      %p105 = scmp.ne.s32.totalorder %s96, %s97
      %p106 = scmp.eq.s32.totalorder %s23, 0
      %p107 = por %p105, %p106
      %p108 = scmp.ne.s32.totalorder %s96, %s97
      %p109 = scmp.eq.s32.totalorder %s24, 1
      %p110 = por %p108, %p109
      %p112 = scmp.ne.s32.totalorder %s97, %s111
      %p113 = scmp.eq.s32.totalorder %s24, 0
      %p114 = por %p112, %p113
      %s116 = sadd.s32 %s115, 1
      %p119 = scmp.eq.s32.totalorder %s18, 1
      %p120 = scmp.ne.s32.totalorder %s115, %s117
      %p121 = scmp.eq.s32.totalorder %s18, 0
      %p122 = por %p120, %p121
      %p123 = scmp.ne.s32.totalorder %s115, %s117
      %p124 = scmp.eq.s32.totalorder %s23, 1
      %p125 = por %p123, %p124
      %p126 = scmp.ne.s32.totalorder %s117, %s118
      %p127 = scmp.eq.s32.totalorder %s23, 0
      %p128 = por %p126, %p127
      %p129 = scmp.ne.s32.totalorder %s117, %s118
      %p130 = scmp.eq.s32.totalorder %s24, 1
      %p131 = por %p129, %p130
      %p133 = scmp.ne.s32.totalorder %s118, %s132
      %p134 = scmp.eq.s32.totalorder %s24, 0
      %p135 = por %p133, %p134
      %s136 = ssub.s32 %s18, %s25
      %p137 = scmp.eq.s32.totalorder %s136, 0
      %s139 = sadd.s32 %s138, 1
      %s140 = scalar_select %p137, %s138, %s139
      %p143 = pneg %p137
      %p144 = scmp.eq.s32.totalorder %s18, 1
      %p145 = por %p143, %p144
      %p146 = scmp.ne.s32.totalorder %s138, %s141
      %p147 = scmp.eq.s32.totalorder %s18, 0
      %p148 = por %p146, %p147
      %p149 = scmp.ne.s32.totalorder %s138, %s141
      %p150 = scmp.eq.s32.totalorder %s23, 1
      %p151 = por %p149, %p150
      %p152 = scmp.ne.s32.totalorder %s141, %s142
      %p153 = scmp.eq.s32.totalorder %s23, 0
      %p154 = por %p152, %p153
      %p155 = scmp.ne.s32.totalorder %s141, %s142
      %p156 = scmp.eq.s32.totalorder %s24, 1
      %p157 = por %p155, %p156
      %p159 = scmp.ne.s32.totalorder %s142, %s158
      %p160 = scmp.eq.s32.totalorder %s24, 0
      %p161 = por %p159, %p160
      %p162 = scmp.le.s32.totalorder 1, %s18
      %p163 = scmp.lt.s32.totalorder %s18, 3
      %p164 = pnand %p162, %p163
      %p165 = pneg %p164
      // Predicated region
      $region9: #{tpu_custom_call.1} parent=5 // pred_check
        _
      $region10: #{tpu_custom_call.1} parent=5 // pred_check_branch
        %167 = sbr.rel (%p164) target = $region12
      $region11: #{tpu_custom_call.1} parent=5 // pred_region
        %s168 = ssub.s32 %s18, 1
        // Predicated region
        $region13: #{tpu_custom_call.1} parent=11 // pred_check
          %p169 = pneg %p65
        $region14: #{tpu_custom_call.1} parent=11 // pred_check_branch
          %171 = sbr.rel (%p169) target = $region16
        $region15: #{tpu_custom_call.1} parent=11 // pred_region
          %s173 = ssub.s32 1024, 1024
          %174 = vsyncadd [#allocation6], %s173
          %s175 = sshll.u32 [#allocation5], 4
          %s176 = int_to_ptr.vmem [resolvable:$true] %s175
          %181 = dma.hbm_to_vmem [thread:$0]  %s1, 1024, %s176, [#allocation6], 256, 256, 16
        $region16: #{tpu_custom_call.1} parent=11 // pred_fallthru
          _
        // Predicated region
        $region17: #{tpu_custom_call.1} parent=11 // pred_check
          %p182 = pneg %p86
        $region18: #{tpu_custom_call.1} parent=11 // pred_check_branch
          %184 = sbr.rel (%p182) target = $region20
        $region19: #{tpu_custom_call.1} parent=11 // pred_region
          _
        $region20: #{tpu_custom_call.1} parent=11 // pred_fallthru
          _
        // Predicated region
        $region21: #{tpu_custom_call.1} parent=11 // pred_check
          %p185 = pneg %p107
        $region22: #{tpu_custom_call.1} parent=11 // pred_check_branch
          %187 = sbr.rel (%p185) target = $region24
        $region23: #{tpu_custom_call.1} parent=11 // pred_region
          %s189 = ssub.s32 1024, 1024
          %190 = vsyncadd [#allocation6], %s189
          %s191 = sshll.u32 [#allocation7], 4
          %s192 = int_to_ptr.vmem [resolvable:$true] %s191
          %197 = dma.hbm_to_vmem [thread:$0]  %s3, 1024, %s192, [#allocation6], 128, 128, 8
        $region24: #{tpu_custom_call.1} parent=11 // pred_fallthru
          _
        // Predicated region
        $region25: #{tpu_custom_call.1} parent=11 // pred_check
          %p198 = pneg %p128
        $region26: #{tpu_custom_call.1} parent=11 // pred_check_branch
          %200 = sbr.rel (%p198) target = $region28
        $region27: #{tpu_custom_call.1} parent=11 // pred_region
          _
        $region28: #{tpu_custom_call.1} parent=11 // pred_fallthru
          _
      $region12: #{tpu_custom_call.1} parent=5 // pred_fallthru
        _
      %p201 = scmp.lt.s32.totalorder %s18, 2
      // Predicated region
      $region29: #{tpu_custom_call.1} parent=5 // pred_check
        %p202 = pneg %p201
      $region30: #{tpu_custom_call.1} parent=5 // pred_check_branch
        %204 = sbr.rel (%p202) target = $region32
      $region31: #{tpu_custom_call.1} parent=5 // pred_region
        // Predicated region
        $region33: #{tpu_custom_call.1} parent=31 // pred_check
          %p205 = pneg %p38
        $region34: #{tpu_custom_call.1} parent=31 // pred_check_branch
          %207 = sbr.rel (%p205) target = $region36
        $region35: #{tpu_custom_call.1} parent=31 // pred_region
          #allocation10 [shape = 'u32[6]{0}', space=smem, size = 0x18, scoped, tag = 'DMA stride descriptor']
          %s208 = sand.u32 %s28, 1
          %s209 = scalar_lea.sflag [#allocation3], %s208
          %s210 = sand.u32 %s28, 1
          %s211 = smul.addr %s210, 256
          %s212 = scalar_lea.vmem [#allocation2], %s211
          %s213 = smul.u32 16, %s18
          %s215 = ssub.s32 4096, 4096
          %216 = vsyncadd %s209, %s215
          %s217 = smul.addr %s213, 128
          %s218 = scalar_lea.hbm %s0, %s217
          %s220 = sshll.u32 1, 14
          %s221 = sxor.u32 4294967295, %s220
          %s223 = sld [smem:[#allocation0]]
          %s224 = sadd.s32 2, %s223
          %s226 = sshll.u32 7, 26
          %s227 = sxor.u32 4294967295, %s226
          %s228 = sand.u32 0, %s227
          %s229 = sshll.u32 %s224, 26
          %s230 = sor.u32 %s228, %s229
          %s231 = sshll.u32 %s212, 4
          %s232 = int_to_ptr.vmem [resolvable:$true] %s231
          %238 = sst [smem:[#allocation10]] 4096
          %s239 = scalar_lea.smem [#allocation10], 1
          %240 = sst [smem:[%s239]] 2048
          %s241 = scalar_lea.smem [#allocation10], 2
          %242 = sst [smem:[%s241]] 16
          %s243 = scalar_lea.smem [#allocation10], 3
          %244 = sst [smem:[%s243]] 128
          %s245 = scalar_lea.smem [#allocation10], 4
          %246 = sst [smem:[%s245]] 128
          %s247 = scalar_lea.smem [#allocation10], 5
          %248 = sst [smem:[%s247]] 8
          %250 = dma.general %s218, 4096, %s232, %s209, [#allocation9], [#allocation10], %s230, 0
        $region36: #{tpu_custom_call.1} parent=31 // pred_fallthru
          _
      $region32: #{tpu_custom_call.1} parent=5 // pred_fallthru
        _
      %p251 = scmp.le.s32.totalorder 1, %s18
      %p252 = scmp.lt.s32.totalorder %s18, 3
      %p253 = pnand %p251, %p252
      %p254 = pneg %p253
      // Predicated region
      $region37: #{tpu_custom_call.1} parent=5 // pred_check
        _
      $region38: #{tpu_custom_call.1} parent=5 // pred_check_branch
        %256 = sbr.rel (%p253) target = $region40
      $region39: #{tpu_custom_call.1} parent=5 // pred_region
        %s257 = ssub.s32 %s18, 1
        %s258 = sand.u32 %s31, 1
        %s259 = scalar_lea.sflag [#allocation3], %s258
        %s260 = sand.u32 %s31, 1
        %s261 = smul.addr %s260, 256
        %s262 = scalar_lea.vmem [#allocation2], %s261
        // Predicated region
        $region41: #{tpu_custom_call.1} parent=39 // pred_check
          %p263 = pneg %p44
        $region42: #{tpu_custom_call.1} parent=39 // pred_check_branch
          %265 = sbr.rel (%p263) target = $region44
        $region43: #{tpu_custom_call.1} parent=39 // pred_region
          %266 = dma.done %s259, 4096
        $region44: #{tpu_custom_call.1} parent=39 // pred_fallthru
          _
        // Predicated region
        $region45: #{tpu_custom_call.1} parent=39 // pred_check
          %p267 = pneg %p65
        $region46: #{tpu_custom_call.1} parent=39 // pred_check_branch
          %269 = sbr.rel (%p267) target = $region48
        $region47: #{tpu_custom_call.1} parent=39 // pred_region
          %270 = dma.done [#allocation6], 1024
        $region48: #{tpu_custom_call.1} parent=39 // pred_fallthru
          _
        // Predicated region
        $region49: #{tpu_custom_call.1} parent=39 // pred_check
          %p271 = pneg %p107
        $region50: #{tpu_custom_call.1} parent=39 // pred_check_branch
          %273 = sbr.rel (%p271) target = $region52
        $region51: #{tpu_custom_call.1} parent=39 // pred_region
          %274 = dma.done [#allocation6], 1024
        $region52: #{tpu_custom_call.1} parent=39 // pred_fallthru
          _
        %s275 = sand.u32 %s31, 1
        %s276 = scalar_lea.sflag [#allocation3], %s275
        %s277 = sand.u32 %s31, 1
        %s278 = smul.addr %s277, 256
        %s279 = scalar_lea.vmem [#allocation2], %s278
        %p280 = pneg %p44
        %p281 = pneg %p41
        %p282 = pneg %p65
        %p283 = pneg %p62
        %p284 = pneg %p86
        %p285 = pneg %p83
        %p286 = pneg %p107
        %p287 = pneg %p104
        %p288 = pneg %p128
        %p289 = pneg %p125
        %p290 = pneg %p154
        %p291 = pneg %p151
        %s292 = sand.u32 %s141, 1
        %s293 = scalar_lea.sflag [#allocation4], %s292
        %s294 = sand.u32 %s141, 1
        %s295 = smul.addr %s294, 256
        %s296 = scalar_lea.vmem [#allocation8], %s295
        %s297 = smul.u32 16, %s23
        %s298 = smul.u32 16, %s23
        %v300 = vld [vmem:[%s262] sm:$0xff]
        %v301 = vld [vmem:[%s262 + $0x8] sm:$0xff]
        %v302 = vld [vmem:[%s262 + $0x10] sm:$0xff]
        %v303 = vld [vmem:[%s262 + $0x18] sm:$0xff]
        %v304 = vld [vmem:[%s262 + $0x20] sm:$0xff]
        %v305 = vld [vmem:[%s262 + $0x28] sm:$0xff]
        %v306 = vld [vmem:[%s262 + $0x30] sm:$0xff]
        %v307 = vld [vmem:[%s262 + $0x38] sm:$0xff]
        %v308 = vld [vmem:[%s262 + $0x40] sm:$0xff]
        %v309 = vld [vmem:[%s262 + $0x48] sm:$0xff]
        %v310 = vld [vmem:[%s262 + $0x50] sm:$0xff]
        %v311 = vld [vmem:[%s262 + $0x58] sm:$0xff]
        %v312 = vld [vmem:[%s262 + $0x60] sm:$0xff]
        %v313 = vld [vmem:[%s262 + $0x68] sm:$0xff]
        %v314 = vld [vmem:[%s262 + $0x70] sm:$0xff]
        %v315 = vld [vmem:[%s262 + $0x78] sm:$0xff]
        %v316 = vld [vmem:[%s262 + $0x80] sm:$0xff]
        %v317 = vld [vmem:[%s262 + $0x88] sm:$0xff]
        %v318 = vld [vmem:[%s262 + $0x90] sm:$0xff]
        %v319 = vld [vmem:[%s262 + $0x98] sm:$0xff]
        %v320 = vld [vmem:[%s262 + $0xa0] sm:$0xff]
        %v321 = vld [vmem:[%s262 + $0xa8] sm:$0xff]
        %v322 = vld [vmem:[%s262 + $0xb0] sm:$0xff]
        %v323 = vld [vmem:[%s262 + $0xb8] sm:$0xff]
        %v324 = vld [vmem:[%s262 + $0xc0] sm:$0xff]
        %v325 = vld [vmem:[%s262 + $0xc8] sm:$0xff]
        %v326 = vld [vmem:[%s262 + $0xd0] sm:$0xff]
        %v327 = vld [vmem:[%s262 + $0xd8] sm:$0xff]
        %v328 = vld [vmem:[%s262 + $0xe0] sm:$0xff]
        %v329 = vld [vmem:[%s262 + $0xe8] sm:$0xff]
        %v330 = vld [vmem:[%s262 + $0xf0] sm:$0xff]
        %v331 = vld [vmem:[%s262 + $0xf8] sm:$0xff]
        %v332 = vand.u32 2147483647, %v300
        %v333 = vand.u32 2147483647, %v301
        %v334 = vand.u32 2147483647, %v302
        %v335 = vand.u32 2147483647, %v303
        %v336 = vand.u32 2147483647, %v304
        %v337 = vand.u32 2147483647, %v305
        %v338 = vand.u32 2147483647, %v306
        %v339 = vand.u32 2147483647, %v307
        %v340 = vand.u32 2147483647, %v308
        %v341 = vand.u32 2147483647, %v309
        %v342 = vand.u32 2147483647, %v310
        %v343 = vand.u32 2147483647, %v311
        %v344 = vand.u32 2147483647, %v312
        %v345 = vand.u32 2147483647, %v313
        %v346 = vand.u32 2147483647, %v314
        %v347 = vand.u32 2147483647, %v315
        %v348 = vand.u32 2147483647, %v316
        %v349 = vand.u32 2147483647, %v317
        %v350 = vand.u32 2147483647, %v318
        %v351 = vand.u32 2147483647, %v319
        %v352 = vand.u32 2147483647, %v320
        %v353 = vand.u32 2147483647, %v321
        %v354 = vand.u32 2147483647, %v322
        %v355 = vand.u32 2147483647, %v323
        %v356 = vand.u32 2147483647, %v324
        %v357 = vand.u32 2147483647, %v325
        %v358 = vand.u32 2147483647, %v326
        %v359 = vand.u32 2147483647, %v327
        %v360 = vand.u32 2147483647, %v328
        %v361 = vand.u32 2147483647, %v329
        %v362 = vand.u32 2147483647, %v330
        %v363 = vand.u32 2147483647, %v331
        %v364 = vmax.f32 %v332, %v348
        %365 = vmax.xlane.f32.xlu0 %v364
        %v366 = vpop.xlane.xlu0 %365
        %v367 = vmax.f32 %v333, %v349
        %368 = vmax.xlane.f32.xlu0 %v367
        %v369 = vpop.xlane.xlu0 %368
        %v370 = vmax.f32 %v334, %v350
        %371 = vmax.xlane.f32.xlu0 %v370
        %v372 = vpop.xlane.xlu0 %371
        %v373 = vmax.f32 %v335, %v351
        %374 = vmax.xlane.f32.xlu0 %v373
        %v375 = vpop.xlane.xlu0 %374
        %v376 = vmax.f32 %v336, %v352
        %377 = vmax.xlane.f32.xlu0 %v376
        %v378 = vpop.xlane.xlu0 %377
        %v379 = vmax.f32 %v337, %v353
        %380 = vmax.xlane.f32.xlu0 %v379
        %v381 = vpop.xlane.xlu0 %380
        %v382 = vmax.f32 %v338, %v354
        %383 = vmax.xlane.f32.xlu0 %v382
        %v384 = vpop.xlane.xlu0 %383
        %v385 = vmax.f32 %v339, %v355
        %386 = vmax.xlane.f32.xlu0 %v385
        %v387 = vpop.xlane.xlu0 %386
        %v388 = vmax.f32 %v340, %v356
        %389 = vmax.xlane.f32.xlu0 %v388
        %v390 = vpop.xlane.xlu0 %389
        %v391 = vmax.f32 %v341, %v357
        %392 = vmax.xlane.f32.xlu0 %v391
        %v393 = vpop.xlane.xlu0 %392
        %v394 = vmax.f32 %v342, %v358
        %395 = vmax.xlane.f32.xlu0 %v394
        %v396 = vpop.xlane.xlu0 %395
        %v397 = vmax.f32 %v343, %v359
        %398 = vmax.xlane.f32.xlu0 %v397
        %v399 = vpop.xlane.xlu0 %398
        %v400 = vmax.f32 %v344, %v360
        %401 = vmax.xlane.f32.xlu0 %v400
        %v402 = vpop.xlane.xlu0 %401
        %v403 = vmax.f32 %v345, %v361
        %404 = vmax.xlane.f32.xlu0 %v403
        %v405 = vpop.xlane.xlu0 %404
        %v406 = vmax.f32 %v346, %v362
        %407 = vmax.xlane.f32.xlu0 %v406
        %v408 = vpop.xlane.xlu0 %407
        %v409 = vmax.f32 %v347, %v363
        %410 = vmax.xlane.f32.xlu0 %v409
        %v411 = vpop.xlane.xlu0 %410
        %v412 = vrcp.pop 127.0
        %v413 = vmul.f32 %v366, %v412
        %v414 = vmul.f32 %v369, %v412
        %v415 = vmul.f32 %v372, %v412
        %v416 = vmul.f32 %v375, %v412
        %v417 = vmul.f32 %v378, %v412
        %v418 = vmul.f32 %v381, %v412
        %v419 = vmul.f32 %v384, %v412
        %v420 = vmul.f32 %v387, %v412
        %v421 = vmul.f32 %v390, %v412
        %v422 = vmul.f32 %v393, %v412
        %v423 = vmul.f32 %v396, %v412
        %v424 = vmul.f32 %v399, %v412
        %v425 = vmul.f32 %v402, %v412
        %v426 = vmul.f32 %v405, %v412
        %v427 = vmul.f32 %v408, %v412
        %v428 = vmul.f32 %v411, %v412
        %vm429 = vcmp.eq.f32.partialorder %v413, 0.0
        %vm430 = vcmp.eq.f32.partialorder %v414, 0.0
        %vm431 = vcmp.eq.f32.partialorder %v415, 0.0
        %vm432 = vcmp.eq.f32.partialorder %v416, 0.0
        %vm433 = vcmp.eq.f32.partialorder %v417, 0.0
        %vm434 = vcmp.eq.f32.partialorder %v418, 0.0
        %vm435 = vcmp.eq.f32.partialorder %v419, 0.0
        %vm436 = vcmp.eq.f32.partialorder %v420, 0.0
        %vm437 = vcmp.eq.f32.partialorder %v421, 0.0
        %vm438 = vcmp.eq.f32.partialorder %v422, 0.0
        %vm439 = vcmp.eq.f32.partialorder %v423, 0.0
        %vm440 = vcmp.eq.f32.partialorder %v424, 0.0
        %vm441 = vcmp.eq.f32.partialorder %v425, 0.0
        %vm442 = vcmp.eq.f32.partialorder %v426, 0.0
        %vm443 = vcmp.eq.f32.partialorder %v427, 0.0
        %vm444 = vcmp.eq.f32.partialorder %v428, 0.0
        %v445 = vsel %vm429, 1.0, %v413
        %v446 = vsel %vm430, 1.0, %v414
        %v447 = vsel %vm431, 1.0, %v415
        %v448 = vsel %vm432, 1.0, %v416
        %v449 = vsel %vm433, 1.0, %v417
        %v450 = vsel %vm434, 1.0, %v418
        %v451 = vsel %vm435, 1.0, %v419
        %v452 = vsel %vm436, 1.0, %v420
        %v453 = vsel %vm437, 1.0, %v421
        %v454 = vsel %vm438, 1.0, %v422
        %v455 = vsel %vm439, 1.0, %v423
        %v456 = vsel %vm440, 1.0, %v424
        %v457 = vsel %vm441, 1.0, %v425
        %v458 = vsel %vm442, 1.0, %v426
        %v459 = vsel %vm443, 1.0, %v427
        %v460 = vsel %vm444, 1.0, %v428
        %v461 = vrcp.pop %v445
        %v462 = vmul.f32 1.0, %v461
        %v463 = vrcp.pop %v446
        %v464 = vmul.f32 1.0, %v463
        %v465 = vrcp.pop %v447
        %v466 = vmul.f32 1.0, %v465
        %v467 = vrcp.pop %v448
        %v468 = vmul.f32 1.0, %v467
        %v469 = vrcp.pop %v449
        %v470 = vmul.f32 1.0, %v469
        %v471 = vrcp.pop %v450
        %v472 = vmul.f32 1.0, %v471
        %v473 = vrcp.pop %v451
        %v474 = vmul.f32 1.0, %v473
        %v475 = vrcp.pop %v452
        %v476 = vmul.f32 1.0, %v475
        %v477 = vrcp.pop %v453
        %v478 = vmul.f32 1.0, %v477
        %v479 = vrcp.pop %v454
        %v480 = vmul.f32 1.0, %v479
        %v481 = vrcp.pop %v455
        %v482 = vmul.f32 1.0, %v481
        %v483 = vrcp.pop %v456
        %v484 = vmul.f32 1.0, %v483
        %v485 = vrcp.pop %v457
        %v486 = vmul.f32 1.0, %v485
        %v487 = vrcp.pop %v458
        %v488 = vmul.f32 1.0, %v487
        %v489 = vrcp.pop %v459
        %v490 = vmul.f32 1.0, %v489
        %v491 = vrcp.pop %v460
        %v492 = vmul.f32 1.0, %v491
        %v493 = vmul.f32 %v300, %v462
        %v494 = vmul.f32 %v301, %v464
        %v495 = vmul.f32 %v302, %v466
        %v496 = vmul.f32 %v303, %v468
        %v497 = vmul.f32 %v304, %v470
        %v498 = vmul.f32 %v305, %v472
        %v499 = vmul.f32 %v306, %v474
        %v500 = vmul.f32 %v307, %v476
        %v501 = vmul.f32 %v308, %v478
        %v502 = vmul.f32 %v309, %v480
        %v503 = vmul.f32 %v310, %v482
        %v504 = vmul.f32 %v311, %v484
        %v505 = vmul.f32 %v312, %v486
        %v506 = vmul.f32 %v313, %v488
        %v507 = vmul.f32 %v314, %v490
        %v508 = vmul.f32 %v315, %v492
        %v509 = vmul.f32 %v316, %v462
        %v510 = vmul.f32 %v317, %v464
        %v511 = vmul.f32 %v318, %v466
        %v512 = vmul.f32 %v319, %v468
        %v513 = vmul.f32 %v320, %v470
        %v514 = vmul.f32 %v321, %v472
        %v515 = vmul.f32 %v322, %v474
        %v516 = vmul.f32 %v323, %v476
        %v517 = vmul.f32 %v324, %v478
        %v518 = vmul.f32 %v325, %v480
        %v519 = vmul.f32 %v326, %v482
        %v520 = vmul.f32 %v327, %v484
        %v521 = vmul.f32 %v328, %v486
        %v522 = vmul.f32 %v329, %v488
        %v523 = vmul.f32 %v330, %v490
        %v524 = vmul.f32 %v331, %v492
        %v525 = vround.ne.pseudo %v493
        %v526 = vround.ne.pseudo %v494
        %v527 = vround.ne.pseudo %v495
        %v528 = vround.ne.pseudo %v496
        %v529 = vround.ne.pseudo %v497
        %v530 = vround.ne.pseudo %v498
        %v531 = vround.ne.pseudo %v499
        %v532 = vround.ne.pseudo %v500
        %v533 = vround.ne.pseudo %v501
        %v534 = vround.ne.pseudo %v502
        %v535 = vround.ne.pseudo %v503
        %v536 = vround.ne.pseudo %v504
        %v537 = vround.ne.pseudo %v505
        %v538 = vround.ne.pseudo %v506
        %v539 = vround.ne.pseudo %v507
        %v540 = vround.ne.pseudo %v508
        %v541 = vround.ne.pseudo %v509
        %v542 = vround.ne.pseudo %v510
        %v543 = vround.ne.pseudo %v511
        %v544 = vround.ne.pseudo %v512
        %v545 = vround.ne.pseudo %v513
        %v546 = vround.ne.pseudo %v514
        %v547 = vround.ne.pseudo %v515
        %v548 = vround.ne.pseudo %v516
        %v549 = vround.ne.pseudo %v517
        %v550 = vround.ne.pseudo %v518
        %v551 = vround.ne.pseudo %v519
        %v552 = vround.ne.pseudo %v520
        %v553 = vround.ne.pseudo %v521
        %v554 = vround.ne.pseudo %v522
        %v555 = vround.ne.pseudo %v523
        %v556 = vround.ne.pseudo %v524
        %v557 = vmax.f32 %v525, -128.0
        %v558 = vmax.f32 %v526, -128.0
        %v559 = vmax.f32 %v527, -128.0
        %v560 = vmax.f32 %v528, -128.0
        %v561 = vmax.f32 %v529, -128.0
        %v562 = vmax.f32 %v530, -128.0
        %v563 = vmax.f32 %v531, -128.0
        %v564 = vmax.f32 %v532, -128.0
        %v565 = vmax.f32 %v533, -128.0
        %v566 = vmax.f32 %v534, -128.0
        %v567 = vmax.f32 %v535, -128.0
        %v568 = vmax.f32 %v536, -128.0
        %v569 = vmax.f32 %v537, -128.0
        %v570 = vmax.f32 %v538, -128.0
        %v571 = vmax.f32 %v539, -128.0
        %v572 = vmax.f32 %v540, -128.0
        %v573 = vmax.f32 %v541, -128.0
        %v574 = vmax.f32 %v542, -128.0
        %v575 = vmax.f32 %v543, -128.0
        %v576 = vmax.f32 %v544, -128.0
        %v577 = vmax.f32 %v545, -128.0
        %v578 = vmax.f32 %v546, -128.0
        %v579 = vmax.f32 %v547, -128.0
        %v580 = vmax.f32 %v548, -128.0
        %v581 = vmax.f32 %v549, -128.0
        %v582 = vmax.f32 %v550, -128.0
        %v583 = vmax.f32 %v551, -128.0
        %v584 = vmax.f32 %v552, -128.0
        %v585 = vmax.f32 %v553, -128.0
        %v586 = vmax.f32 %v554, -128.0
        %v587 = vmax.f32 %v555, -128.0
        %v588 = vmax.f32 %v556, -128.0
        %v589 = vmin.f32 %v557, 127.0
        %v590 = vmin.f32 %v558, 127.0
        %v591 = vmin.f32 %v559, 127.0
        %v592 = vmin.f32 %v560, 127.0
        %v593 = vmin.f32 %v561, 127.0
        %v594 = vmin.f32 %v562, 127.0
        %v595 = vmin.f32 %v563, 127.0
        %v596 = vmin.f32 %v564, 127.0
        %v597 = vmin.f32 %v565, 127.0
        %v598 = vmin.f32 %v566, 127.0
        %v599 = vmin.f32 %v567, 127.0
        %v600 = vmin.f32 %v568, 127.0
        %v601 = vmin.f32 %v569, 127.0
        %v602 = vmin.f32 %v570, 127.0
        %v603 = vmin.f32 %v571, 127.0
        %v604 = vmin.f32 %v572, 127.0
        %v605 = vmin.f32 %v573, 127.0
        %v606 = vmin.f32 %v574, 127.0
        %v607 = vmin.f32 %v575, 127.0
        %v608 = vmin.f32 %v576, 127.0
        %v609 = vmin.f32 %v577, 127.0
        %v610 = vmin.f32 %v578, 127.0
        %v611 = vmin.f32 %v579, 127.0
        %v612 = vmin.f32 %v580, 127.0
        %v613 = vmin.f32 %v581, 127.0
        %v614 = vmin.f32 %v582, 127.0
        %v615 = vmin.f32 %v583, 127.0
        %v616 = vmin.f32 %v584, 127.0
        %v617 = vmin.f32 %v585, 127.0
        %v618 = vmin.f32 %v586, 127.0
        %v619 = vmin.f32 %v587, 127.0
        %v620 = vmin.f32 %v588, 127.0
        %v621 = vtrunc.f32 %v589
        %v622 = vtrunc.f32 %v590
        %v623 = vtrunc.f32 %v591
        %v624 = vtrunc.f32 %v592
        %v625 = vtrunc.f32 %v593
        %v626 = vtrunc.f32 %v594
        %v627 = vtrunc.f32 %v595
        %v628 = vtrunc.f32 %v596
        %v629 = vtrunc.f32 %v597
        %v630 = vtrunc.f32 %v598
        %v631 = vtrunc.f32 %v599
        %v632 = vtrunc.f32 %v600
        %v633 = vtrunc.f32 %v601
        %v634 = vtrunc.f32 %v602
        %v635 = vtrunc.f32 %v603
        %v636 = vtrunc.f32 %v604
        %v637 = vtrunc.f32 %v605
        %v638 = vtrunc.f32 %v606
        %v639 = vtrunc.f32 %v607
        %v640 = vtrunc.f32 %v608
        %v641 = vtrunc.f32 %v609
        %v642 = vtrunc.f32 %v610
        %v643 = vtrunc.f32 %v611
        %v644 = vtrunc.f32 %v612
        %v645 = vtrunc.f32 %v613
        %v646 = vtrunc.f32 %v614
        %v647 = vtrunc.f32 %v615
        %v648 = vtrunc.f32 %v616
        %v649 = vtrunc.f32 %v617
        %v650 = vtrunc.f32 %v618
        %v651 = vtrunc.f32 %v619
        %v652 = vtrunc.f32 %v620
        %v653 = vpack.c.f32.eXmY %v621, %v622, 312
        %v657 = vpack.c.f32.eXmY %v623, %v624, 312
        %v661 = vpack.c.b8 %v657, %v653
        %v663 = vpack.c.f32.eXmY %v625, %v626, 312
        %v667 = vpack.c.f32.eXmY %v627, %v628, 312
        %v671 = vpack.c.b8 %v667, %v663
        %v673 = vpack.c.f32.eXmY %v629, %v630, 312
        %v677 = vpack.c.f32.eXmY %v631, %v632, 312
        %v681 = vpack.c.b8 %v677, %v673
        %v683 = vpack.c.f32.eXmY %v633, %v634, 312
        %v687 = vpack.c.f32.eXmY %v635, %v636, 312
        %v691 = vpack.c.b8 %v687, %v683
        %v693 = vpack.c.f32.eXmY %v637, %v638, 312
        %v697 = vpack.c.f32.eXmY %v639, %v640, 312
        %v701 = vpack.c.b8 %v697, %v693
        %v703 = vpack.c.f32.eXmY %v641, %v642, 312
        %v707 = vpack.c.f32.eXmY %v643, %v644, 312
        %v711 = vpack.c.b8 %v707, %v703
        %v713 = vpack.c.f32.eXmY %v645, %v646, 312
        %v717 = vpack.c.f32.eXmY %v647, %v648, 312
        %v721 = vpack.c.b8 %v717, %v713
        %v723 = vpack.c.f32.eXmY %v649, %v650, 312
        %v727 = vpack.c.f32.eXmY %v651, %v652, 312
        %v731 = vpack.c.b8 %v727, %v723
        %v733 = vld [vmem:[#allocation5] sm:$0xff]
        %v734 = vld [vmem:[#allocation5 + $0x8] sm:$0xff]
        %v735 = vld [vmem:[#allocation5 + $0x10] sm:$0xff]
        %v736 = vld [vmem:[#allocation5 + $0x18] sm:$0xff]
        %v737 = vld [vmem:[#allocation5 + $0x20] sm:$0xff]
        %v738 = vld [vmem:[#allocation5 + $0x28] sm:$0xff]
        %v739 = vld [vmem:[#allocation5 + $0x30] sm:$0xff]
        %v740 = vld [vmem:[#allocation5 + $0x38] sm:$0xff]
        %v741 = vunpack.c.l.s8.bf16 %v661
        %v742 = vunpack.c.h.s8.bf16 %v661
        %v743 = vunpack.c.l.s8.bf16 %v671
        %v744 = vunpack.c.h.s8.bf16 %v671
        %v745 = vunpack.c.l.s8.bf16 %v681
        %v746 = vunpack.c.h.s8.bf16 %v681
        %v747 = vunpack.c.l.s8.bf16 %v691
        %v748 = vunpack.c.h.s8.bf16 %v691
        %v749 = vunpack.c.l.s8.bf16 %v701
        %v750 = vunpack.c.h.s8.bf16 %v701
        %v751 = vunpack.c.l.s8.bf16 %v711
        %v752 = vunpack.c.h.s8.bf16 %v711
        %v753 = vunpack.c.l.s8.bf16 %v721
        %v754 = vunpack.c.h.s8.bf16 %v721
        %v755 = vunpack.c.l.s8.bf16 %v731
        %v756 = vunpack.c.h.s8.bf16 %v731
        %v757 = vunpack.c.l.s8.bf16 %v733
        %v758 = vunpack.c.l.s8.bf16 %v734
        %v759 = vunpack.c.h.s8.bf16 %v733
        %v760 = vunpack.c.h.s8.bf16 %v734
        %v761 = vunpack.c.l.s8.bf16 %v735
        %v762 = vunpack.c.l.s8.bf16 %v736
        %v763 = vunpack.c.h.s8.bf16 %v735
        %v764 = vunpack.c.h.s8.bf16 %v736
        %v765 = vunpack.c.l.s8.bf16 %v737
        %v766 = vunpack.c.l.s8.bf16 %v738
        %v767 = vunpack.c.h.s8.bf16 %v737
        %v768 = vunpack.c.h.s8.bf16 %v738
        %v769 = vunpack.c.l.s8.bf16 %v739
        %v770 = vunpack.c.l.s8.bf16 %v740
        %v771 = vunpack.c.h.s8.bf16 %v739
        %v772 = vunpack.c.h.s8.bf16 %v740
        %v773 = vcvt.s32.f32 0
        %774 = vmatprep.subr.bf16.mxu0 %v758
        %775 = vmatpush1.bf16.msra.mxu0 %v757
        %776 = vmatprep.subr.bf16.mxu0 %v760
        %777 = vmatpush1.bf16.msra.mxu0 %v759
        %778 = vmatprep.subr.bf16.mxu0 %v762
        %779 = vmatpush1.bf16.msra.mxu0 %v761
        %780 = vmatprep.subr.bf16.mxu0 %v764
        %781 = vmatpush1.bf16.msra.mxu0 %v763
        %782 = vmatprep.subr.bf16.mxu0 %v766
        %783 = vmatpush1.bf16.msra.mxu0 %v765
        %784 = vmatprep.subr.bf16.mxu0 %v768
        %785 = vmatpush1.bf16.msra.mxu0 %v767
        %786 = vmatprep.subr.bf16.mxu0 %v770
        %787 = vmatpush1.bf16.msra.mxu0 %v769
        %788 = vmatprep.subr.bf16.mxu0 %v772
        %789 = vmatpush1.bf16.msra.mxu0 %v771
        %790 = vmatprep.subr.bf16.mxu0 0
        %791 = vmatpush1.bf16.msra.mxu0 0
        %792 = vmatprep.subr.bf16.mxu0 0
        %793 = vmatpush1.bf16.msra.mxu0 0
        %794 = vmatprep.subr.bf16.mxu0 0
        %795 = vmatpush1.bf16.msra.mxu0 0
        %796 = vmatprep.subr.bf16.mxu0 0
        %797 = vmatpush1.bf16.msra.mxu0 0
        %798 = vmatprep.subr.bf16.mxu0 0
        %799 = vmatpush1.bf16.msra.mxu0 0
        %800 = vmatprep.subr.bf16.mxu0 0
        %801 = vmatpush1.bf16.msra.mxu0 0
        %802 = vmatprep.subr.bf16.mxu0 0
        %803 = vmatpush1.bf16.msra.mxu0 0
        %804 = vmatprep.subr.bf16.mxu0 0
        %805 = vmatpush1.bf16.msra.mxu0 0
        %806 = vmatprep.mubr.bf16.mxu0 0
        %807 = vmatmul.mubr.bf16.gmra.mrb[0].mxu0 %v741
        %v808 = vpop.f32.mrb[0].mxu0
        %v809 = vadd.f32 %v773, %v808
        %v810 = vpop.f32.mrb[0].mxu0
        %v811 = vadd.f32 %v773, %v810
        %v812 = vpop.f32.mrb[0].mxu0
        %v813 = vadd.f32 %v773, %v812
        %v814 = vpop.f32.mrb[0].mxu0
        %v815 = vadd.f32 %v773, %v814
        %816 = vmatprep.mubr.bf16.mxu0 0
        %817 = vmatmul.mubr.bf16.gmra.mrb[0].mxu0 %v742
        %v818 = vpop.f32.mrb[0].mxu0
        %v819 = vadd.f32 %v773, %v818
        %v820 = vpop.f32.mrb[0].mxu0
        %v821 = vadd.f32 %v773, %v820
        %v822 = vpop.f32.mrb[0].mxu0
        %v823 = vadd.f32 %v773, %v822
        %v824 = vpop.f32.mrb[0].mxu0
        %v825 = vadd.f32 %v773, %v824
        %826 = vmatprep.mubr.bf16.mxu0 0
        %827 = vmatmul.mubr.bf16.gmra.mrb[0].mxu0 %v743
        %v828 = vpop.f32.mrb[0].mxu0
        %v829 = vadd.f32 %v773, %v828
        %v830 = vpop.f32.mrb[0].mxu0
        %v831 = vadd.f32 %v773, %v830
        %v832 = vpop.f32.mrb[0].mxu0
        %v833 = vadd.f32 %v773, %v832
        %v834 = vpop.f32.mrb[0].mxu0
        %v835 = vadd.f32 %v773, %v834
        %836 = vmatprep.mubr.bf16.mxu0 0
        %837 = vmatmul.mubr.bf16.gmra.mrb[0].mxu0 %v744
        %v838 = vpop.f32.mrb[0].mxu0
        %v839 = vadd.f32 %v773, %v838
        %v840 = vpop.f32.mrb[0].mxu0
        %v841 = vadd.f32 %v773, %v840
        %v842 = vpop.f32.mrb[0].mxu0
        %v843 = vadd.f32 %v773, %v842
        %v844 = vpop.f32.mrb[0].mxu0
        %v845 = vadd.f32 %v773, %v844
        %846 = vmatprep.mubr.bf16.mxu0 0
        %847 = vmatmul.mubr.bf16.gmra.mrb[0].mxu0 %v745
        %v848 = vpop.f32.mrb[0].mxu0
        %v849 = vadd.f32 %v773, %v848
        %v850 = vpop.f32.mrb[0].mxu0
        %v851 = vadd.f32 %v773, %v850
        %v852 = vpop.f32.mrb[0].mxu0
        %v853 = vadd.f32 %v773, %v852
        %v854 = vpop.f32.mrb[0].mxu0
        %v855 = vadd.f32 %v773, %v854
        %856 = vmatprep.mubr.bf16.mxu0 0
        %857 = vmatmul.mubr.bf16.gmra.mrb[0].mxu0 %v746
        %v858 = vpop.f32.mrb[0].mxu0
        %v859 = vadd.f32 %v773, %v858
        %v860 = vpop.f32.mrb[0].mxu0
        %v861 = vadd.f32 %v773, %v860
        %v862 = vpop.f32.mrb[0].mxu0
        %v863 = vadd.f32 %v773, %v862
        %v864 = vpop.f32.mrb[0].mxu0
        %v865 = vadd.f32 %v773, %v864
        %866 = vmatprep.mubr.bf16.mxu0 0
        %867 = vmatmul.mubr.bf16.gmra.mrb[0].mxu0 %v747
        %v868 = vpop.f32.mrb[0].mxu0
        %v869 = vadd.f32 %v773, %v868
        %v870 = vpop.f32.mrb[0].mxu0
        %v871 = vadd.f32 %v773, %v870
        %v872 = vpop.f32.mrb[0].mxu0
        %v873 = vadd.f32 %v773, %v872
        %v874 = vpop.f32.mrb[0].mxu0
        %v875 = vadd.f32 %v773, %v874
        %876 = vmatprep.mubr.bf16.mxu0 0
        %877 = vmatmul.mubr.bf16.gmra.mrb[0].mxu0 %v748
        %v878 = vpop.f32.mrb[0].mxu0
        %v879 = vadd.f32 %v773, %v878
        %v880 = vpop.f32.mrb[0].mxu0
        %v881 = vadd.f32 %v773, %v880
        %v882 = vpop.f32.mrb[0].mxu0
        %v883 = vadd.f32 %v773, %v882
        %v884 = vpop.f32.mrb[0].mxu0
        %v885 = vadd.f32 %v773, %v884
        %886 = vmatprep.mubr.bf16.mxu0 0
        %887 = vmatmul.mubr.bf16.gmra.mrb[0].mxu0 %v749
        %v888 = vpop.f32.mrb[0].mxu0
        %v889 = vadd.f32 %v773, %v888
        %v890 = vpop.f32.mrb[0].mxu0
        %v891 = vadd.f32 %v773, %v890
        %v892 = vpop.f32.mrb[0].mxu0
        %v893 = vadd.f32 %v773, %v892
        %v894 = vpop.f32.mrb[0].mxu0
        %v895 = vadd.f32 %v773, %v894
        %896 = vmatprep.mubr.bf16.mxu0 0
        %897 = vmatmul.mubr.bf16.gmra.mrb[0].mxu0 %v750
        %v898 = vpop.f32.mrb[0].mxu0
        %v899 = vadd.f32 %v773, %v898
        %v900 = vpop.f32.mrb[0].mxu0
        %v901 = vadd.f32 %v773, %v900
        %v902 = vpop.f32.mrb[0].mxu0
        %v903 = vadd.f32 %v773, %v902
        %v904 = vpop.f32.mrb[0].mxu0
        %v905 = vadd.f32 %v773, %v904
        %906 = vmatprep.mubr.bf16.mxu0 0
        %907 = vmatmul.mubr.bf16.gmra.mrb[0].mxu0 %v751
        %v908 = vpop.f32.mrb[0].mxu0
        %v909 = vadd.f32 %v773, %v908
        %v910 = vpop.f32.mrb[0].mxu0
        %v911 = vadd.f32 %v773, %v910
        %v912 = vpop.f32.mrb[0].mxu0
        %v913 = vadd.f32 %v773, %v912
        %v914 = vpop.f32.mrb[0].mxu0
        %v915 = vadd.f32 %v773, %v914
        %916 = vmatprep.mubr.bf16.mxu0 0
        %917 = vmatmul.mubr.bf16.gmra.mrb[0].mxu0 %v752
        %v918 = vpop.f32.mrb[0].mxu0
        %v919 = vadd.f32 %v773, %v918
        %v920 = vpop.f32.mrb[0].mxu0
        %v921 = vadd.f32 %v773, %v920
        %v922 = vpop.f32.mrb[0].mxu0
        %v923 = vadd.f32 %v773, %v922
        %v924 = vpop.f32.mrb[0].mxu0
        %v925 = vadd.f32 %v773, %v924
        %926 = vmatprep.mubr.bf16.mxu0 0
        %927 = vmatmul.mubr.bf16.gmra.mrb[0].mxu0 %v753
        %v928 = vpop.f32.mrb[0].mxu0
        %v929 = vadd.f32 %v773, %v928
        %v930 = vpop.f32.mrb[0].mxu0
        %v931 = vadd.f32 %v773, %v930
        %v932 = vpop.f32.mrb[0].mxu0
        %v933 = vadd.f32 %v773, %v932
        %v934 = vpop.f32.mrb[0].mxu0
        %v935 = vadd.f32 %v773, %v934
        %936 = vmatprep.mubr.bf16.mxu0 0
        %937 = vmatmul.mubr.bf16.gmra.mrb[0].mxu0 %v754
        %v938 = vpop.f32.mrb[0].mxu0
        %v939 = vadd.f32 %v773, %v938
        %v940 = vpop.f32.mrb[0].mxu0
        %v941 = vadd.f32 %v773, %v940
        %v942 = vpop.f32.mrb[0].mxu0
        %v943 = vadd.f32 %v773, %v942
        %v944 = vpop.f32.mrb[0].mxu0
        %v945 = vadd.f32 %v773, %v944
        %946 = vmatprep.mubr.bf16.mxu0 0
        %947 = vmatmul.mubr.bf16.gmra.mrb[0].mxu0 %v755
        %v948 = vpop.f32.mrb[0].mxu0
        %v949 = vadd.f32 %v773, %v948
        %v950 = vpop.f32.mrb[0].mxu0
        %v951 = vadd.f32 %v773, %v950
        %v952 = vpop.f32.mrb[0].mxu0
        %v953 = vadd.f32 %v773, %v952
        %v954 = vpop.f32.mrb[0].mxu0
        %v955 = vadd.f32 %v773, %v954
        %956 = vmatprep.mubr.bf16.mxu0 0
        %957 = vmatmul.mubr.bf16.gmra.mrb[0].mxu0 %v756
        %v958 = vpop.f32.mrb[0].mxu0
        %v959 = vadd.f32 %v773, %v958
        %v960 = vpop.f32.mrb[0].mxu0
        %v961 = vadd.f32 %v773, %v960
        %v962 = vpop.f32.mrb[0].mxu0
        %v963 = vadd.f32 %v773, %v962
        %v964 = vpop.f32.mrb[0].mxu0
        %v965 = vadd.f32 %v773, %v964
        %966 = vdwg.mxu0
        %v967 = vcvt.f32.s32.to.zero.pseudo %v809
        %v968 = vcvt.f32.s32.to.zero.pseudo %v811
        %v969 = vcvt.f32.s32.to.zero.pseudo %v813
        %v970 = vcvt.f32.s32.to.zero.pseudo %v815
        %v971 = vcvt.f32.s32.to.zero.pseudo %v819
        %v972 = vcvt.f32.s32.to.zero.pseudo %v821
        %v973 = vcvt.f32.s32.to.zero.pseudo %v823
        %v974 = vcvt.f32.s32.to.zero.pseudo %v825
        %v975 = vcvt.f32.s32.to.zero.pseudo %v829
        %v976 = vcvt.f32.s32.to.zero.pseudo %v831
        %v977 = vcvt.f32.s32.to.zero.pseudo %v833
        %v978 = vcvt.f32.s32.to.zero.pseudo %v835
        %v979 = vcvt.f32.s32.to.zero.pseudo %v839
        %v980 = vcvt.f32.s32.to.zero.pseudo %v841
        %v981 = vcvt.f32.s32.to.zero.pseudo %v843
        %v982 = vcvt.f32.s32.to.zero.pseudo %v845
        %v983 = vcvt.f32.s32.to.zero.pseudo %v849
        %v984 = vcvt.f32.s32.to.zero.pseudo %v851
        %v985 = vcvt.f32.s32.to.zero.pseudo %v853
        %v986 = vcvt.f32.s32.to.zero.pseudo %v855
        %v987 = vcvt.f32.s32.to.zero.pseudo %v859
        %v988 = vcvt.f32.s32.to.zero.pseudo %v861
        %v989 = vcvt.f32.s32.to.zero.pseudo %v863
        %v990 = vcvt.f32.s32.to.zero.pseudo %v865
        %v991 = vcvt.f32.s32.to.zero.pseudo %v869
        %v992 = vcvt.f32.s32.to.zero.pseudo %v871
        %v993 = vcvt.f32.s32.to.zero.pseudo %v873
        %v994 = vcvt.f32.s32.to.zero.pseudo %v875
        %v995 = vcvt.f32.s32.to.zero.pseudo %v879
        %v996 = vcvt.f32.s32.to.zero.pseudo %v881
        %v997 = vcvt.f32.s32.to.zero.pseudo %v883
        %v998 = vcvt.f32.s32.to.zero.pseudo %v885
        %v999 = vcvt.f32.s32.to.zero.pseudo %v889
        %v1000 = vcvt.f32.s32.to.zero.pseudo %v891
        %v1001 = vcvt.f32.s32.to.zero.pseudo %v893
        %v1002 = vcvt.f32.s32.to.zero.pseudo %v895
        %v1003 = vcvt.f32.s32.to.zero.pseudo %v899
        %v1004 = vcvt.f32.s32.to.zero.pseudo %v901
        %v1005 = vcvt.f32.s32.to.zero.pseudo %v903
        %v1006 = vcvt.f32.s32.to.zero.pseudo %v905
        %v1007 = vcvt.f32.s32.to.zero.pseudo %v909
        %v1008 = vcvt.f32.s32.to.zero.pseudo %v911
        %v1009 = vcvt.f32.s32.to.zero.pseudo %v913
        %v1010 = vcvt.f32.s32.to.zero.pseudo %v915
        %v1011 = vcvt.f32.s32.to.zero.pseudo %v919
        %v1012 = vcvt.f32.s32.to.zero.pseudo %v921
        %v1013 = vcvt.f32.s32.to.zero.pseudo %v923
        %v1014 = vcvt.f32.s32.to.zero.pseudo %v925
        %v1015 = vcvt.f32.s32.to.zero.pseudo %v929
        %v1016 = vcvt.f32.s32.to.zero.pseudo %v931
        %v1017 = vcvt.f32.s32.to.zero.pseudo %v933
        %v1018 = vcvt.f32.s32.to.zero.pseudo %v935
        %v1019 = vcvt.f32.s32.to.zero.pseudo %v939
        %v1020 = vcvt.f32.s32.to.zero.pseudo %v941
        %v1021 = vcvt.f32.s32.to.zero.pseudo %v943
        %v1022 = vcvt.f32.s32.to.zero.pseudo %v945
        %v1023 = vcvt.f32.s32.to.zero.pseudo %v949
        %v1024 = vcvt.f32.s32.to.zero.pseudo %v951
        %v1025 = vcvt.f32.s32.to.zero.pseudo %v953
        %v1026 = vcvt.f32.s32.to.zero.pseudo %v955
        %v1027 = vcvt.f32.s32.to.zero.pseudo %v959
        %v1028 = vcvt.f32.s32.to.zero.pseudo %v961
        %v1029 = vcvt.f32.s32.to.zero.pseudo %v963
        %v1030 = vcvt.f32.s32.to.zero.pseudo %v965
        %v1031 = vcvt.s32.f32 %v967
        %v1032 = vcvt.s32.f32 %v968
        %v1033 = vcvt.s32.f32 %v969
        %v1034 = vcvt.s32.f32 %v970
        %v1035 = vcvt.s32.f32 %v971
        %v1036 = vcvt.s32.f32 %v972
        %v1037 = vcvt.s32.f32 %v973
        %v1038 = vcvt.s32.f32 %v974
        %v1039 = vcvt.s32.f32 %v975
        %v1040 = vcvt.s32.f32 %v976
        %v1041 = vcvt.s32.f32 %v977
        %v1042 = vcvt.s32.f32 %v978
        %v1043 = vcvt.s32.f32 %v979
        %v1044 = vcvt.s32.f32 %v980
        %v1045 = vcvt.s32.f32 %v981
        %v1046 = vcvt.s32.f32 %v982
        %v1047 = vcvt.s32.f32 %v983
        %v1048 = vcvt.s32.f32 %v984
        %v1049 = vcvt.s32.f32 %v985
        %v1050 = vcvt.s32.f32 %v986
        %v1051 = vcvt.s32.f32 %v987
        %v1052 = vcvt.s32.f32 %v988
        %v1053 = vcvt.s32.f32 %v989
        %v1054 = vcvt.s32.f32 %v990
        %v1055 = vcvt.s32.f32 %v991
        %v1056 = vcvt.s32.f32 %v992
        %v1057 = vcvt.s32.f32 %v993
        %v1058 = vcvt.s32.f32 %v994
        %v1059 = vcvt.s32.f32 %v995
        %v1060 = vcvt.s32.f32 %v996
        %v1061 = vcvt.s32.f32 %v997
        %v1062 = vcvt.s32.f32 %v998
        %v1063 = vcvt.s32.f32 %v999
        %v1064 = vcvt.s32.f32 %v1000
        %v1065 = vcvt.s32.f32 %v1001
        %v1066 = vcvt.s32.f32 %v1002
        %v1067 = vcvt.s32.f32 %v1003
        %v1068 = vcvt.s32.f32 %v1004
        %v1069 = vcvt.s32.f32 %v1005
        %v1070 = vcvt.s32.f32 %v1006
        %v1071 = vcvt.s32.f32 %v1007
        %v1072 = vcvt.s32.f32 %v1008
        %v1073 = vcvt.s32.f32 %v1009
        %v1074 = vcvt.s32.f32 %v1010
        %v1075 = vcvt.s32.f32 %v1011
        %v1076 = vcvt.s32.f32 %v1012
        %v1077 = vcvt.s32.f32 %v1013
        %v1078 = vcvt.s32.f32 %v1014
        %v1079 = vcvt.s32.f32 %v1015
        %v1080 = vcvt.s32.f32 %v1016
        %v1081 = vcvt.s32.f32 %v1017
        %v1082 = vcvt.s32.f32 %v1018
        %v1083 = vcvt.s32.f32 %v1019
        %v1084 = vcvt.s32.f32 %v1020
        %v1085 = vcvt.s32.f32 %v1021
        %v1086 = vcvt.s32.f32 %v1022
        %v1087 = vcvt.s32.f32 %v1023
        %v1088 = vcvt.s32.f32 %v1024
        %v1089 = vcvt.s32.f32 %v1025
        %v1090 = vcvt.s32.f32 %v1026
        %v1091 = vcvt.s32.f32 %v1027
        %v1092 = vcvt.s32.f32 %v1028
        %v1093 = vcvt.s32.f32 %v1029
        %v1094 = vcvt.s32.f32 %v1030
        %v1095 = vld [vmem:[%s2] sm:$0x3]
        %v1097 = vlaneseq
        %v1098 = vshrl.u32 %v1097, 7
        %v1099 = vsub.s32 0, %v1098
        %v1100 = vrot.slane %v1095, %v1099
        %v1101 = vlaneseq
        %v1102 = vshrl.u32 %v1101, 7
        %v1103 = vsub.s32 1, %v1102
        %v1104 = vrot.slane %v1095, %v1103
        %v1107 = vmul.f32 %v1031, %v1100
        %v1108 = vmul.f32 %v1032, %v1104
        %v1109 = vmul.f32 %v1033, %v1100
        %v1110 = vmul.f32 %v1034, %v1104
        %v1111 = vmul.f32 %v1035, %v1100
        %v1112 = vmul.f32 %v1036, %v1104
        %v1113 = vmul.f32 %v1037, %v1100
        %v1114 = vmul.f32 %v1038, %v1104
        %v1115 = vmul.f32 %v1039, %v1100
        %v1116 = vmul.f32 %v1040, %v1104
        %v1117 = vmul.f32 %v1041, %v1100
        %v1118 = vmul.f32 %v1042, %v1104
        %v1119 = vmul.f32 %v1043, %v1100
        %v1120 = vmul.f32 %v1044, %v1104
        %v1121 = vmul.f32 %v1045, %v1100
        %v1122 = vmul.f32 %v1046, %v1104
        %v1123 = vmul.f32 %v1047, %v1100
        %v1124 = vmul.f32 %v1048, %v1104
        %v1125 = vmul.f32 %v1049, %v1100
        %v1126 = vmul.f32 %v1050, %v1104
        %v1127 = vmul.f32 %v1051, %v1100
        %v1128 = vmul.f32 %v1052, %v1104
        %v1129 = vmul.f32 %v1053, %v1100
        %v1130 = vmul.f32 %v1054, %v1104
        %v1131 = vmul.f32 %v1055, %v1100
        %v1132 = vmul.f32 %v1056, %v1104
        %v1133 = vmul.f32 %v1057, %v1100
        %v1134 = vmul.f32 %v1058, %v1104
        %v1135 = vmul.f32 %v1059, %v1100
        %v1136 = vmul.f32 %v1060, %v1104
        %v1137 = vmul.f32 %v1061, %v1100
        %v1138 = vmul.f32 %v1062, %v1104
        %v1139 = vmul.f32 %v1063, %v1100
        %v1140 = vmul.f32 %v1064, %v1104
        %v1141 = vmul.f32 %v1065, %v1100
        %v1142 = vmul.f32 %v1066, %v1104
        %v1143 = vmul.f32 %v1067, %v1100
        %v1144 = vmul.f32 %v1068, %v1104
        %v1145 = vmul.f32 %v1069, %v1100
        %v1146 = vmul.f32 %v1070, %v1104
        %v1147 = vmul.f32 %v1071, %v1100
        %v1148 = vmul.f32 %v1072, %v1104
        %v1149 = vmul.f32 %v1073, %v1100
        %v1150 = vmul.f32 %v1074, %v1104
        %v1151 = vmul.f32 %v1075, %v1100
        %v1152 = vmul.f32 %v1076, %v1104
        %v1153 = vmul.f32 %v1077, %v1100
        %v1154 = vmul.f32 %v1078, %v1104
        %v1155 = vmul.f32 %v1079, %v1100
        %v1156 = vmul.f32 %v1080, %v1104
        %v1157 = vmul.f32 %v1081, %v1100
        %v1158 = vmul.f32 %v1082, %v1104
        %v1159 = vmul.f32 %v1083, %v1100
        %v1160 = vmul.f32 %v1084, %v1104
        %v1161 = vmul.f32 %v1085, %v1100
        %v1162 = vmul.f32 %v1086, %v1104
        %v1163 = vmul.f32 %v1087, %v1100
        %v1164 = vmul.f32 %v1088, %v1104
        %v1165 = vmul.f32 %v1089, %v1100
        %v1166 = vmul.f32 %v1090, %v1104
        %v1167 = vmul.f32 %v1091, %v1100
        %v1168 = vmul.f32 %v1092, %v1104
        %v1169 = vmul.f32 %v1093, %v1100
        %v1170 = vmul.f32 %v1094, %v1104
        %v1171 = vmax.f32 %v1107, 0.0
        %v1172 = vmax.f32 %v1108, 0.0
        %v1173 = vmax.f32 %v1109, 0.0
        %v1174 = vmax.f32 %v1110, 0.0
        %v1175 = vmax.f32 %v1111, 0.0
        %v1176 = vmax.f32 %v1112, 0.0
        %v1177 = vmax.f32 %v1113, 0.0
        %v1178 = vmax.f32 %v1114, 0.0
        %v1179 = vmax.f32 %v1115, 0.0
        %v1180 = vmax.f32 %v1116, 0.0
        %v1181 = vmax.f32 %v1117, 0.0
        %v1182 = vmax.f32 %v1118, 0.0
        %v1183 = vmax.f32 %v1119, 0.0
        %v1184 = vmax.f32 %v1120, 0.0
        %v1185 = vmax.f32 %v1121, 0.0
        %v1186 = vmax.f32 %v1122, 0.0
        %v1187 = vmax.f32 %v1123, 0.0
        %v1188 = vmax.f32 %v1124, 0.0
        %v1189 = vmax.f32 %v1125, 0.0
        %v1190 = vmax.f32 %v1126, 0.0
        %v1191 = vmax.f32 %v1127, 0.0
        %v1192 = vmax.f32 %v1128, 0.0
        %v1193 = vmax.f32 %v1129, 0.0
        %v1194 = vmax.f32 %v1130, 0.0
        %v1195 = vmax.f32 %v1131, 0.0
        %v1196 = vmax.f32 %v1132, 0.0
        %v1197 = vmax.f32 %v1133, 0.0
        %v1198 = vmax.f32 %v1134, 0.0
        %v1199 = vmax.f32 %v1135, 0.0
        %v1200 = vmax.f32 %v1136, 0.0
        %v1201 = vmax.f32 %v1137, 0.0
        %v1202 = vmax.f32 %v1138, 0.0
        %v1203 = vmax.f32 %v1139, 0.0
        %v1204 = vmax.f32 %v1140, 0.0
        %v1205 = vmax.f32 %v1141, 0.0
        %v1206 = vmax.f32 %v1142, 0.0
        %v1207 = vmax.f32 %v1143, 0.0
        %v1208 = vmax.f32 %v1144, 0.0
        %v1209 = vmax.f32 %v1145, 0.0
        %v1210 = vmax.f32 %v1146, 0.0
        %v1211 = vmax.f32 %v1147, 0.0
        %v1212 = vmax.f32 %v1148, 0.0
        %v1213 = vmax.f32 %v1149, 0.0
        %v1214 = vmax.f32 %v1150, 0.0
        %v1215 = vmax.f32 %v1151, 0.0
        %v1216 = vmax.f32 %v1152, 0.0
        %v1217 = vmax.f32 %v1153, 0.0
        %v1218 = vmax.f32 %v1154, 0.0
        %v1219 = vmax.f32 %v1155, 0.0
        %v1220 = vmax.f32 %v1156, 0.0
        %v1221 = vmax.f32 %v1157, 0.0
        %v1222 = vmax.f32 %v1158, 0.0
        %v1223 = vmax.f32 %v1159, 0.0
        %v1224 = vmax.f32 %v1160, 0.0
        %v1225 = vmax.f32 %v1161, 0.0
        %v1226 = vmax.f32 %v1162, 0.0
        %v1227 = vmax.f32 %v1163, 0.0
        %v1228 = vmax.f32 %v1164, 0.0
        %v1229 = vmax.f32 %v1165, 0.0
        %v1230 = vmax.f32 %v1166, 0.0
        %v1231 = vmax.f32 %v1167, 0.0
        %v1232 = vmax.f32 %v1168, 0.0
        %v1233 = vmax.f32 %v1169, 0.0
        %v1234 = vmax.f32 %v1170, 0.0
        %v1235 = vmax.f32 %v1171, %v1172
        %v1236 = vmax.f32 %v1235, %v1203
        %v1237 = vmax.f32 %v1236, %v1204
        %1238 = vmax.xlane.f32.xlu0 %v1237
        %v1239 = vpop.xlane.xlu0 %1238
        %v1240 = vmax.f32 %v1173, %v1174
        %v1241 = vmax.f32 %v1240, %v1205
        %v1242 = vmax.f32 %v1241, %v1206
        %1243 = vmax.xlane.f32.xlu0 %v1242
        %v1244 = vpop.xlane.xlu0 %1243
        %v1245 = vmax.f32 %v1175, %v1176
        %v1246 = vmax.f32 %v1245, %v1207
        %v1247 = vmax.f32 %v1246, %v1208
        %1248 = vmax.xlane.f32.xlu0 %v1247
        %v1249 = vpop.xlane.xlu0 %1248
        %v1250 = vmax.f32 %v1177, %v1178
        %v1251 = vmax.f32 %v1250, %v1209
        %v1252 = vmax.f32 %v1251, %v1210
        %1253 = vmax.xlane.f32.xlu0 %v1252
        %v1254 = vpop.xlane.xlu0 %1253
        %v1255 = vmax.f32 %v1179, %v1180
        %v1256 = vmax.f32 %v1255, %v1211
        %v1257 = vmax.f32 %v1256, %v1212
        %1258 = vmax.xlane.f32.xlu0 %v1257
        %v1259 = vpop.xlane.xlu0 %1258
        %v1260 = vmax.f32 %v1181, %v1182
        %v1261 = vmax.f32 %v1260, %v1213
        %v1262 = vmax.f32 %v1261, %v1214
        %1263 = vmax.xlane.f32.xlu0 %v1262
        %v1264 = vpop.xlane.xlu0 %1263
        %v1265 = vmax.f32 %v1183, %v1184
        %v1266 = vmax.f32 %v1265, %v1215
        %v1267 = vmax.f32 %v1266, %v1216
        %1268 = vmax.xlane.f32.xlu0 %v1267
        %v1269 = vpop.xlane.xlu0 %1268
        %v1270 = vmax.f32 %v1185, %v1186
        %v1271 = vmax.f32 %v1270, %v1217
        %v1272 = vmax.f32 %v1271, %v1218
        %1273 = vmax.xlane.f32.xlu0 %v1272
        %v1274 = vpop.xlane.xlu0 %1273
        %v1275 = vmax.f32 %v1187, %v1188
        %v1276 = vmax.f32 %v1275, %v1219
        %v1277 = vmax.f32 %v1276, %v1220
        %1278 = vmax.xlane.f32.xlu0 %v1277
        %v1279 = vpop.xlane.xlu0 %1278
        %v1280 = vmax.f32 %v1189, %v1190
        %v1281 = vmax.f32 %v1280, %v1221
        %v1282 = vmax.f32 %v1281, %v1222
        %1283 = vmax.xlane.f32.xlu0 %v1282
        %v1284 = vpop.xlane.xlu0 %1283
        %v1285 = vmax.f32 %v1191, %v1192
        %v1286 = vmax.f32 %v1285, %v1223
        %v1287 = vmax.f32 %v1286, %v1224
        %1288 = vmax.xlane.f32.xlu0 %v1287
        %v1289 = vpop.xlane.xlu0 %1288
        %v1290 = vmax.f32 %v1193, %v1194
        %v1291 = vmax.f32 %v1290, %v1225
        %v1292 = vmax.f32 %v1291, %v1226
        %1293 = vmax.xlane.f32.xlu0 %v1292
        %v1294 = vpop.xlane.xlu0 %1293
        %v1295 = vmax.f32 %v1195, %v1196
        %v1296 = vmax.f32 %v1295, %v1227
        %v1297 = vmax.f32 %v1296, %v1228
        %1298 = vmax.xlane.f32.xlu0 %v1297
        %v1299 = vpop.xlane.xlu0 %1298
        %v1300 = vmax.f32 %v1197, %v1198
        %v1301 = vmax.f32 %v1300, %v1229
        %v1302 = vmax.f32 %v1301, %v1230
        %1303 = vmax.xlane.f32.xlu0 %v1302
        %v1304 = vpop.xlane.xlu0 %1303
        %v1305 = vmax.f32 %v1199, %v1200
        %v1306 = vmax.f32 %v1305, %v1231
        %v1307 = vmax.f32 %v1306, %v1232
        %1308 = vmax.xlane.f32.xlu0 %v1307
        %v1309 = vpop.xlane.xlu0 %1308
        %v1310 = vmax.f32 %v1201, %v1202
        %v1311 = vmax.f32 %v1310, %v1233
        %v1312 = vmax.f32 %v1311, %v1234
        %1313 = vmax.xlane.f32.xlu0 %v1312
        %v1314 = vpop.xlane.xlu0 %1313
        %v1315 = vmul.f32 %v1239, %v412
        %v1316 = vmul.f32 %v1244, %v412
        %v1317 = vmul.f32 %v1249, %v412
        %v1318 = vmul.f32 %v1254, %v412
        %v1319 = vmul.f32 %v1259, %v412
        %v1320 = vmul.f32 %v1264, %v412
        %v1321 = vmul.f32 %v1269, %v412
        %v1322 = vmul.f32 %v1274, %v412
        %v1323 = vmul.f32 %v1279, %v412
        %v1324 = vmul.f32 %v1284, %v412
        %v1325 = vmul.f32 %v1289, %v412
        %v1326 = vmul.f32 %v1294, %v412
        %v1327 = vmul.f32 %v1299, %v412
        %v1328 = vmul.f32 %v1304, %v412
        %v1329 = vmul.f32 %v1309, %v412
        %v1330 = vmul.f32 %v1314, %v412
        %vm1331 = vcmp.eq.f32.partialorder %v1315, 0.0
        %vm1332 = vcmp.eq.f32.partialorder %v1316, 0.0
        %vm1333 = vcmp.eq.f32.partialorder %v1317, 0.0
        %vm1334 = vcmp.eq.f32.partialorder %v1318, 0.0
        %vm1335 = vcmp.eq.f32.partialorder %v1319, 0.0
        %vm1336 = vcmp.eq.f32.partialorder %v1320, 0.0
        %vm1337 = vcmp.eq.f32.partialorder %v1321, 0.0
        %vm1338 = vcmp.eq.f32.partialorder %v1322, 0.0
        %vm1339 = vcmp.eq.f32.partialorder %v1323, 0.0
        %vm1340 = vcmp.eq.f32.partialorder %v1324, 0.0
        %vm1341 = vcmp.eq.f32.partialorder %v1325, 0.0
        %vm1342 = vcmp.eq.f32.partialorder %v1326, 0.0
        %vm1343 = vcmp.eq.f32.partialorder %v1327, 0.0
        %vm1344 = vcmp.eq.f32.partialorder %v1328, 0.0
        %vm1345 = vcmp.eq.f32.partialorder %v1329, 0.0
        %vm1346 = vcmp.eq.f32.partialorder %v1330, 0.0
        %v1347 = vsel %vm1331, 1.0, %v1315
        %v1348 = vsel %vm1332, 1.0, %v1316
        %v1349 = vsel %vm1333, 1.0, %v1317
        %v1350 = vsel %vm1334, 1.0, %v1318
        %v1351 = vsel %vm1335, 1.0, %v1319
        %v1352 = vsel %vm1336, 1.0, %v1320
        %v1353 = vsel %vm1337, 1.0, %v1321
        %v1354 = vsel %vm1338, 1.0, %v1322
        %v1355 = vsel %vm1339, 1.0, %v1323
        %v1356 = vsel %vm1340, 1.0, %v1324
        %v1357 = vsel %vm1341, 1.0, %v1325
        %v1358 = vsel %vm1342, 1.0, %v1326
        %v1359 = vsel %vm1343, 1.0, %v1327
        %v1360 = vsel %vm1344, 1.0, %v1328
        %v1361 = vsel %vm1345, 1.0, %v1329
        %v1362 = vsel %vm1346, 1.0, %v1330
        %v1363 = vrcp.pop %v1347
        %v1364 = vmul.f32 1.0, %v1363
        %v1365 = vrcp.pop %v1348
        %v1366 = vmul.f32 1.0, %v1365
        %v1367 = vrcp.pop %v1349
        %v1368 = vmul.f32 1.0, %v1367
        %v1369 = vrcp.pop %v1350
        %v1370 = vmul.f32 1.0, %v1369
        %v1371 = vrcp.pop %v1351
        %v1372 = vmul.f32 1.0, %v1371
        %v1373 = vrcp.pop %v1352
        %v1374 = vmul.f32 1.0, %v1373
        %v1375 = vrcp.pop %v1353
        %v1376 = vmul.f32 1.0, %v1375
        %v1377 = vrcp.pop %v1354
        %v1378 = vmul.f32 1.0, %v1377
        %v1379 = vrcp.pop %v1355
        %v1380 = vmul.f32 1.0, %v1379
        %v1381 = vrcp.pop %v1356
        %v1382 = vmul.f32 1.0, %v1381
        %v1383 = vrcp.pop %v1357
        %v1384 = vmul.f32 1.0, %v1383
        %v1385 = vrcp.pop %v1358
        %v1386 = vmul.f32 1.0, %v1385
        %v1387 = vrcp.pop %v1359
        %v1388 = vmul.f32 1.0, %v1387
        %v1389 = vrcp.pop %v1360
        %v1390 = vmul.f32 1.0, %v1389
        %v1391 = vrcp.pop %v1361
        %v1392 = vmul.f32 1.0, %v1391
        %v1393 = vrcp.pop %v1362
        %v1394 = vmul.f32 1.0, %v1393
        %v1395 = vmul.f32 %v1171, %v1364
        %v1396 = vmul.f32 %v1172, %v1364
        %v1397 = vmul.f32 %v1173, %v1366
        %v1398 = vmul.f32 %v1174, %v1366
        %v1399 = vmul.f32 %v1175, %v1368
        %v1400 = vmul.f32 %v1176, %v1368
        %v1401 = vmul.f32 %v1177, %v1370
        %v1402 = vmul.f32 %v1178, %v1370
        %v1403 = vmul.f32 %v1179, %v1372
        %v1404 = vmul.f32 %v1180, %v1372
        %v1405 = vmul.f32 %v1181, %v1374
        %v1406 = vmul.f32 %v1182, %v1374
        %v1407 = vmul.f32 %v1183, %v1376
        %v1408 = vmul.f32 %v1184, %v1376
        %v1409 = vmul.f32 %v1185, %v1378
        %v1410 = vmul.f32 %v1186, %v1378
        %v1411 = vmul.f32 %v1187, %v1380
        %v1412 = vmul.f32 %v1188, %v1380
        %v1413 = vmul.f32 %v1189, %v1382
        %v1414 = vmul.f32 %v1190, %v1382
        %v1415 = vmul.f32 %v1191, %v1384
        %v1416 = vmul.f32 %v1192, %v1384
        %v1417 = vmul.f32 %v1193, %v1386
        %v1418 = vmul.f32 %v1194, %v1386
        %v1419 = vmul.f32 %v1195, %v1388
        %v1420 = vmul.f32 %v1196, %v1388
        %v1421 = vmul.f32 %v1197, %v1390
        %v1422 = vmul.f32 %v1198, %v1390
        %v1423 = vmul.f32 %v1199, %v1392
        %v1424 = vmul.f32 %v1200, %v1392
        %v1425 = vmul.f32 %v1201, %v1394
        %v1426 = vmul.f32 %v1202, %v1394
        %v1427 = vmul.f32 %v1203, %v1364
        %v1428 = vmul.f32 %v1204, %v1364
        %v1429 = vmul.f32 %v1205, %v1366
        %v1430 = vmul.f32 %v1206, %v1366
        %v1431 = vmul.f32 %v1207, %v1368
        %v1432 = vmul.f32 %v1208, %v1368
        %v1433 = vmul.f32 %v1209, %v1370
        %v1434 = vmul.f32 %v1210, %v1370
        %v1435 = vmul.f32 %v1211, %v1372
        %v1436 = vmul.f32 %v1212, %v1372
        %v1437 = vmul.f32 %v1213, %v1374
        %v1438 = vmul.f32 %v1214, %v1374
        %v1439 = vmul.f32 %v1215, %v1376
        %v1440 = vmul.f32 %v1216, %v1376
        %v1441 = vmul.f32 %v1217, %v1378
        %v1442 = vmul.f32 %v1218, %v1378
        %v1443 = vmul.f32 %v1219, %v1380
        %v1444 = vmul.f32 %v1220, %v1380
        %v1445 = vmul.f32 %v1221, %v1382
        %v1446 = vmul.f32 %v1222, %v1382
        %v1447 = vmul.f32 %v1223, %v1384
        %v1448 = vmul.f32 %v1224, %v1384
        %v1449 = vmul.f32 %v1225, %v1386
        %v1450 = vmul.f32 %v1226, %v1386
        %v1451 = vmul.f32 %v1227, %v1388
        %v1452 = vmul.f32 %v1228, %v1388
        %v1453 = vmul.f32 %v1229, %v1390
        %v1454 = vmul.f32 %v1230, %v1390
        %v1455 = vmul.f32 %v1231, %v1392
        %v1456 = vmul.f32 %v1232, %v1392
        %v1457 = vmul.f32 %v1233, %v1394
        %v1458 = vmul.f32 %v1234, %v1394
        %v1459 = vround.ne.pseudo %v1395
        %v1460 = vround.ne.pseudo %v1396
        %v1461 = vround.ne.pseudo %v1397
        %v1462 = vround.ne.pseudo %v1398
        %v1463 = vround.ne.pseudo %v1399
        %v1464 = vround.ne.pseudo %v1400
        %v1465 = vround.ne.pseudo %v1401
        %v1466 = vround.ne.pseudo %v1402
        %v1467 = vround.ne.pseudo %v1403
        %v1468 = vround.ne.pseudo %v1404
        %v1469 = vround.ne.pseudo %v1405
        %v1470 = vround.ne.pseudo %v1406
        %v1471 = vround.ne.pseudo %v1407
        %v1472 = vround.ne.pseudo %v1408
        %v1473 = vround.ne.pseudo %v1409
        %v1474 = vround.ne.pseudo %v1410
        %v1475 = vround.ne.pseudo %v1411
        %v1476 = vround.ne.pseudo %v1412
        %v1477 = vround.ne.pseudo %v1413
        %v1478 = vround.ne.pseudo %v1414
        %v1479 = vround.ne.pseudo %v1415
        %v1480 = vround.ne.pseudo %v1416
        %v1481 = vround.ne.pseudo %v1417
        %v1482 = vround.ne.pseudo %v1418
        %v1483 = vround.ne.pseudo %v1419
        %v1484 = vround.ne.pseudo %v1420
        %v1485 = vround.ne.pseudo %v1421
        %v1486 = vround.ne.pseudo %v1422
        %v1487 = vround.ne.pseudo %v1423
        %v1488 = vround.ne.pseudo %v1424
        %v1489 = vround.ne.pseudo %v1425
        %v1490 = vround.ne.pseudo %v1426
        %v1491 = vround.ne.pseudo %v1427
        %v1492 = vround.ne.pseudo %v1428
        %v1493 = vround.ne.pseudo %v1429
        %v1494 = vround.ne.pseudo %v1430
        %v1495 = vround.ne.pseudo %v1431
        %v1496 = vround.ne.pseudo %v1432
        %v1497 = vround.ne.pseudo %v1433
        %v1498 = vround.ne.pseudo %v1434
        %v1499 = vround.ne.pseudo %v1435
        %v1500 = vround.ne.pseudo %v1436
        %v1501 = vround.ne.pseudo %v1437
        %v1502 = vround.ne.pseudo %v1438
        %v1503 = vround.ne.pseudo %v1439
        %v1504 = vround.ne.pseudo %v1440
        %v1505 = vround.ne.pseudo %v1441
        %v1506 = vround.ne.pseudo %v1442
        %v1507 = vround.ne.pseudo %v1443
        %v1508 = vround.ne.pseudo %v1444
        %v1509 = vround.ne.pseudo %v1445
        %v1510 = vround.ne.pseudo %v1446
        %v1511 = vround.ne.pseudo %v1447
        %v1512 = vround.ne.pseudo %v1448
        %v1513 = vround.ne.pseudo %v1449
        %v1514 = vround.ne.pseudo %v1450
        %v1515 = vround.ne.pseudo %v1451
        %v1516 = vround.ne.pseudo %v1452
        %v1517 = vround.ne.pseudo %v1453
        %v1518 = vround.ne.pseudo %v1454
        %v1519 = vround.ne.pseudo %v1455
        %v1520 = vround.ne.pseudo %v1456
        %v1521 = vround.ne.pseudo %v1457
        %v1522 = vround.ne.pseudo %v1458
        %v1523 = vmax.f32 %v1459, -128.0
        %v1524 = vmax.f32 %v1460, -128.0
        %v1525 = vmax.f32 %v1461, -128.0
        %v1526 = vmax.f32 %v1462, -128.0
        %v1527 = vmax.f32 %v1463, -128.0
        %v1528 = vmax.f32 %v1464, -128.0
        %v1529 = vmax.f32 %v1465, -128.0
        %v1530 = vmax.f32 %v1466, -128.0
        %v1531 = vmax.f32 %v1467, -128.0
        %v1532 = vmax.f32 %v1468, -128.0
        %v1533 = vmax.f32 %v1469, -128.0
        %v1534 = vmax.f32 %v1470, -128.0
        %v1535 = vmax.f32 %v1471, -128.0
        %v1536 = vmax.f32 %v1472, -128.0
        %v1537 = vmax.f32 %v1473, -128.0
        %v1538 = vmax.f32 %v1474, -128.0
        %v1539 = vmax.f32 %v1475, -128.0
        %v1540 = vmax.f32 %v1476, -128.0
        %v1541 = vmax.f32 %v1477, -128.0
        %v1542 = vmax.f32 %v1478, -128.0
        %v1543 = vmax.f32 %v1479, -128.0
        %v1544 = vmax.f32 %v1480, -128.0
        %v1545 = vmax.f32 %v1481, -128.0
        %v1546 = vmax.f32 %v1482, -128.0
        %v1547 = vmax.f32 %v1483, -128.0
        %v1548 = vmax.f32 %v1484, -128.0
        %v1549 = vmax.f32 %v1485, -128.0
        %v1550 = vmax.f32 %v1486, -128.0
        %v1551 = vmax.f32 %v1487, -128.0
        %v1552 = vmax.f32 %v1488, -128.0
        %v1553 = vmax.f32 %v1489, -128.0
        %v1554 = vmax.f32 %v1490, -128.0
        %v1555 = vmax.f32 %v1491, -128.0
        %v1556 = vmax.f32 %v1492, -128.0
        %v1557 = vmax.f32 %v1493, -128.0
        %v1558 = vmax.f32 %v1494, -128.0
        %v1559 = vmax.f32 %v1495, -128.0
        %v1560 = vmax.f32 %v1496, -128.0
        %v1561 = vmax.f32 %v1497, -128.0
        %v1562 = vmax.f32 %v1498, -128.0
        %v1563 = vmax.f32 %v1499, -128.0
        %v1564 = vmax.f32 %v1500, -128.0
        %v1565 = vmax.f32 %v1501, -128.0
        %v1566 = vmax.f32 %v1502, -128.0
        %v1567 = vmax.f32 %v1503, -128.0
        %v1568 = vmax.f32 %v1504, -128.0
        %v1569 = vmax.f32 %v1505, -128.0
        %v1570 = vmax.f32 %v1506, -128.0
        %v1571 = vmax.f32 %v1507, -128.0
        %v1572 = vmax.f32 %v1508, -128.0
        %v1573 = vmax.f32 %v1509, -128.0
        %v1574 = vmax.f32 %v1510, -128.0
        %v1575 = vmax.f32 %v1511, -128.0
        %v1576 = vmax.f32 %v1512, -128.0
        %v1577 = vmax.f32 %v1513, -128.0
        %v1578 = vmax.f32 %v1514, -128.0
        %v1579 = vmax.f32 %v1515, -128.0
        %v1580 = vmax.f32 %v1516, -128.0
        %v1581 = vmax.f32 %v1517, -128.0
        %v1582 = vmax.f32 %v1518, -128.0
        %v1583 = vmax.f32 %v1519, -128.0
        %v1584 = vmax.f32 %v1520, -128.0
        %v1585 = vmax.f32 %v1521, -128.0
        %v1586 = vmax.f32 %v1522, -128.0
        %v1587 = vmin.f32 %v1523, 127.0
        %v1588 = vmin.f32 %v1524, 127.0
        %v1589 = vmin.f32 %v1525, 127.0
        %v1590 = vmin.f32 %v1526, 127.0
        %v1591 = vmin.f32 %v1527, 127.0
        %v1592 = vmin.f32 %v1528, 127.0
        %v1593 = vmin.f32 %v1529, 127.0
        %v1594 = vmin.f32 %v1530, 127.0
        %v1595 = vmin.f32 %v1531, 127.0
        %v1596 = vmin.f32 %v1532, 127.0
        %v1597 = vmin.f32 %v1533, 127.0
        %v1598 = vmin.f32 %v1534, 127.0
        %v1599 = vmin.f32 %v1535, 127.0
        %v1600 = vmin.f32 %v1536, 127.0
        %v1601 = vmin.f32 %v1537, 127.0
        %v1602 = vmin.f32 %v1538, 127.0
        %v1603 = vmin.f32 %v1539, 127.0
        %v1604 = vmin.f32 %v1540, 127.0
        %v1605 = vmin.f32 %v1541, 127.0
        %v1606 = vmin.f32 %v1542, 127.0
        %v1607 = vmin.f32 %v1543, 127.0
        %v1608 = vmin.f32 %v1544, 127.0
        %v1609 = vmin.f32 %v1545, 127.0
        %v1610 = vmin.f32 %v1546, 127.0
        %v1611 = vmin.f32 %v1547, 127.0
        %v1612 = vmin.f32 %v1548, 127.0
        %v1613 = vmin.f32 %v1549, 127.0
        %v1614 = vmin.f32 %v1550, 127.0
        %v1615 = vmin.f32 %v1551, 127.0
        %v1616 = vmin.f32 %v1552, 127.0
        %v1617 = vmin.f32 %v1553, 127.0
        %v1618 = vmin.f32 %v1554, 127.0
        %v1619 = vmin.f32 %v1555, 127.0
        %v1620 = vmin.f32 %v1556, 127.0
        %v1621 = vmin.f32 %v1557, 127.0
        %v1622 = vmin.f32 %v1558, 127.0
        %v1623 = vmin.f32 %v1559, 127.0
        %v1624 = vmin.f32 %v1560, 127.0
        %v1625 = vmin.f32 %v1561, 127.0
        %v1626 = vmin.f32 %v1562, 127.0
        %v1627 = vmin.f32 %v1563, 127.0
        %v1628 = vmin.f32 %v1564, 127.0
        %v1629 = vmin.f32 %v1565, 127.0
        %v1630 = vmin.f32 %v1566, 127.0
        %v1631 = vmin.f32 %v1567, 127.0
        %v1632 = vmin.f32 %v1568, 127.0
        %v1633 = vmin.f32 %v1569, 127.0
        %v1634 = vmin.f32 %v1570, 127.0
        %v1635 = vmin.f32 %v1571, 127.0
        %v1636 = vmin.f32 %v1572, 127.0
        %v1637 = vmin.f32 %v1573, 127.0
        %v1638 = vmin.f32 %v1574, 127.0
        %v1639 = vmin.f32 %v1575, 127.0
        %v1640 = vmin.f32 %v1576, 127.0
        %v1641 = vmin.f32 %v1577, 127.0
        %v1642 = vmin.f32 %v1578, 127.0
        %v1643 = vmin.f32 %v1579, 127.0
        %v1644 = vmin.f32 %v1580, 127.0
        %v1645 = vmin.f32 %v1581, 127.0
        %v1646 = vmin.f32 %v1582, 127.0
        %v1647 = vmin.f32 %v1583, 127.0
        %v1648 = vmin.f32 %v1584, 127.0
        %v1649 = vmin.f32 %v1585, 127.0
        %v1650 = vmin.f32 %v1586, 127.0
        %v1651 = vtrunc.f32 %v1587
        %v1652 = vtrunc.f32 %v1588
        %v1653 = vtrunc.f32 %v1589
        %v1654 = vtrunc.f32 %v1590
        %v1655 = vtrunc.f32 %v1591
        %v1656 = vtrunc.f32 %v1592
        %v1657 = vtrunc.f32 %v1593
        %v1658 = vtrunc.f32 %v1594
        %v1659 = vtrunc.f32 %v1595
        %v1660 = vtrunc.f32 %v1596
        %v1661 = vtrunc.f32 %v1597
        %v1662 = vtrunc.f32 %v1598
        %v1663 = vtrunc.f32 %v1599
        %v1664 = vtrunc.f32 %v1600
        %v1665 = vtrunc.f32 %v1601
        %v1666 = vtrunc.f32 %v1602
        %v1667 = vtrunc.f32 %v1603
        %v1668 = vtrunc.f32 %v1604
        %v1669 = vtrunc.f32 %v1605
        %v1670 = vtrunc.f32 %v1606
        %v1671 = vtrunc.f32 %v1607
        %v1672 = vtrunc.f32 %v1608
        %v1673 = vtrunc.f32 %v1609
        %v1674 = vtrunc.f32 %v1610
        %v1675 = vtrunc.f32 %v1611
        %v1676 = vtrunc.f32 %v1612
        %v1677 = vtrunc.f32 %v1613
        %v1678 = vtrunc.f32 %v1614
        %v1679 = vtrunc.f32 %v1615
        %v1680 = vtrunc.f32 %v1616
        %v1681 = vtrunc.f32 %v1617
        %v1682 = vtrunc.f32 %v1618
        %v1683 = vtrunc.f32 %v1619
        %v1684 = vtrunc.f32 %v1620
        %v1685 = vtrunc.f32 %v1621
        %v1686 = vtrunc.f32 %v1622
        %v1687 = vtrunc.f32 %v1623
        %v1688 = vtrunc.f32 %v1624
        %v1689 = vtrunc.f32 %v1625
        %v1690 = vtrunc.f32 %v1626
        %v1691 = vtrunc.f32 %v1627
        %v1692 = vtrunc.f32 %v1628
        %v1693 = vtrunc.f32 %v1629
        %v1694 = vtrunc.f32 %v1630
        %v1695 = vtrunc.f32 %v1631
        %v1696 = vtrunc.f32 %v1632
        %v1697 = vtrunc.f32 %v1633
        %v1698 = vtrunc.f32 %v1634
        %v1699 = vtrunc.f32 %v1635
        %v1700 = vtrunc.f32 %v1636
        %v1701 = vtrunc.f32 %v1637
        %v1702 = vtrunc.f32 %v1638
        %v1703 = vtrunc.f32 %v1639
        %v1704 = vtrunc.f32 %v1640
        %v1705 = vtrunc.f32 %v1641
        %v1706 = vtrunc.f32 %v1642
        %v1707 = vtrunc.f32 %v1643
        %v1708 = vtrunc.f32 %v1644
        %v1709 = vtrunc.f32 %v1645
        %v1710 = vtrunc.f32 %v1646
        %v1711 = vtrunc.f32 %v1647
        %v1712 = vtrunc.f32 %v1648
        %v1713 = vtrunc.f32 %v1649
        %v1714 = vtrunc.f32 %v1650
        %v1715 = vpack.c.f32.eXmY %v1651, %v1653, 312
        %v1719 = vpack.c.f32.eXmY %v1655, %v1657, 312
        %v1723 = vpack.c.b8 %v1719, %v1715
        %v1725 = vpack.c.f32.eXmY %v1652, %v1654, 312
        %v1729 = vpack.c.f32.eXmY %v1656, %v1658, 312
        %v1733 = vpack.c.b8 %v1729, %v1725
        %v1735 = vpack.c.f32.eXmY %v1659, %v1661, 312
        %v1739 = vpack.c.f32.eXmY %v1663, %v1665, 312
        %v1743 = vpack.c.b8 %v1739, %v1735
        %v1745 = vpack.c.f32.eXmY %v1660, %v1662, 312
        %v1749 = vpack.c.f32.eXmY %v1664, %v1666, 312
        %v1753 = vpack.c.b8 %v1749, %v1745
        %v1755 = vpack.c.f32.eXmY %v1667, %v1669, 312
        %v1759 = vpack.c.f32.eXmY %v1671, %v1673, 312
        %v1763 = vpack.c.b8 %v1759, %v1755
        %v1765 = vpack.c.f32.eXmY %v1668, %v1670, 312
        %v1769 = vpack.c.f32.eXmY %v1672, %v1674, 312
        %v1773 = vpack.c.b8 %v1769, %v1765
        %v1775 = vpack.c.f32.eXmY %v1675, %v1677, 312
        %v1779 = vpack.c.f32.eXmY %v1679, %v1681, 312
        %v1783 = vpack.c.b8 %v1779, %v1775
        %v1785 = vpack.c.f32.eXmY %v1676, %v1678, 312
        %v1789 = vpack.c.f32.eXmY %v1680, %v1682, 312
        %v1793 = vpack.c.b8 %v1789, %v1785
        %v1795 = vpack.c.f32.eXmY %v1683, %v1685, 312
        %v1799 = vpack.c.f32.eXmY %v1687, %v1689, 312
        %v1803 = vpack.c.b8 %v1799, %v1795
        %v1805 = vpack.c.f32.eXmY %v1684, %v1686, 312
        %v1809 = vpack.c.f32.eXmY %v1688, %v1690, 312
        %v1813 = vpack.c.b8 %v1809, %v1805
        %v1815 = vpack.c.f32.eXmY %v1691, %v1693, 312
        %v1819 = vpack.c.f32.eXmY %v1695, %v1697, 312
        %v1823 = vpack.c.b8 %v1819, %v1815
        %v1825 = vpack.c.f32.eXmY %v1692, %v1694, 312
        %v1829 = vpack.c.f32.eXmY %v1696, %v1698, 312
        %v1833 = vpack.c.b8 %v1829, %v1825
        %v1835 = vpack.c.f32.eXmY %v1699, %v1701, 312
        %v1839 = vpack.c.f32.eXmY %v1703, %v1705, 312
        %v1843 = vpack.c.b8 %v1839, %v1835
        %v1845 = vpack.c.f32.eXmY %v1700, %v1702, 312
        %v1849 = vpack.c.f32.eXmY %v1704, %v1706, 312
        %v1853 = vpack.c.b8 %v1849, %v1845
        %v1855 = vpack.c.f32.eXmY %v1707, %v1709, 312
        %v1859 = vpack.c.f32.eXmY %v1711, %v1713, 312
        %v1863 = vpack.c.b8 %v1859, %v1855
        %v1865 = vpack.c.f32.eXmY %v1708, %v1710, 312
        %v1869 = vpack.c.f32.eXmY %v1712, %v1714, 312
        %v1873 = vpack.c.b8 %v1869, %v1865
        %v1875 = vld [vmem:[#allocation7] sm:$0xff]
        %v1876 = vld [vmem:[#allocation7 + $0x8] sm:$0xff]
        %v1877 = vld [vmem:[#allocation7 + $0x10] sm:$0xff]
        %v1878 = vld [vmem:[#allocation7 + $0x18] sm:$0xff]
        %v1879 = vld [vmem:[#allocation7 + $0x20] sm:$0xff]
        %v1880 = vld [vmem:[#allocation7 + $0x28] sm:$0xff]
        %v1881 = vld [vmem:[#allocation7 + $0x30] sm:$0xff]
        %v1882 = vld [vmem:[#allocation7 + $0x38] sm:$0xff]
        %v1883 = vunpack.c.l.s8.bf16 %v1723
        %v1884 = vunpack.c.l.s8.bf16 %v1733
        %v1885 = vunpack.c.h.s8.bf16 %v1723
        %v1886 = vunpack.c.h.s8.bf16 %v1733
        %v1887 = vunpack.c.l.s8.bf16 %v1743
        %v1888 = vunpack.c.l.s8.bf16 %v1753
        %v1889 = vunpack.c.h.s8.bf16 %v1743
        %v1890 = vunpack.c.h.s8.bf16 %v1753
        %v1891 = vunpack.c.l.s8.bf16 %v1763
        %v1892 = vunpack.c.l.s8.bf16 %v1773
        %v1893 = vunpack.c.h.s8.bf16 %v1763
        %v1894 = vunpack.c.h.s8.bf16 %v1773
        %v1895 = vunpack.c.l.s8.bf16 %v1783
        %v1896 = vunpack.c.l.s8.bf16 %v1793
        %v1897 = vunpack.c.h.s8.bf16 %v1783
        %v1898 = vunpack.c.h.s8.bf16 %v1793
        %v1899 = vunpack.c.l.s8.bf16 %v1803
        %v1900 = vunpack.c.l.s8.bf16 %v1813
        %v1901 = vunpack.c.h.s8.bf16 %v1803
        %v1902 = vunpack.c.h.s8.bf16 %v1813
        %v1903 = vunpack.c.l.s8.bf16 %v1823
        %v1904 = vunpack.c.l.s8.bf16 %v1833
        %v1905 = vunpack.c.h.s8.bf16 %v1823
        %v1906 = vunpack.c.h.s8.bf16 %v1833
        %v1907 = vunpack.c.l.s8.bf16 %v1843
        %v1908 = vunpack.c.l.s8.bf16 %v1853
        %v1909 = vunpack.c.h.s8.bf16 %v1843
        %v1910 = vunpack.c.h.s8.bf16 %v1853
        %v1911 = vunpack.c.l.s8.bf16 %v1863
        %v1912 = vunpack.c.l.s8.bf16 %v1873
        %v1913 = vunpack.c.h.s8.bf16 %v1863
        %v1914 = vunpack.c.h.s8.bf16 %v1873
        %v1915 = vunpack.c.l.s8.bf16 %v1875
        %v1916 = vunpack.c.h.s8.bf16 %v1875
        %v1917 = vunpack.c.l.s8.bf16 %v1876
        %v1918 = vunpack.c.h.s8.bf16 %v1876
        %v1919 = vunpack.c.l.s8.bf16 %v1877
        %v1920 = vunpack.c.h.s8.bf16 %v1877
        %v1921 = vunpack.c.l.s8.bf16 %v1878
        %v1922 = vunpack.c.h.s8.bf16 %v1878
        %v1923 = vunpack.c.l.s8.bf16 %v1879
        %v1924 = vunpack.c.h.s8.bf16 %v1879
        %v1925 = vunpack.c.l.s8.bf16 %v1880
        %v1926 = vunpack.c.h.s8.bf16 %v1880
        %v1927 = vunpack.c.l.s8.bf16 %v1881
        %v1928 = vunpack.c.h.s8.bf16 %v1881
        %v1929 = vunpack.c.l.s8.bf16 %v1882
        %v1930 = vunpack.c.h.s8.bf16 %v1882
        %1931 = vmatprep.subr.bf16.mxu0 0
        %1932 = vmatpush1.bf16.msra.mxu0 %v1915
        %1933 = vmatprep.subr.bf16.mxu0 0
        %1934 = vmatpush1.bf16.msra.mxu0 %v1916
        %1935 = vmatprep.subr.bf16.mxu0 0
        %1936 = vmatpush1.bf16.msra.mxu0 %v1917
        %1937 = vmatprep.subr.bf16.mxu0 0
        %1938 = vmatpush1.bf16.msra.mxu0 %v1918
        %1939 = vmatprep.subr.bf16.mxu0 0
        %1940 = vmatpush1.bf16.msra.mxu0 %v1919
        %1941 = vmatprep.subr.bf16.mxu0 0
        %1942 = vmatpush1.bf16.msra.mxu0 %v1920
        %1943 = vmatprep.subr.bf16.mxu0 0
        %1944 = vmatpush1.bf16.msra.mxu0 %v1921
        %1945 = vmatprep.subr.bf16.mxu0 0
        %1946 = vmatpush1.bf16.msra.mxu0 %v1922
        %1947 = vmatprep.subr.bf16.mxu0 0
        %1948 = vmatpush1.bf16.msra.mxu0 %v1923
        %1949 = vmatprep.subr.bf16.mxu0 0
        %1950 = vmatpush1.bf16.msra.mxu0 %v1924
        %1951 = vmatprep.subr.bf16.mxu0 0
        %1952 = vmatpush1.bf16.msra.mxu0 %v1925
        %1953 = vmatprep.subr.bf16.mxu0 0
        %1954 = vmatpush1.bf16.msra.mxu0 %v1926
        %1955 = vmatprep.subr.bf16.mxu0 0
        %1956 = vmatpush1.bf16.msra.mxu0 %v1927
        %1957 = vmatprep.subr.bf16.mxu0 0
        %1958 = vmatpush1.bf16.msra.mxu0 %v1928
        %1959 = vmatprep.subr.bf16.mxu0 0
        %1960 = vmatpush1.bf16.msra.mxu0 %v1929
        %1961 = vmatprep.subr.bf16.mxu0 0
        %1962 = vmatpush1.bf16.msra.mxu0 %v1930
        %1963 = vmatprep.mubr.bf16.mxu0 %v1884
        %1964 = vmatmul.mubr.bf16.gmra.mrb[0].mxu0 %v1883
        %v1965 = vpop.f32.mrb[0].mxu0
        %v1966 = vadd.f32 %v773, %v1965
        %v1967 = vpop.f32.mrb[0].mxu0
        %v1968 = vpop.f32.mrb[0].mxu0
        %v1969 = vadd.f32 %v773, %v1968
        %v1970 = vpop.f32.mrb[0].mxu0
        %1971 = vmatprep.mubr.bf16.mxu0 %v1886
        %1972 = vmatmul.mubr.bf16.gmra.mrb[0].mxu0 %v1885
        %v1973 = vpop.f32.mrb[0].mxu0
        %v1974 = vadd.f32 %v773, %v1973
        %v1975 = vpop.f32.mrb[0].mxu0
        %v1976 = vpop.f32.mrb[0].mxu0
        %v1977 = vadd.f32 %v773, %v1976
        %v1978 = vpop.f32.mrb[0].mxu0
        %1979 = vmatprep.mubr.bf16.mxu0 %v1888
        %1980 = vmatmul.mubr.bf16.gmra.mrb[0].mxu0 %v1887
        %v1981 = vpop.f32.mrb[0].mxu0
        %v1982 = vadd.f32 %v773, %v1981
        %v1983 = vpop.f32.mrb[0].mxu0
        %v1984 = vpop.f32.mrb[0].mxu0
        %v1985 = vadd.f32 %v773, %v1984
        %v1986 = vpop.f32.mrb[0].mxu0
        %1987 = vmatprep.mubr.bf16.mxu0 %v1890
        %1988 = vmatmul.mubr.bf16.gmra.mrb[0].mxu0 %v1889
        %v1989 = vpop.f32.mrb[0].mxu0
        %v1990 = vadd.f32 %v773, %v1989
        %v1991 = vpop.f32.mrb[0].mxu0
        %v1992 = vpop.f32.mrb[0].mxu0
        %v1993 = vadd.f32 %v773, %v1992
        %v1994 = vpop.f32.mrb[0].mxu0
        %1995 = vmatprep.mubr.bf16.mxu0 %v1892
        %1996 = vmatmul.mubr.bf16.gmra.mrb[0].mxu0 %v1891
        %v1997 = vpop.f32.mrb[0].mxu0
        %v1998 = vadd.f32 %v773, %v1997
        %v1999 = vpop.f32.mrb[0].mxu0
        %v2000 = vpop.f32.mrb[0].mxu0
        %v2001 = vadd.f32 %v773, %v2000
        %v2002 = vpop.f32.mrb[0].mxu0
        %2003 = vmatprep.mubr.bf16.mxu0 %v1894
        %2004 = vmatmul.mubr.bf16.gmra.mrb[0].mxu0 %v1893
        %v2005 = vpop.f32.mrb[0].mxu0
        %v2006 = vadd.f32 %v773, %v2005
        %v2007 = vpop.f32.mrb[0].mxu0
        %v2008 = vpop.f32.mrb[0].mxu0
        %v2009 = vadd.f32 %v773, %v2008
        %v2010 = vpop.f32.mrb[0].mxu0
        %2011 = vmatprep.mubr.bf16.mxu0 %v1896
        %2012 = vmatmul.mubr.bf16.gmra.mrb[0].mxu0 %v1895
        %v2013 = vpop.f32.mrb[0].mxu0
        %v2014 = vadd.f32 %v773, %v2013
        %v2015 = vpop.f32.mrb[0].mxu0
        %v2016 = vpop.f32.mrb[0].mxu0
        %v2017 = vadd.f32 %v773, %v2016
        %v2018 = vpop.f32.mrb[0].mxu0
        %2019 = vmatprep.mubr.bf16.mxu0 %v1898
        %2020 = vmatmul.mubr.bf16.gmra.mrb[0].mxu0 %v1897
        %v2021 = vpop.f32.mrb[0].mxu0
        %v2022 = vadd.f32 %v773, %v2021
        %v2023 = vpop.f32.mrb[0].mxu0
        %v2024 = vpop.f32.mrb[0].mxu0
        %v2025 = vadd.f32 %v773, %v2024
        %v2026 = vpop.f32.mrb[0].mxu0
        %2027 = vmatprep.mubr.bf16.mxu0 %v1900
        %2028 = vmatmul.mubr.bf16.gmra.mrb[0].mxu0 %v1899
        %v2029 = vpop.f32.mrb[0].mxu0
        %v2030 = vadd.f32 %v773, %v2029
        %v2031 = vpop.f32.mrb[0].mxu0
        %v2032 = vpop.f32.mrb[0].mxu0
        %v2033 = vadd.f32 %v773, %v2032
        %v2034 = vpop.f32.mrb[0].mxu0
        %2035 = vmatprep.mubr.bf16.mxu0 %v1902
        %2036 = vmatmul.mubr.bf16.gmra.mrb[0].mxu0 %v1901
        %v2037 = vpop.f32.mrb[0].mxu0
        %v2038 = vadd.f32 %v773, %v2037
        %v2039 = vpop.f32.mrb[0].mxu0
        %v2040 = vpop.f32.mrb[0].mxu0
        %v2041 = vadd.f32 %v773, %v2040
        %v2042 = vpop.f32.mrb[0].mxu0
        %2043 = vmatprep.mubr.bf16.mxu0 %v1904
        %2044 = vmatmul.mubr.bf16.gmra.mrb[0].mxu0 %v1903
        %v2045 = vpop.f32.mrb[0].mxu0
        %v2046 = vadd.f32 %v773, %v2045
        %v2047 = vpop.f32.mrb[0].mxu0
        %v2048 = vpop.f32.mrb[0].mxu0
        %v2049 = vadd.f32 %v773, %v2048
        %v2050 = vpop.f32.mrb[0].mxu0
        %2051 = vmatprep.mubr.bf16.mxu0 %v1906
        %2052 = vmatmul.mubr.bf16.gmra.mrb[0].mxu0 %v1905
        %v2053 = vpop.f32.mrb[0].mxu0
        %v2054 = vadd.f32 %v773, %v2053
        %v2055 = vpop.f32.mrb[0].mxu0
        %v2056 = vpop.f32.mrb[0].mxu0
        %v2057 = vadd.f32 %v773, %v2056
        %v2058 = vpop.f32.mrb[0].mxu0
        %2059 = vmatprep.mubr.bf16.mxu0 %v1908
        %2060 = vmatmul.mubr.bf16.gmra.mrb[0].mxu0 %v1907
        %v2061 = vpop.f32.mrb[0].mxu0
        %v2062 = vadd.f32 %v773, %v2061
        %v2063 = vpop.f32.mrb[0].mxu0
        %v2064 = vpop.f32.mrb[0].mxu0
        %v2065 = vadd.f32 %v773, %v2064
        %v2066 = vpop.f32.mrb[0].mxu0
        %2067 = vmatprep.mubr.bf16.mxu0 %v1910
        %2068 = vmatmul.mubr.bf16.gmra.mrb[0].mxu0 %v1909
        %v2069 = vpop.f32.mrb[0].mxu0
        %v2070 = vadd.f32 %v773, %v2069
        %v2071 = vpop.f32.mrb[0].mxu0
        %v2072 = vpop.f32.mrb[0].mxu0
        %v2073 = vadd.f32 %v773, %v2072
        %v2074 = vpop.f32.mrb[0].mxu0
        %2075 = vmatprep.mubr.bf16.mxu0 %v1912
        %2076 = vmatmul.mubr.bf16.gmra.mrb[0].mxu0 %v1911
        %v2077 = vpop.f32.mrb[0].mxu0
        %v2078 = vadd.f32 %v773, %v2077
        %v2079 = vpop.f32.mrb[0].mxu0
        %v2080 = vpop.f32.mrb[0].mxu0
        %v2081 = vadd.f32 %v773, %v2080
        %v2082 = vpop.f32.mrb[0].mxu0
        %2083 = vmatprep.mubr.bf16.mxu0 %v1914
        %2084 = vmatmul.mubr.bf16.gmra.mrb[0].mxu0 %v1913
        %v2085 = vpop.f32.mrb[0].mxu0
        %v2086 = vadd.f32 %v773, %v2085
        %v2087 = vpop.f32.mrb[0].mxu0
        %v2088 = vpop.f32.mrb[0].mxu0
        %v2089 = vadd.f32 %v773, %v2088
        %v2090 = vpop.f32.mrb[0].mxu0
        %2091 = vdwg.mxu0
        %v2092 = vcvt.f32.s32.to.zero.pseudo %v1966
        %v2093 = vcvt.f32.s32.to.zero.pseudo %v1969
        %v2094 = vcvt.f32.s32.to.zero.pseudo %v1974
        %v2095 = vcvt.f32.s32.to.zero.pseudo %v1977
        %v2096 = vcvt.f32.s32.to.zero.pseudo %v1982
        %v2097 = vcvt.f32.s32.to.zero.pseudo %v1985
        %v2098 = vcvt.f32.s32.to.zero.pseudo %v1990
        %v2099 = vcvt.f32.s32.to.zero.pseudo %v1993
        %v2100 = vcvt.f32.s32.to.zero.pseudo %v1998
        %v2101 = vcvt.f32.s32.to.zero.pseudo %v2001
        %v2102 = vcvt.f32.s32.to.zero.pseudo %v2006
        %v2103 = vcvt.f32.s32.to.zero.pseudo %v2009
        %v2104 = vcvt.f32.s32.to.zero.pseudo %v2014
        %v2105 = vcvt.f32.s32.to.zero.pseudo %v2017
        %v2106 = vcvt.f32.s32.to.zero.pseudo %v2022
        %v2107 = vcvt.f32.s32.to.zero.pseudo %v2025
        %v2108 = vcvt.f32.s32.to.zero.pseudo %v2030
        %v2109 = vcvt.f32.s32.to.zero.pseudo %v2033
        %v2110 = vcvt.f32.s32.to.zero.pseudo %v2038
        %v2111 = vcvt.f32.s32.to.zero.pseudo %v2041
        %v2112 = vcvt.f32.s32.to.zero.pseudo %v2046
        %v2113 = vcvt.f32.s32.to.zero.pseudo %v2049
        %v2114 = vcvt.f32.s32.to.zero.pseudo %v2054
        %v2115 = vcvt.f32.s32.to.zero.pseudo %v2057
        %v2116 = vcvt.f32.s32.to.zero.pseudo %v2062
        %v2117 = vcvt.f32.s32.to.zero.pseudo %v2065
        %v2118 = vcvt.f32.s32.to.zero.pseudo %v2070
        %v2119 = vcvt.f32.s32.to.zero.pseudo %v2073
        %v2120 = vcvt.f32.s32.to.zero.pseudo %v2078
        %v2121 = vcvt.f32.s32.to.zero.pseudo %v2081
        %v2122 = vcvt.f32.s32.to.zero.pseudo %v2086
        %v2123 = vcvt.f32.s32.to.zero.pseudo %v2089
        %v2124 = vcvt.s32.f32 %v2092
        %v2125 = vcvt.s32.f32 %v2093
        %v2126 = vcvt.s32.f32 %v2094
        %v2127 = vcvt.s32.f32 %v2095
        %v2128 = vcvt.s32.f32 %v2096
        %v2129 = vcvt.s32.f32 %v2097
        %v2130 = vcvt.s32.f32 %v2098
        %v2131 = vcvt.s32.f32 %v2099
        %v2132 = vcvt.s32.f32 %v2100
        %v2133 = vcvt.s32.f32 %v2101
        %v2134 = vcvt.s32.f32 %v2102
        %v2135 = vcvt.s32.f32 %v2103
        %v2136 = vcvt.s32.f32 %v2104
        %v2137 = vcvt.s32.f32 %v2105
        %v2138 = vcvt.s32.f32 %v2106
        %v2139 = vcvt.s32.f32 %v2107
        %v2140 = vcvt.s32.f32 %v2108
        %v2141 = vcvt.s32.f32 %v2109
        %v2142 = vcvt.s32.f32 %v2110
        %v2143 = vcvt.s32.f32 %v2111
        %v2144 = vcvt.s32.f32 %v2112
        %v2145 = vcvt.s32.f32 %v2113
        %v2146 = vcvt.s32.f32 %v2114
        %v2147 = vcvt.s32.f32 %v2115
        %v2148 = vcvt.s32.f32 %v2116
        %v2149 = vcvt.s32.f32 %v2117
        %v2150 = vcvt.s32.f32 %v2118
        %v2151 = vcvt.s32.f32 %v2119
        %v2152 = vcvt.s32.f32 %v2120
        %v2153 = vcvt.s32.f32 %v2121
        %v2154 = vcvt.s32.f32 %v2122
        %v2155 = vcvt.s32.f32 %v2123
        %v2156 = vmul.f32 %v445, %v1347
        %v2157 = vmul.f32 %v446, %v1348
        %v2158 = vmul.f32 %v447, %v1349
        %v2159 = vmul.f32 %v448, %v1350
        %v2160 = vmul.f32 %v449, %v1351
        %v2161 = vmul.f32 %v450, %v1352
        %v2162 = vmul.f32 %v451, %v1353
        %v2163 = vmul.f32 %v452, %v1354
        %v2164 = vmul.f32 %v453, %v1355
        %v2165 = vmul.f32 %v454, %v1356
        %v2166 = vmul.f32 %v455, %v1357
        %v2167 = vmul.f32 %v456, %v1358
        %v2168 = vmul.f32 %v457, %v1359
        %v2169 = vmul.f32 %v458, %v1360
        %v2170 = vmul.f32 %v459, %v1361
        %v2171 = vmul.f32 %v460, %v1362
        %v2172 = vmul.f32 %v2124, %v2156
        %v2173 = vmul.f32 %v2125, %v2157
        %v2174 = vmul.f32 %v2126, %v2158
        %v2175 = vmul.f32 %v2127, %v2159
        %v2176 = vmul.f32 %v2128, %v2160
        %v2177 = vmul.f32 %v2129, %v2161
        %v2178 = vmul.f32 %v2130, %v2162
        %v2179 = vmul.f32 %v2131, %v2163
        %v2180 = vmul.f32 %v2132, %v2164
        %v2181 = vmul.f32 %v2133, %v2165
        %v2182 = vmul.f32 %v2134, %v2166
        %v2183 = vmul.f32 %v2135, %v2167
        %v2184 = vmul.f32 %v2136, %v2168
        %v2185 = vmul.f32 %v2137, %v2169
        %v2186 = vmul.f32 %v2138, %v2170
        %v2187 = vmul.f32 %v2139, %v2171
        %v2188 = vmul.f32 %v2140, %v2156
        %v2189 = vmul.f32 %v2141, %v2157
        %v2190 = vmul.f32 %v2142, %v2158
        %v2191 = vmul.f32 %v2143, %v2159
        %v2192 = vmul.f32 %v2144, %v2160
        %v2193 = vmul.f32 %v2145, %v2161
        %v2194 = vmul.f32 %v2146, %v2162
        %v2195 = vmul.f32 %v2147, %v2163
        %v2196 = vmul.f32 %v2148, %v2164
        %v2197 = vmul.f32 %v2149, %v2165
        %v2198 = vmul.f32 %v2150, %v2166
        %v2199 = vmul.f32 %v2151, %v2167
        %v2200 = vmul.f32 %v2152, %v2168
        %v2201 = vmul.f32 %v2153, %v2169
        %v2202 = vmul.f32 %v2154, %v2170
        %v2203 = vmul.f32 %v2155, %v2171
        %v2204 = vld [vmem:[%s4] sm:$0x1]
        %v2206 = vlaneseq
        %v2207 = vshrl.u32 %v2206, 7
        %v2208 = vsub.s32 0, %v2207
        %v2209 = vrot.slane %v2204, %v2208
        %v2211 = vmul.f32 %v2172, %v2209
        %v2212 = vmul.f32 %v2173, %v2209
        %v2213 = vmul.f32 %v2174, %v2209
        %v2214 = vmul.f32 %v2175, %v2209
        %v2215 = vmul.f32 %v2176, %v2209
        %v2216 = vmul.f32 %v2177, %v2209
        %v2217 = vmul.f32 %v2178, %v2209
        %v2218 = vmul.f32 %v2179, %v2209
        %v2219 = vmul.f32 %v2180, %v2209
        %v2220 = vmul.f32 %v2181, %v2209
        %v2221 = vmul.f32 %v2182, %v2209
        %v2222 = vmul.f32 %v2183, %v2209
        %v2223 = vmul.f32 %v2184, %v2209
        %v2224 = vmul.f32 %v2185, %v2209
        %v2225 = vmul.f32 %v2186, %v2209
        %v2226 = vmul.f32 %v2187, %v2209
        %v2227 = vmul.f32 %v2188, %v2209
        %v2228 = vmul.f32 %v2189, %v2209
        %v2229 = vmul.f32 %v2190, %v2209
        %v2230 = vmul.f32 %v2191, %v2209
        %v2231 = vmul.f32 %v2192, %v2209
        %v2232 = vmul.f32 %v2193, %v2209
        %v2233 = vmul.f32 %v2194, %v2209
        %v2234 = vmul.f32 %v2195, %v2209
        %v2235 = vmul.f32 %v2196, %v2209
        %v2236 = vmul.f32 %v2197, %v2209
        %v2237 = vmul.f32 %v2198, %v2209
        %v2238 = vmul.f32 %v2199, %v2209
        %v2239 = vmul.f32 %v2200, %v2209
        %v2240 = vmul.f32 %v2201, %v2209
        %v2241 = vmul.f32 %v2202, %v2209
        %v2242 = vmul.f32 %v2203, %v2209
        %2243 = vst [vmem:[%s296] sm:$0xff] %v2211
        %2244 = vst [vmem:[%s296 + $0x8] sm:$0xff] %v2212
        %2245 = vst [vmem:[%s296 + $0x10] sm:$0xff] %v2213
        %2246 = vst [vmem:[%s296 + $0x18] sm:$0xff] %v2214
        %2247 = vst [vmem:[%s296 + $0x20] sm:$0xff] %v2215
        %2248 = vst [vmem:[%s296 + $0x28] sm:$0xff] %v2216
        %2249 = vst [vmem:[%s296 + $0x30] sm:$0xff] %v2217
        %2250 = vst [vmem:[%s296 + $0x38] sm:$0xff] %v2218
        %2251 = vst [vmem:[%s296 + $0x40] sm:$0xff] %v2219
        %2252 = vst [vmem:[%s296 + $0x48] sm:$0xff] %v2220
        %2253 = vst [vmem:[%s296 + $0x50] sm:$0xff] %v2221
        %2254 = vst [vmem:[%s296 + $0x58] sm:$0xff] %v2222
        %2255 = vst [vmem:[%s296 + $0x60] sm:$0xff] %v2223
        %2256 = vst [vmem:[%s296 + $0x68] sm:$0xff] %v2224
        %2257 = vst [vmem:[%s296 + $0x70] sm:$0xff] %v2225
        %2258 = vst [vmem:[%s296 + $0x78] sm:$0xff] %v2226
        %2259 = vst [vmem:[%s296 + $0x80] sm:$0xff] %v2227
        %2260 = vst [vmem:[%s296 + $0x88] sm:$0xff] %v2228
        %2261 = vst [vmem:[%s296 + $0x90] sm:$0xff] %v2229
        %2262 = vst [vmem:[%s296 + $0x98] sm:$0xff] %v2230
        %2263 = vst [vmem:[%s296 + $0xa0] sm:$0xff] %v2231
        %2264 = vst [vmem:[%s296 + $0xa8] sm:$0xff] %v2232
        %2265 = vst [vmem:[%s296 + $0xb0] sm:$0xff] %v2233
        %2266 = vst [vmem:[%s296 + $0xb8] sm:$0xff] %v2234
        %2267 = vst [vmem:[%s296 + $0xc0] sm:$0xff] %v2235
        %2268 = vst [vmem:[%s296 + $0xc8] sm:$0xff] %v2236
        %2269 = vst [vmem:[%s296 + $0xd0] sm:$0xff] %v2237
        %2270 = vst [vmem:[%s296 + $0xd8] sm:$0xff] %v2238
        %2271 = vst [vmem:[%s296 + $0xe0] sm:$0xff] %v2239
        %2272 = vst [vmem:[%s296 + $0xe8] sm:$0xff] %v2240
        %2273 = vst [vmem:[%s296 + $0xf0] sm:$0xff] %v2241
        %2274 = vst [vmem:[%s296 + $0xf8] sm:$0xff] %v2242
        %s2275 = sand.u32 %s141, 1
        %s2276 = scalar_lea.sflag [#allocation4], %s2275
        %s2277 = sand.u32 %s141, 1
        %s2278 = smul.addr %s2277, 256
        %s2279 = scalar_lea.vmem [#allocation8], %s2278
        // Predicated region
        $region53: #{tpu_custom_call.1} parent=39 // pred_check
          %p2280 = pneg %p151
        $region54: #{tpu_custom_call.1} parent=39 // pred_check_branch
          %2282 = sbr.rel (%p2280) target = $region56
        $region55: #{tpu_custom_call.1} parent=39 // pred_region
          #allocation12 [shape = 'u32[6]{0}', space=smem, size = 0x18, scoped, tag = 'DMA stride descriptor']
          %s2283 = smul.u32 16, %s23
          %s2285 = ssub.s32 4096, 4096
          %2286 = vsyncadd %s2276, %s2285
          %s2287 = smul.addr %s2283, 128
          %s2288 = scalar_lea.hbm %s5, %s2287
          %s2290 = sshll.u32 1, 14
          %s2291 = sxor.u32 4294967295, %s2290
          %s2294 = sshll.u32 7, 18
          %s2295 = sxor.u32 4294967295, %s2294
          %s2296 = sand.u32 0, %s2295
          %s2298 = sor.u32 %s2296, 0
          %s2300 = sshll.u32 3, 24
          %s2301 = sxor.u32 4294967295, %s2300
          %s2302 = sand.u32 %s2298, %s2301
          %s2304 = sor.u32 %s2302, 0
          %s2305 = sshll.u32 %s2279, 4
          %s2306 = int_to_ptr.vmem [resolvable:$true] %s2305
          %2312 = sst [smem:[#allocation12]] 2048
          %s2313 = scalar_lea.smem [#allocation12], 1
          %2314 = sst [smem:[%s2313]] 4096
          %s2315 = scalar_lea.smem [#allocation12], 2
          %2316 = sst [smem:[%s2315]] 16
          %s2317 = scalar_lea.smem [#allocation12], 3
          %2318 = sst [smem:[%s2317]] 128
          %s2319 = scalar_lea.smem [#allocation12], 4
          %2320 = sst [smem:[%s2319]] 128
          %s2321 = scalar_lea.smem [#allocation12], 5
          %2322 = sst [smem:[%s2321]] 8
          %2324 = dma.general %s2306, 4096, %s2288, %s2276, [#allocation11], [#allocation12], %s2304, 0
        $region56: #{tpu_custom_call.1} parent=39 // pred_fallthru
          _
      $region40: #{tpu_custom_call.1} parent=5 // pred_fallthru
        _
      %p2325 = scmp.le.s32.totalorder 2, %s18
      // Predicated region
      $region57: #{tpu_custom_call.1} parent=5 // pred_check
        %p2326 = pneg %p2325
      $region58: #{tpu_custom_call.1} parent=5 // pred_check_branch
        %2328 = sbr.rel (%p2326) target = $region60
      $region59: #{tpu_custom_call.1} parent=5 // pred_region
        %s2329 = ssub.s32 %s18, 2
        // Predicated region
        $region61: #{tpu_custom_call.1} parent=59 // pred_check
          %p2330 = pneg %p157
        $region62: #{tpu_custom_call.1} parent=59 // pred_check_branch
          %2332 = sbr.rel (%p2330) target = $region64
        $region63: #{tpu_custom_call.1} parent=59 // pred_region
          %s2333 = sand.u32 %s142, 1
          %s2334 = scalar_lea.sflag [#allocation4], %s2333
          %s2335 = sand.u32 %s142, 1
          %s2336 = smul.addr %s2335, 256
          %s2337 = scalar_lea.vmem [#allocation8], %s2336
          %2338 = dma.done %s2334, 4096
        $region64: #{tpu_custom_call.1} parent=59 // pred_fallthru
          _
      $region60: #{tpu_custom_call.1} parent=5 // pred_fallthru
        _
    $region6: #{tpu_custom_call.1} parent=1 // loop_footer
      %s22 = sadd.s32 1, %s18
    $region7: #{tpu_custom_call.1} parent=1 // loop_footer_branch
      %17 = sbr.rel target = $region3
    $region8: #{tpu_custom_call.1} parent=1 // loop_exit
      _
    %2339 = vsyncpa [#allocation3], 1
    %s2340 = scalar_lea.sflag [#allocation3], 1
    %2341 = vsyncpa %s2340, 1
    %2342 = vsyncpa [#allocation6], 1
    %2343 = vsyncpa [#allocation4], 1
    %s2344 = scalar_lea.sflag [#allocation4], 1
    %2345 = vsyncpa %s2344, 1

// kernel: tpu_custom_call.1
$region0: #{tpu_custom_call.1}
  #allocation0 [shape = 'u32[]', space=smem, size = 0x4, offset = 0x4, fixed_abs, tag = 'smem constant byte address 0x4 - core index']
  #allocation1 [shape = 'u32[144,128]{1,0:T(1,128)}', space=vmem, size = 0x12000, scoped, tag = 'internal scratch']
  #allocation9 [shape = 's32[]', space=sflag, size = 0x4, offset = 0, fixed_abs, tag = 'sflag constant byte address 0x0 - dummy sync flag']
  #allocation11 [shape = 's32[]', space=sflag, size = 0x4, offset = 0, fixed_abs, tag = 'sflag constant byte address 0x0 - dummy sync flag']
  %s0 = inlined_call_operand.hbm [shape: f32[2,256,128], index: 0, kind: input, shape index: {}]
  %s1 = inlined_call_operand.hbm [shape: bf16[128,256], index: 1, kind: input, shape index: {}]
  %s2 = inlined_call_operand.vmem [shape: f32[1,256], index: 2, kind: input, shape index: {}]
  %s3 = inlined_call_operand.hbm [shape: bf16[256,128], index: 3, kind: input, shape index: {}]
  %s4 = inlined_call_operand.vmem [shape: f32[1,128], index: 4, kind: input, shape index: {}]
  %s5 = inlined_call_operand.hbm [shape: f32[2,256,128], index: 5, kind: output, shape index: {}]
  %s6 = sld [smem:[#allocation0]]
  $region65: #{tpu_custom_call.1} parent=0
    _
  %s8 = ssub.s32 1, %s6
  %s9 = scalar_select 0, %s8, %s6
  $region1: #{tpu_custom_call.1} parent=0
    #allocation2 [shape = 'u8[262144]{0}', space=vmem, size = 0x40000, scoped, tag = 'input window, operand 0']
    #allocation3 [shape = 's32[2]{0}', space=sflag, size = 0x8, scoped, tag = 'scoped memory for tpu_custom_call.1']
    #allocation4 [shape = 's32[2]{0}', space=sflag, size = 0x8, scoped, tag = 'scoped memory for tpu_custom_call.1']
    #allocation5 [shape = 'u8[65536]{0}', space=vmem, size = 0x10000, scoped, tag = 'input window, operand 1, single buffered']
    #allocation6 [shape = 's32[1]{0}', space=sflag, size = 0x4, scoped, tag = 'scoped memory for tpu_custom_call.1']
    #allocation7 [shape = 'u8[65536]{0}', space=vmem, size = 0x10000, scoped, tag = 'input window, operand 3, single buffered']
    #allocation8 [shape = 'u8[262144]{0}', space=vmem, size = 0x40000, scoped, tag = 'output window, operand 0']
    %10 = vsyncpa [#allocation3], 0
    %s11 = scalar_lea.sflag [#allocation3], 1
    %12 = vsyncpa %s11, 0
    %13 = vsyncpa [#allocation6], 0
    %14 = vsyncpa [#allocation4], 0
    %s15 = scalar_lea.sflag [#allocation4], 1
    %16 = vsyncpa %s15, 0
    loop: start=0, step=1, limit=4
    $region2: #{tpu_custom_call.1} parent=1 // loop_pre_header
      _
    $region3: #{tpu_custom_call.1} parent=1 // loop_header
      %s18 = sphi 0, %s22
      %p19 = scmp.ge.s32.totalorder %s18, 4
      %s28 = sphi 0, %s30
      %s31 = sphi 0, %s28
      %s32 = sphi 0, %s31
      %s48 = sphi 0, %s32
      %s52 = sphi 0, %s52
      %s54 = sphi 0, %s52
      %s55 = sphi 0, %s54
      %s69 = sphi 0, %s55
      %s73 = sphi 0, %s73
      %s75 = sphi 0, %s73
      %s76 = sphi 0, %s75
      %s90 = sphi 0, %s76
      %s94 = sphi 0, %s94
      %s96 = sphi 0, %s94
      %s97 = sphi 0, %s96
      %s111 = sphi 0, %s97
      %s115 = sphi 0, %s115
      %s117 = sphi 0, %s115
      %s118 = sphi 0, %s117
      %s132 = sphi 0, %s118
      %s138 = sphi 0, %s140
      %s141 = sphi 0, %s138
      %s142 = sphi 0, %s141
      %s158 = sphi 0, %s142
    $region4: #{tpu_custom_call.1} parent=1 // loop_header_branch
      %21 = sbr.rel (%p19) target = $region8
    $region5: #{tpu_custom_call.1} parent=1 // loop_body
      %s23 = ssub.s32 %s18, 1
      %s24 = ssub.s32 %s18, 2
      %s25 = sadd.s32 %s18, 1
      %s26 = ssub.s32 %s18, %s25
      %p27 = scmp.eq.s32.totalorder %s26, 0
      %s29 = sadd.s32 %s28, 1
      %s30 = scalar_select %p27, %s28, %s29
      %p33 = pneg %p27
      %p34 = scmp.eq.s32.totalorder %s18, 1
      %p35 = por %p33, %p34
      %p36 = scmp.ne.s32.totalorder %s28, %s31
      %p37 = scmp.eq.s32.totalorder %s18, 0
      %p38 = por %p36, %p37
      %p39 = scmp.ne.s32.totalorder %s28, %s31
      %p40 = scmp.eq.s32.totalorder %s23, 1
      %p41 = por %p39, %p40
      %p42 = scmp.ne.s32.totalorder %s31, %s32
      %p43 = scmp.eq.s32.totalorder %s23, 0
      %p44 = por %p42, %p43
      %p45 = scmp.ne.s32.totalorder %s31, %s32
      %p46 = scmp.eq.s32.totalorder %s24, 1
      %p47 = por %p45, %p46
      %p49 = scmp.ne.s32.totalorder %s32, %s48
      %p50 = scmp.eq.s32.totalorder %s24, 0
      %p51 = por %p49, %p50
      %s53 = sadd.s32 %s52, 1
      %p56 = scmp.eq.s32.totalorder %s18, 1
      %p57 = scmp.ne.s32.totalorder %s52, %s54
      %p58 = scmp.eq.s32.totalorder %s18, 0
      %p59 = por %p57, %p58
      %p60 = scmp.ne.s32.totalorder %s52, %s54
      %p61 = scmp.eq.s32.totalorder %s23, 1
      %p62 = por %p60, %p61
      %p63 = scmp.ne.s32.totalorder %s54, %s55
      %p64 = scmp.eq.s32.totalorder %s23, 0
      %p65 = por %p63, %p64
      %p66 = scmp.ne.s32.totalorder %s54, %s55
      %p67 = scmp.eq.s32.totalorder %s24, 1
      %p68 = por %p66, %p67
      %p70 = scmp.ne.s32.totalorder %s55, %s69
      %p71 = scmp.eq.s32.totalorder %s24, 0
      %p72 = por %p70, %p71
      %s74 = sadd.s32 %s73, 1
      %p77 = scmp.eq.s32.totalorder %s18, 1
      %p78 = scmp.ne.s32.totalorder %s73, %s75
      %p79 = scmp.eq.s32.totalorder %s18, 0
      %p80 = por %p78, %p79
      %p81 = scmp.ne.s32.totalorder %s73, %s75
      %p82 = scmp.eq.s32.totalorder %s23, 1
      %p83 = por %p81, %p82
      %p84 = scmp.ne.s32.totalorder %s75, %s76
      %p85 = scmp.eq.s32.totalorder %s23, 0
      %p86 = por %p84, %p85
      %p87 = scmp.ne.s32.totalorder %s75, %s76
      %p88 = scmp.eq.s32.totalorder %s24, 1
      %p89 = por %p87, %p88
      %p91 = scmp.ne.s32.totalorder %s76, %s90
      %p92 = scmp.eq.s32.totalorder %s24, 0
      %p93 = por %p91, %p92
      %s95 = sadd.s32 %s94, 1
      %p98 = scmp.eq.s32.totalorder %s18, 1
      %p99 = scmp.ne.s32.totalorder %s94, %s96
      %p100 = scmp.eq.s32.totalorder %s18, 0
      %p101 = por %p99, %p100
      %p102 = scmp.ne.s32.totalorder %s94, %s96
      %p103 = scmp.eq.s32.totalorder %s23, 1
      %p104 = por %p102, %p103
      %p105 = scmp.ne.s32.totalorder %s96, %s97
      %p106 = scmp.eq.s32.totalorder %s23, 0
      %p107 = por %p105, %p106
      %p108 = scmp.ne.s32.totalorder %s96, %s97
      %p109 = scmp.eq.s32.totalorder %s24, 1
      %p110 = por %p108, %p109
      %p112 = scmp.ne.s32.totalorder %s97, %s111
      %p113 = scmp.eq.s32.totalorder %s24, 0
      %p114 = por %p112, %p113
      %s116 = sadd.s32 %s115, 1
      %p119 = scmp.eq.s32.totalorder %s18, 1
      %p120 = scmp.ne.s32.totalorder %s115, %s117
      %p121 = scmp.eq.s32.totalorder %s18, 0
      %p122 = por %p120, %p121
      %p123 = scmp.ne.s32.totalorder %s115, %s117
      %p124 = scmp.eq.s32.totalorder %s23, 1
      %p125 = por %p123, %p124
      %p126 = scmp.ne.s32.totalorder %s117, %s118
      %p127 = scmp.eq.s32.totalorder %s23, 0
      %p128 = por %p126, %p127
      %p129 = scmp.ne.s32.totalorder %s117, %s118
      %p130 = scmp.eq.s32.totalorder %s24, 1
      %p131 = por %p129, %p130
      %p133 = scmp.ne.s32.totalorder %s118, %s132
      %p134 = scmp.eq.s32.totalorder %s24, 0
      %p135 = por %p133, %p134
      %s136 = ssub.s32 %s18, %s25
      %p137 = scmp.eq.s32.totalorder %s136, 0
      %s139 = sadd.s32 %s138, 1
      %s140 = scalar_select %p137, %s138, %s139
      %p143 = pneg %p137
      %p144 = scmp.eq.s32.totalorder %s18, 1
      %p145 = por %p143, %p144
      %p146 = scmp.ne.s32.totalorder %s138, %s141
      %p147 = scmp.eq.s32.totalorder %s18, 0
      %p148 = por %p146, %p147
      %p149 = scmp.ne.s32.totalorder %s138, %s141
      %p150 = scmp.eq.s32.totalorder %s23, 1
      %p151 = por %p149, %p150
      %p152 = scmp.ne.s32.totalorder %s141, %s142
      %p153 = scmp.eq.s32.totalorder %s23, 0
      %p154 = por %p152, %p153
      %p155 = scmp.ne.s32.totalorder %s141, %s142
      %p156 = scmp.eq.s32.totalorder %s24, 1
      %p157 = por %p155, %p156
      %p159 = scmp.ne.s32.totalorder %s142, %s158
      %p160 = scmp.eq.s32.totalorder %s24, 0
      %p161 = por %p159, %p160
      %p162 = scmp.le.s32.totalorder 1, %s18
      %p163 = scmp.lt.s32.totalorder %s18, 3
      %p164 = pnand %p162, %p163
      %p165 = pneg %p164
      // Predicated region
      $region9: #{tpu_custom_call.1} parent=5 // pred_check
        _
      $region10: #{tpu_custom_call.1} parent=5 // pred_check_branch
        %167 = sbr.rel (%p164) target = $region12
      $region11: #{tpu_custom_call.1} parent=5 // pred_region
        %s168 = ssub.s32 %s18, 1
        // Predicated region
        $region13: #{tpu_custom_call.1} parent=11 // pred_check
          %p169 = pneg %p65
        $region14: #{tpu_custom_call.1} parent=11 // pred_check_branch
          %171 = sbr.rel (%p169) target = $region16
        $region15: #{tpu_custom_call.1} parent=11 // pred_region
          %s173 = ssub.s32 2048, 2048
          %174 = vsyncadd [#allocation6], %s173
          %s175 = sshll.u32 [#allocation5], 4
          %s176 = int_to_ptr.vmem [resolvable:$true] %s175
          %181 = dma.hbm_to_vmem [thread:$0]  %s1, 2048, %s176, [#allocation6], 128, 128, 8
        $region16: #{tpu_custom_call.1} parent=11 // pred_fallthru
          _
        // Predicated region
        $region17: #{tpu_custom_call.1} parent=11 // pred_check
          %p182 = pneg %p86
        $region18: #{tpu_custom_call.1} parent=11 // pred_check_branch
          %184 = sbr.rel (%p182) target = $region20
        $region19: #{tpu_custom_call.1} parent=11 // pred_region
          _
        $region20: #{tpu_custom_call.1} parent=11 // pred_fallthru
          _
        // Predicated region
        $region21: #{tpu_custom_call.1} parent=11 // pred_check
          %p185 = pneg %p107
        $region22: #{tpu_custom_call.1} parent=11 // pred_check_branch
          %187 = sbr.rel (%p185) target = $region24
        $region23: #{tpu_custom_call.1} parent=11 // pred_region
          %s189 = ssub.s32 2048, 2048
          %190 = vsyncadd [#allocation6], %s189
          %s191 = sshll.u32 [#allocation7], 4
          %s192 = int_to_ptr.vmem [resolvable:$true] %s191
          %197 = dma.hbm_to_vmem [thread:$0]  %s3, 2048, %s192, [#allocation6], 64, 64, 4
        $region24: #{tpu_custom_call.1} parent=11 // pred_fallthru
          _
        // Predicated region
        $region25: #{tpu_custom_call.1} parent=11 // pred_check
          %p198 = pneg %p128
        $region26: #{tpu_custom_call.1} parent=11 // pred_check_branch
          %200 = sbr.rel (%p198) target = $region28
        $region27: #{tpu_custom_call.1} parent=11 // pred_region
          _
        $region28: #{tpu_custom_call.1} parent=11 // pred_fallthru
          _
      $region12: #{tpu_custom_call.1} parent=5 // pred_fallthru
        _
      %p201 = scmp.lt.s32.totalorder %s18, 2
      // Predicated region
      $region29: #{tpu_custom_call.1} parent=5 // pred_check
        %p202 = pneg %p201
      $region30: #{tpu_custom_call.1} parent=5 // pred_check_branch
        %204 = sbr.rel (%p202) target = $region32
      $region31: #{tpu_custom_call.1} parent=5 // pred_region
        // Predicated region
        $region33: #{tpu_custom_call.1} parent=31 // pred_check
          %p205 = pneg %p38
        $region34: #{tpu_custom_call.1} parent=31 // pred_check_branch
          %207 = sbr.rel (%p205) target = $region36
        $region35: #{tpu_custom_call.1} parent=31 // pred_region
          #allocation10 [shape = 'u32[6]{0}', space=smem, size = 0x18, scoped, tag = 'DMA stride descriptor']
          %s208 = sand.u32 %s28, 1
          %s209 = scalar_lea.sflag [#allocation3], %s208
          %s210 = sand.u32 %s28, 1
          %s211 = smul.addr %s210, 256
          %s212 = scalar_lea.vmem [#allocation2], %s211
          %s213 = smul.u32 16, %s18
          %s215 = ssub.s32 4096, 4096
          %216 = vsyncadd %s209, %s215
          %s217 = smul.addr %s213, 128
          %s218 = scalar_lea.hbm %s0, %s217
          %s220 = sshll.u32 1, 14
          %s221 = sxor.u32 4294967295, %s220
          %s223 = sld [smem:[#allocation0]]
          %s224 = sadd.s32 2, %s223
          %s226 = sshll.u32 7, 26
          %s227 = sxor.u32 4294967295, %s226
          %s228 = sand.u32 0, %s227
          %s229 = sshll.u32 %s224, 26
          %s230 = sor.u32 %s228, %s229
          %s231 = sshll.u32 %s212, 4
          %s232 = int_to_ptr.vmem [resolvable:$true] %s231
          %238 = sst [smem:[#allocation10]] 4096
          %s239 = scalar_lea.smem [#allocation10], 1
          %240 = sst [smem:[%s239]] 2048
          %s241 = scalar_lea.smem [#allocation10], 2
          %242 = sst [smem:[%s241]] 16
          %s243 = scalar_lea.smem [#allocation10], 3
          %244 = sst [smem:[%s243]] 128
          %s245 = scalar_lea.smem [#allocation10], 4
          %246 = sst [smem:[%s245]] 128
          %s247 = scalar_lea.smem [#allocation10], 5
          %248 = sst [smem:[%s247]] 8
          %250 = dma.general %s218, 4096, %s232, %s209, [#allocation9], [#allocation10], %s230, 0
        $region36: #{tpu_custom_call.1} parent=31 // pred_fallthru
          _
      $region32: #{tpu_custom_call.1} parent=5 // pred_fallthru
        _
      %p251 = scmp.le.s32.totalorder 1, %s18
      %p252 = scmp.lt.s32.totalorder %s18, 3
      %p253 = pnand %p251, %p252
      %p254 = pneg %p253
      // Predicated region
      $region37: #{tpu_custom_call.1} parent=5 // pred_check
        _
      $region38: #{tpu_custom_call.1} parent=5 // pred_check_branch
        %256 = sbr.rel (%p253) target = $region40
      $region39: #{tpu_custom_call.1} parent=5 // pred_region
        %s257 = ssub.s32 %s18, 1
        %s258 = sand.u32 %s31, 1
        %s259 = scalar_lea.sflag [#allocation3], %s258
        %s260 = sand.u32 %s31, 1
        %s261 = smul.addr %s260, 256
        %s262 = scalar_lea.vmem [#allocation2], %s261
        // Predicated region
        $region41: #{tpu_custom_call.1} parent=39 // pred_check
          %p263 = pneg %p44
        $region42: #{tpu_custom_call.1} parent=39 // pred_check_branch
          %265 = sbr.rel (%p263) target = $region44
        $region43: #{tpu_custom_call.1} parent=39 // pred_region
          %266 = dma.done %s259, 4096
        $region44: #{tpu_custom_call.1} parent=39 // pred_fallthru
          _
        // Predicated region
        $region45: #{tpu_custom_call.1} parent=39 // pred_check
          %p267 = pneg %p65
        $region46: #{tpu_custom_call.1} parent=39 // pred_check_branch
          %269 = sbr.rel (%p267) target = $region48
        $region47: #{tpu_custom_call.1} parent=39 // pred_region
          %270 = dma.done [#allocation6], 2048
        $region48: #{tpu_custom_call.1} parent=39 // pred_fallthru
          _
        // Predicated region
        $region49: #{tpu_custom_call.1} parent=39 // pred_check
          %p271 = pneg %p107
        $region50: #{tpu_custom_call.1} parent=39 // pred_check_branch
          %273 = sbr.rel (%p271) target = $region52
        $region51: #{tpu_custom_call.1} parent=39 // pred_region
          %274 = dma.done [#allocation6], 2048
        $region52: #{tpu_custom_call.1} parent=39 // pred_fallthru
          _
        %s275 = sand.u32 %s31, 1
        %s276 = scalar_lea.sflag [#allocation3], %s275
        %s277 = sand.u32 %s31, 1
        %s278 = smul.addr %s277, 256
        %s279 = scalar_lea.vmem [#allocation2], %s278
        %p280 = pneg %p44
        %p281 = pneg %p41
        %p282 = pneg %p65
        %p283 = pneg %p62
        %p284 = pneg %p86
        %p285 = pneg %p83
        %p286 = pneg %p107
        %p287 = pneg %p104
        %p288 = pneg %p128
        %p289 = pneg %p125
        %p290 = pneg %p154
        %p291 = pneg %p151
        %s292 = sand.u32 %s141, 1
        %s293 = scalar_lea.sflag [#allocation4], %s292
        %s294 = sand.u32 %s141, 1
        %s295 = smul.addr %s294, 256
        %s296 = scalar_lea.vmem [#allocation8], %s295
        %s297 = smul.u32 16, %s23
        %s298 = smul.u32 16, %s23
        %v300 = vld [vmem:[%s262] sm:$0xff]
        %v301 = vld [vmem:[%s262 + $0x8] sm:$0xff]
        %v302 = vld [vmem:[%s262 + $0x10] sm:$0xff]
        %v303 = vld [vmem:[%s262 + $0x18] sm:$0xff]
        %v304 = vld [vmem:[%s262 + $0x20] sm:$0xff]
        %v305 = vld [vmem:[%s262 + $0x28] sm:$0xff]
        %v306 = vld [vmem:[%s262 + $0x30] sm:$0xff]
        %v307 = vld [vmem:[%s262 + $0x38] sm:$0xff]
        %v308 = vld [vmem:[%s262 + $0x40] sm:$0xff]
        %v309 = vld [vmem:[%s262 + $0x48] sm:$0xff]
        %v310 = vld [vmem:[%s262 + $0x50] sm:$0xff]
        %v311 = vld [vmem:[%s262 + $0x58] sm:$0xff]
        %v312 = vld [vmem:[%s262 + $0x60] sm:$0xff]
        %v313 = vld [vmem:[%s262 + $0x68] sm:$0xff]
        %v314 = vld [vmem:[%s262 + $0x70] sm:$0xff]
        %v315 = vld [vmem:[%s262 + $0x78] sm:$0xff]
        %v316 = vld [vmem:[%s262 + $0x80] sm:$0xff]
        %v317 = vld [vmem:[%s262 + $0x88] sm:$0xff]
        %v318 = vld [vmem:[%s262 + $0x90] sm:$0xff]
        %v319 = vld [vmem:[%s262 + $0x98] sm:$0xff]
        %v320 = vld [vmem:[%s262 + $0xa0] sm:$0xff]
        %v321 = vld [vmem:[%s262 + $0xa8] sm:$0xff]
        %v322 = vld [vmem:[%s262 + $0xb0] sm:$0xff]
        %v323 = vld [vmem:[%s262 + $0xb8] sm:$0xff]
        %v324 = vld [vmem:[%s262 + $0xc0] sm:$0xff]
        %v325 = vld [vmem:[%s262 + $0xc8] sm:$0xff]
        %v326 = vld [vmem:[%s262 + $0xd0] sm:$0xff]
        %v327 = vld [vmem:[%s262 + $0xd8] sm:$0xff]
        %v328 = vld [vmem:[%s262 + $0xe0] sm:$0xff]
        %v329 = vld [vmem:[%s262 + $0xe8] sm:$0xff]
        %v330 = vld [vmem:[%s262 + $0xf0] sm:$0xff]
        %v331 = vld [vmem:[%s262 + $0xf8] sm:$0xff]
        %v332 = vand.u32 2147483647, %v300
        %v333 = vand.u32 2147483647, %v301
        %v334 = vand.u32 2147483647, %v302
        %v335 = vand.u32 2147483647, %v303
        %v336 = vand.u32 2147483647, %v304
        %v337 = vand.u32 2147483647, %v305
        %v338 = vand.u32 2147483647, %v306
        %v339 = vand.u32 2147483647, %v307
        %v340 = vand.u32 2147483647, %v308
        %v341 = vand.u32 2147483647, %v309
        %v342 = vand.u32 2147483647, %v310
        %v343 = vand.u32 2147483647, %v311
        %v344 = vand.u32 2147483647, %v312
        %v345 = vand.u32 2147483647, %v313
        %v346 = vand.u32 2147483647, %v314
        %v347 = vand.u32 2147483647, %v315
        %v348 = vand.u32 2147483647, %v316
        %v349 = vand.u32 2147483647, %v317
        %v350 = vand.u32 2147483647, %v318
        %v351 = vand.u32 2147483647, %v319
        %v352 = vand.u32 2147483647, %v320
        %v353 = vand.u32 2147483647, %v321
        %v354 = vand.u32 2147483647, %v322
        %v355 = vand.u32 2147483647, %v323
        %v356 = vand.u32 2147483647, %v324
        %v357 = vand.u32 2147483647, %v325
        %v358 = vand.u32 2147483647, %v326
        %v359 = vand.u32 2147483647, %v327
        %v360 = vand.u32 2147483647, %v328
        %v361 = vand.u32 2147483647, %v329
        %v362 = vand.u32 2147483647, %v330
        %v363 = vand.u32 2147483647, %v331
        %v364 = vmax.f32 %v332, %v348
        %365 = vmax.xlane.f32.xlu0 %v364
        %v366 = vpop.xlane.xlu0 %365
        %v367 = vmax.f32 %v333, %v349
        %368 = vmax.xlane.f32.xlu0 %v367
        %v369 = vpop.xlane.xlu0 %368
        %v370 = vmax.f32 %v334, %v350
        %371 = vmax.xlane.f32.xlu0 %v370
        %v372 = vpop.xlane.xlu0 %371
        %v373 = vmax.f32 %v335, %v351
        %374 = vmax.xlane.f32.xlu0 %v373
        %v375 = vpop.xlane.xlu0 %374
        %v376 = vmax.f32 %v336, %v352
        %377 = vmax.xlane.f32.xlu0 %v376
        %v378 = vpop.xlane.xlu0 %377
        %v379 = vmax.f32 %v337, %v353
        %380 = vmax.xlane.f32.xlu0 %v379
        %v381 = vpop.xlane.xlu0 %380
        %v382 = vmax.f32 %v338, %v354
        %383 = vmax.xlane.f32.xlu0 %v382
        %v384 = vpop.xlane.xlu0 %383
        %v385 = vmax.f32 %v339, %v355
        %386 = vmax.xlane.f32.xlu0 %v385
        %v387 = vpop.xlane.xlu0 %386
        %v388 = vmax.f32 %v340, %v356
        %389 = vmax.xlane.f32.xlu0 %v388
        %v390 = vpop.xlane.xlu0 %389
        %v391 = vmax.f32 %v341, %v357
        %392 = vmax.xlane.f32.xlu0 %v391
        %v393 = vpop.xlane.xlu0 %392
        %v394 = vmax.f32 %v342, %v358
        %395 = vmax.xlane.f32.xlu0 %v394
        %v396 = vpop.xlane.xlu0 %395
        %v397 = vmax.f32 %v343, %v359
        %398 = vmax.xlane.f32.xlu0 %v397
        %v399 = vpop.xlane.xlu0 %398
        %v400 = vmax.f32 %v344, %v360
        %401 = vmax.xlane.f32.xlu0 %v400
        %v402 = vpop.xlane.xlu0 %401
        %v403 = vmax.f32 %v345, %v361
        %404 = vmax.xlane.f32.xlu0 %v403
        %v405 = vpop.xlane.xlu0 %404
        %v406 = vmax.f32 %v346, %v362
        %407 = vmax.xlane.f32.xlu0 %v406
        %v408 = vpop.xlane.xlu0 %407
        %v409 = vmax.f32 %v347, %v363
        %410 = vmax.xlane.f32.xlu0 %v409
        %v411 = vpop.xlane.xlu0 %410
        %v412 = vrcp.pop 127.0
        %v413 = vmul.f32 %v366, %v412
        %v414 = vmul.f32 %v369, %v412
        %v415 = vmul.f32 %v372, %v412
        %v416 = vmul.f32 %v375, %v412
        %v417 = vmul.f32 %v378, %v412
        %v418 = vmul.f32 %v381, %v412
        %v419 = vmul.f32 %v384, %v412
        %v420 = vmul.f32 %v387, %v412
        %v421 = vmul.f32 %v390, %v412
        %v422 = vmul.f32 %v393, %v412
        %v423 = vmul.f32 %v396, %v412
        %v424 = vmul.f32 %v399, %v412
        %v425 = vmul.f32 %v402, %v412
        %v426 = vmul.f32 %v405, %v412
        %v427 = vmul.f32 %v408, %v412
        %v428 = vmul.f32 %v411, %v412
        %vm429 = vcmp.eq.f32.partialorder %v413, 0.0
        %vm430 = vcmp.eq.f32.partialorder %v414, 0.0
        %vm431 = vcmp.eq.f32.partialorder %v415, 0.0
        %vm432 = vcmp.eq.f32.partialorder %v416, 0.0
        %vm433 = vcmp.eq.f32.partialorder %v417, 0.0
        %vm434 = vcmp.eq.f32.partialorder %v418, 0.0
        %vm435 = vcmp.eq.f32.partialorder %v419, 0.0
        %vm436 = vcmp.eq.f32.partialorder %v420, 0.0
        %vm437 = vcmp.eq.f32.partialorder %v421, 0.0
        %vm438 = vcmp.eq.f32.partialorder %v422, 0.0
        %vm439 = vcmp.eq.f32.partialorder %v423, 0.0
        %vm440 = vcmp.eq.f32.partialorder %v424, 0.0
        %vm441 = vcmp.eq.f32.partialorder %v425, 0.0
        %vm442 = vcmp.eq.f32.partialorder %v426, 0.0
        %vm443 = vcmp.eq.f32.partialorder %v427, 0.0
        %vm444 = vcmp.eq.f32.partialorder %v428, 0.0
        %v445 = vsel %vm429, 1.0, %v413
        %v446 = vsel %vm430, 1.0, %v414
        %v447 = vsel %vm431, 1.0, %v415
        %v448 = vsel %vm432, 1.0, %v416
        %v449 = vsel %vm433, 1.0, %v417
        %v450 = vsel %vm434, 1.0, %v418
        %v451 = vsel %vm435, 1.0, %v419
        %v452 = vsel %vm436, 1.0, %v420
        %v453 = vsel %vm437, 1.0, %v421
        %v454 = vsel %vm438, 1.0, %v422
        %v455 = vsel %vm439, 1.0, %v423
        %v456 = vsel %vm440, 1.0, %v424
        %v457 = vsel %vm441, 1.0, %v425
        %v458 = vsel %vm442, 1.0, %v426
        %v459 = vsel %vm443, 1.0, %v427
        %v460 = vsel %vm444, 1.0, %v428
        %v461 = vrcp.pop %v445
        %v462 = vmul.f32 1.0, %v461
        %v463 = vrcp.pop %v446
        %v464 = vmul.f32 1.0, %v463
        %v465 = vrcp.pop %v447
        %v466 = vmul.f32 1.0, %v465
        %v467 = vrcp.pop %v448
        %v468 = vmul.f32 1.0, %v467
        %v469 = vrcp.pop %v449
        %v470 = vmul.f32 1.0, %v469
        %v471 = vrcp.pop %v450
        %v472 = vmul.f32 1.0, %v471
        %v473 = vrcp.pop %v451
        %v474 = vmul.f32 1.0, %v473
        %v475 = vrcp.pop %v452
        %v476 = vmul.f32 1.0, %v475
        %v477 = vrcp.pop %v453
        %v478 = vmul.f32 1.0, %v477
        %v479 = vrcp.pop %v454
        %v480 = vmul.f32 1.0, %v479
        %v481 = vrcp.pop %v455
        %v482 = vmul.f32 1.0, %v481
        %v483 = vrcp.pop %v456
        %v484 = vmul.f32 1.0, %v483
        %v485 = vrcp.pop %v457
        %v486 = vmul.f32 1.0, %v485
        %v487 = vrcp.pop %v458
        %v488 = vmul.f32 1.0, %v487
        %v489 = vrcp.pop %v459
        %v490 = vmul.f32 1.0, %v489
        %v491 = vrcp.pop %v460
        %v492 = vmul.f32 1.0, %v491
        %v493 = vmul.f32 %v300, %v462
        %v494 = vmul.f32 %v301, %v464
        %v495 = vmul.f32 %v302, %v466
        %v496 = vmul.f32 %v303, %v468
        %v497 = vmul.f32 %v304, %v470
        %v498 = vmul.f32 %v305, %v472
        %v499 = vmul.f32 %v306, %v474
        %v500 = vmul.f32 %v307, %v476
        %v501 = vmul.f32 %v308, %v478
        %v502 = vmul.f32 %v309, %v480
        %v503 = vmul.f32 %v310, %v482
        %v504 = vmul.f32 %v311, %v484
        %v505 = vmul.f32 %v312, %v486
        %v506 = vmul.f32 %v313, %v488
        %v507 = vmul.f32 %v314, %v490
        %v508 = vmul.f32 %v315, %v492
        %v509 = vmul.f32 %v316, %v462
        %v510 = vmul.f32 %v317, %v464
        %v511 = vmul.f32 %v318, %v466
        %v512 = vmul.f32 %v319, %v468
        %v513 = vmul.f32 %v320, %v470
        %v514 = vmul.f32 %v321, %v472
        %v515 = vmul.f32 %v322, %v474
        %v516 = vmul.f32 %v323, %v476
        %v517 = vmul.f32 %v324, %v478
        %v518 = vmul.f32 %v325, %v480
        %v519 = vmul.f32 %v326, %v482
        %v520 = vmul.f32 %v327, %v484
        %v521 = vmul.f32 %v328, %v486
        %v522 = vmul.f32 %v329, %v488
        %v523 = vmul.f32 %v330, %v490
        %v524 = vmul.f32 %v331, %v492
        %v525 = vround.ne.pseudo %v493
        %v526 = vround.ne.pseudo %v494
        %v527 = vround.ne.pseudo %v495
        %v528 = vround.ne.pseudo %v496
        %v529 = vround.ne.pseudo %v497
        %v530 = vround.ne.pseudo %v498
        %v531 = vround.ne.pseudo %v499
        %v532 = vround.ne.pseudo %v500
        %v533 = vround.ne.pseudo %v501
        %v534 = vround.ne.pseudo %v502
        %v535 = vround.ne.pseudo %v503
        %v536 = vround.ne.pseudo %v504
        %v537 = vround.ne.pseudo %v505
        %v538 = vround.ne.pseudo %v506
        %v539 = vround.ne.pseudo %v507
        %v540 = vround.ne.pseudo %v508
        %v541 = vround.ne.pseudo %v509
        %v542 = vround.ne.pseudo %v510
        %v543 = vround.ne.pseudo %v511
        %v544 = vround.ne.pseudo %v512
        %v545 = vround.ne.pseudo %v513
        %v546 = vround.ne.pseudo %v514
        %v547 = vround.ne.pseudo %v515
        %v548 = vround.ne.pseudo %v516
        %v549 = vround.ne.pseudo %v517
        %v550 = vround.ne.pseudo %v518
        %v551 = vround.ne.pseudo %v519
        %v552 = vround.ne.pseudo %v520
        %v553 = vround.ne.pseudo %v521
        %v554 = vround.ne.pseudo %v522
        %v555 = vround.ne.pseudo %v523
        %v556 = vround.ne.pseudo %v524
        %v557 = vmax.f32 %v525, -128.0
        %v558 = vmax.f32 %v526, -128.0
        %v559 = vmax.f32 %v527, -128.0
        %v560 = vmax.f32 %v528, -128.0
        %v561 = vmax.f32 %v529, -128.0
        %v562 = vmax.f32 %v530, -128.0
        %v563 = vmax.f32 %v531, -128.0
        %v564 = vmax.f32 %v532, -128.0
        %v565 = vmax.f32 %v533, -128.0
        %v566 = vmax.f32 %v534, -128.0
        %v567 = vmax.f32 %v535, -128.0
        %v568 = vmax.f32 %v536, -128.0
        %v569 = vmax.f32 %v537, -128.0
        %v570 = vmax.f32 %v538, -128.0
        %v571 = vmax.f32 %v539, -128.0
        %v572 = vmax.f32 %v540, -128.0
        %v573 = vmax.f32 %v541, -128.0
        %v574 = vmax.f32 %v542, -128.0
        %v575 = vmax.f32 %v543, -128.0
        %v576 = vmax.f32 %v544, -128.0
        %v577 = vmax.f32 %v545, -128.0
        %v578 = vmax.f32 %v546, -128.0
        %v579 = vmax.f32 %v547, -128.0
        %v580 = vmax.f32 %v548, -128.0
        %v581 = vmax.f32 %v549, -128.0
        %v582 = vmax.f32 %v550, -128.0
        %v583 = vmax.f32 %v551, -128.0
        %v584 = vmax.f32 %v552, -128.0
        %v585 = vmax.f32 %v553, -128.0
        %v586 = vmax.f32 %v554, -128.0
        %v587 = vmax.f32 %v555, -128.0
        %v588 = vmax.f32 %v556, -128.0
        %v589 = vmin.f32 %v557, 127.0
        %v590 = vmin.f32 %v558, 127.0
        %v591 = vmin.f32 %v559, 127.0
        %v592 = vmin.f32 %v560, 127.0
        %v593 = vmin.f32 %v561, 127.0
        %v594 = vmin.f32 %v562, 127.0
        %v595 = vmin.f32 %v563, 127.0
        %v596 = vmin.f32 %v564, 127.0
        %v597 = vmin.f32 %v565, 127.0
        %v598 = vmin.f32 %v566, 127.0
        %v599 = vmin.f32 %v567, 127.0
        %v600 = vmin.f32 %v568, 127.0
        %v601 = vmin.f32 %v569, 127.0
        %v602 = vmin.f32 %v570, 127.0
        %v603 = vmin.f32 %v571, 127.0
        %v604 = vmin.f32 %v572, 127.0
        %v605 = vmin.f32 %v573, 127.0
        %v606 = vmin.f32 %v574, 127.0
        %v607 = vmin.f32 %v575, 127.0
        %v608 = vmin.f32 %v576, 127.0
        %v609 = vmin.f32 %v577, 127.0
        %v610 = vmin.f32 %v578, 127.0
        %v611 = vmin.f32 %v579, 127.0
        %v612 = vmin.f32 %v580, 127.0
        %v613 = vmin.f32 %v581, 127.0
        %v614 = vmin.f32 %v582, 127.0
        %v615 = vmin.f32 %v583, 127.0
        %v616 = vmin.f32 %v584, 127.0
        %v617 = vmin.f32 %v585, 127.0
        %v618 = vmin.f32 %v586, 127.0
        %v619 = vmin.f32 %v587, 127.0
        %v620 = vmin.f32 %v588, 127.0
        %v621 = vpack.c.bf16 %v590, %v589
        %v622 = vpack.c.bf16 %v592, %v591
        %v623 = vpack.c.bf16 %v594, %v593
        %v624 = vpack.c.bf16 %v596, %v595
        %v625 = vpack.c.bf16 %v598, %v597
        %v626 = vpack.c.bf16 %v600, %v599
        %v627 = vpack.c.bf16 %v602, %v601
        %v628 = vpack.c.bf16 %v604, %v603
        %v629 = vpack.c.bf16 %v606, %v605
        %v630 = vpack.c.bf16 %v608, %v607
        %v631 = vpack.c.bf16 %v610, %v609
        %v632 = vpack.c.bf16 %v612, %v611
        %v633 = vpack.c.bf16 %v614, %v613
        %v634 = vpack.c.bf16 %v616, %v615
        %v635 = vpack.c.bf16 %v618, %v617
        %v636 = vpack.c.bf16 %v620, %v619
        %v637 = vld [vmem:[#allocation5] sm:$0xff]
        %v638 = vld [vmem:[#allocation5 + $0x8] sm:$0xff]
        %v639 = vld [vmem:[#allocation5 + $0x10] sm:$0xff]
        %v640 = vld [vmem:[#allocation5 + $0x18] sm:$0xff]
        %v641 = vld [vmem:[#allocation5 + $0x20] sm:$0xff]
        %v642 = vld [vmem:[#allocation5 + $0x28] sm:$0xff]
        %v643 = vld [vmem:[#allocation5 + $0x30] sm:$0xff]
        %v644 = vld [vmem:[#allocation5 + $0x38] sm:$0xff]
        %v645 = vld [vmem:[#allocation5 + $0x40] sm:$0xff]
        %v646 = vld [vmem:[#allocation5 + $0x48] sm:$0xff]
        %v647 = vld [vmem:[#allocation5 + $0x50] sm:$0xff]
        %v648 = vld [vmem:[#allocation5 + $0x58] sm:$0xff]
        %v649 = vld [vmem:[#allocation5 + $0x60] sm:$0xff]
        %v650 = vld [vmem:[#allocation5 + $0x68] sm:$0xff]
        %v651 = vld [vmem:[#allocation5 + $0x70] sm:$0xff]
        %v652 = vld [vmem:[#allocation5 + $0x78] sm:$0xff]
        %v669 = vunpack.c.l.b16 %v637
        %v670 = vunpack.c.h.b16 %v637
        %v671 = vunpack.c.l.b16 %v638
        %v672 = vunpack.c.h.b16 %v638
        %v673 = vunpack.c.l.b16 %v639
        %v674 = vunpack.c.h.b16 %v639
        %v675 = vunpack.c.l.b16 %v640
        %v676 = vunpack.c.h.b16 %v640
        %v677 = vunpack.c.l.b16 %v641
        %v678 = vunpack.c.h.b16 %v641
        %v679 = vunpack.c.l.b16 %v642
        %v680 = vunpack.c.h.b16 %v642
        %v681 = vunpack.c.l.b16 %v643
        %v682 = vunpack.c.h.b16 %v643
        %v683 = vunpack.c.l.b16 %v644
        %v684 = vunpack.c.h.b16 %v644
        %v685 = vunpack.c.l.b16 %v645
        %v686 = vunpack.c.h.b16 %v645
        %v687 = vunpack.c.l.b16 %v646
        %v688 = vunpack.c.h.b16 %v646
        %v689 = vunpack.c.l.b16 %v647
        %v690 = vunpack.c.h.b16 %v647
        %v691 = vunpack.c.l.b16 %v648
        %v692 = vunpack.c.h.b16 %v648
        %v693 = vunpack.c.l.b16 %v649
        %v694 = vunpack.c.h.b16 %v649
        %v695 = vunpack.c.l.b16 %v650
        %v696 = vunpack.c.h.b16 %v650
        %v697 = vunpack.c.l.b16 %v651
        %v698 = vunpack.c.h.b16 %v651
        %v699 = vunpack.c.l.b16 %v652
        %v700 = vunpack.c.h.b16 %v652
        %v701 = vpack.c.b16 %v671, %v669
        %v702 = vpack.c.b16 %v672, %v670
        %v703 = vpack.c.b16 %v675, %v673
        %v704 = vpack.c.b16 %v676, %v674
        %v705 = vpack.c.b16 %v679, %v677
        %v706 = vpack.c.b16 %v680, %v678
        %v707 = vpack.c.b16 %v683, %v681
        %v708 = vpack.c.b16 %v684, %v682
        %v709 = vpack.c.b16 %v687, %v685
        %v710 = vpack.c.b16 %v688, %v686
        %v711 = vpack.c.b16 %v691, %v689
        %v712 = vpack.c.b16 %v692, %v690
        %v713 = vpack.c.b16 %v695, %v693
        %v714 = vpack.c.b16 %v696, %v694
        %v715 = vpack.c.b16 %v699, %v697
        %v716 = vpack.c.b16 %v700, %v698
        %733 = vmatprep.subr.bf16.mxu0 %v702
        %734 = vmatpush1.bf16.msra.mxu0 %v701
        %735 = vmatprep.subr.bf16.mxu0 %v704
        %736 = vmatpush1.bf16.msra.mxu0 %v703
        %737 = vmatprep.subr.bf16.mxu0 %v706
        %738 = vmatpush1.bf16.msra.mxu0 %v705
        %739 = vmatprep.subr.bf16.mxu0 %v708
        %740 = vmatpush1.bf16.msra.mxu0 %v707
        %741 = vmatprep.subr.bf16.mxu0 %v710
        %742 = vmatpush1.bf16.msra.mxu0 %v709
        %743 = vmatprep.subr.bf16.mxu0 %v712
        %744 = vmatpush1.bf16.msra.mxu0 %v711
        %745 = vmatprep.subr.bf16.mxu0 %v714
        %746 = vmatpush1.bf16.msra.mxu0 %v713
        %747 = vmatprep.subr.bf16.mxu0 %v716
        %748 = vmatpush1.bf16.msra.mxu0 %v715
        %749 = vmatprep.subr.bf16.mxu0 0
        %750 = vmatpush1.bf16.msra.mxu0 0
        %751 = vmatprep.subr.bf16.mxu0 0
        %752 = vmatpush1.bf16.msra.mxu0 0
        %753 = vmatprep.subr.bf16.mxu0 0
        %754 = vmatpush1.bf16.msra.mxu0 0
        %755 = vmatprep.subr.bf16.mxu0 0
        %756 = vmatpush1.bf16.msra.mxu0 0
        %757 = vmatprep.subr.bf16.mxu0 0
        %758 = vmatpush1.bf16.msra.mxu0 0
        %759 = vmatprep.subr.bf16.mxu0 0
        %760 = vmatpush1.bf16.msra.mxu0 0
        %761 = vmatprep.subr.bf16.mxu0 0
        %762 = vmatpush1.bf16.msra.mxu0 0
        %763 = vmatprep.subr.bf16.mxu0 0
        %764 = vmatpush1.bf16.msra.mxu0 0
        %765 = vmatprep.mubr.bf16.mxu0 0
        %766 = vmatmul.mubr.bf16.gmra.mrb[0].mxu0 %v621
        %v767 = vpop.f32.mrb[0].mxu0
        %v768 = vadd.f32 0.0, %v767
        %v769 = vpop.f32.mrb[0].mxu0
        %v770 = vadd.f32 0.0, %v769
        %v771 = vpop.f32.mrb[0].mxu0
        %v772 = vadd.f32 0.0, %v771
        %v773 = vpop.f32.mrb[0].mxu0
        %v774 = vadd.f32 0.0, %v773
        %775 = vmatprep.mubr.bf16.mxu0 0
        %776 = vmatmul.mubr.bf16.gmra.mrb[0].mxu0 %v622
        %v777 = vpop.f32.mrb[0].mxu0
        %v778 = vadd.f32 0.0, %v777
        %v779 = vpop.f32.mrb[0].mxu0
        %v780 = vadd.f32 0.0, %v779
        %v781 = vpop.f32.mrb[0].mxu0
        %v782 = vadd.f32 0.0, %v781
        %v783 = vpop.f32.mrb[0].mxu0
        %v784 = vadd.f32 0.0, %v783
        %785 = vmatprep.mubr.bf16.mxu0 0
        %786 = vmatmul.mubr.bf16.gmra.mrb[0].mxu0 %v623
        %v787 = vpop.f32.mrb[0].mxu0
        %v788 = vadd.f32 0.0, %v787
        %v789 = vpop.f32.mrb[0].mxu0
        %v790 = vadd.f32 0.0, %v789
        %v791 = vpop.f32.mrb[0].mxu0
        %v792 = vadd.f32 0.0, %v791
        %v793 = vpop.f32.mrb[0].mxu0
        %v794 = vadd.f32 0.0, %v793
        %795 = vmatprep.mubr.bf16.mxu0 0
        %796 = vmatmul.mubr.bf16.gmra.mrb[0].mxu0 %v624
        %v797 = vpop.f32.mrb[0].mxu0
        %v798 = vadd.f32 0.0, %v797
        %v799 = vpop.f32.mrb[0].mxu0
        %v800 = vadd.f32 0.0, %v799
        %v801 = vpop.f32.mrb[0].mxu0
        %v802 = vadd.f32 0.0, %v801
        %v803 = vpop.f32.mrb[0].mxu0
        %v804 = vadd.f32 0.0, %v803
        %805 = vmatprep.mubr.bf16.mxu0 0
        %806 = vmatmul.mubr.bf16.gmra.mrb[0].mxu0 %v625
        %v807 = vpop.f32.mrb[0].mxu0
        %v808 = vadd.f32 0.0, %v807
        %v809 = vpop.f32.mrb[0].mxu0
        %v810 = vadd.f32 0.0, %v809
        %v811 = vpop.f32.mrb[0].mxu0
        %v812 = vadd.f32 0.0, %v811
        %v813 = vpop.f32.mrb[0].mxu0
        %v814 = vadd.f32 0.0, %v813
        %815 = vmatprep.mubr.bf16.mxu0 0
        %816 = vmatmul.mubr.bf16.gmra.mrb[0].mxu0 %v626
        %v817 = vpop.f32.mrb[0].mxu0
        %v818 = vadd.f32 0.0, %v817
        %v819 = vpop.f32.mrb[0].mxu0
        %v820 = vadd.f32 0.0, %v819
        %v821 = vpop.f32.mrb[0].mxu0
        %v822 = vadd.f32 0.0, %v821
        %v823 = vpop.f32.mrb[0].mxu0
        %v824 = vadd.f32 0.0, %v823
        %825 = vmatprep.mubr.bf16.mxu0 0
        %826 = vmatmul.mubr.bf16.gmra.mrb[0].mxu0 %v627
        %v827 = vpop.f32.mrb[0].mxu0
        %v828 = vadd.f32 0.0, %v827
        %v829 = vpop.f32.mrb[0].mxu0
        %v830 = vadd.f32 0.0, %v829
        %v831 = vpop.f32.mrb[0].mxu0
        %v832 = vadd.f32 0.0, %v831
        %v833 = vpop.f32.mrb[0].mxu0
        %v834 = vadd.f32 0.0, %v833
        %835 = vmatprep.mubr.bf16.mxu0 0
        %836 = vmatmul.mubr.bf16.gmra.mrb[0].mxu0 %v628
        %v837 = vpop.f32.mrb[0].mxu0
        %v838 = vadd.f32 0.0, %v837
        %v839 = vpop.f32.mrb[0].mxu0
        %v840 = vadd.f32 0.0, %v839
        %v841 = vpop.f32.mrb[0].mxu0
        %v842 = vadd.f32 0.0, %v841
        %v843 = vpop.f32.mrb[0].mxu0
        %v844 = vadd.f32 0.0, %v843
        %845 = vmatprep.mubr.bf16.mxu0 0
        %846 = vmatmul.mubr.bf16.gmra.mrb[0].mxu0 %v629
        %v847 = vpop.f32.mrb[0].mxu0
        %v848 = vadd.f32 0.0, %v847
        %v849 = vpop.f32.mrb[0].mxu0
        %v850 = vadd.f32 0.0, %v849
        %v851 = vpop.f32.mrb[0].mxu0
        %v852 = vadd.f32 0.0, %v851
        %v853 = vpop.f32.mrb[0].mxu0
        %v854 = vadd.f32 0.0, %v853
        %855 = vmatprep.mubr.bf16.mxu0 0
        %856 = vmatmul.mubr.bf16.gmra.mrb[0].mxu0 %v630
        %v857 = vpop.f32.mrb[0].mxu0
        %v858 = vadd.f32 0.0, %v857
        %v859 = vpop.f32.mrb[0].mxu0
        %v860 = vadd.f32 0.0, %v859
        %v861 = vpop.f32.mrb[0].mxu0
        %v862 = vadd.f32 0.0, %v861
        %v863 = vpop.f32.mrb[0].mxu0
        %v864 = vadd.f32 0.0, %v863
        %865 = vmatprep.mubr.bf16.mxu0 0
        %866 = vmatmul.mubr.bf16.gmra.mrb[0].mxu0 %v631
        %v867 = vpop.f32.mrb[0].mxu0
        %v868 = vadd.f32 0.0, %v867
        %v869 = vpop.f32.mrb[0].mxu0
        %v870 = vadd.f32 0.0, %v869
        %v871 = vpop.f32.mrb[0].mxu0
        %v872 = vadd.f32 0.0, %v871
        %v873 = vpop.f32.mrb[0].mxu0
        %v874 = vadd.f32 0.0, %v873
        %875 = vmatprep.mubr.bf16.mxu0 0
        %876 = vmatmul.mubr.bf16.gmra.mrb[0].mxu0 %v632
        %v877 = vpop.f32.mrb[0].mxu0
        %v878 = vadd.f32 0.0, %v877
        %v879 = vpop.f32.mrb[0].mxu0
        %v880 = vadd.f32 0.0, %v879
        %v881 = vpop.f32.mrb[0].mxu0
        %v882 = vadd.f32 0.0, %v881
        %v883 = vpop.f32.mrb[0].mxu0
        %v884 = vadd.f32 0.0, %v883
        %885 = vmatprep.mubr.bf16.mxu0 0
        %886 = vmatmul.mubr.bf16.gmra.mrb[0].mxu0 %v633
        %v887 = vpop.f32.mrb[0].mxu0
        %v888 = vadd.f32 0.0, %v887
        %v889 = vpop.f32.mrb[0].mxu0
        %v890 = vadd.f32 0.0, %v889
        %v891 = vpop.f32.mrb[0].mxu0
        %v892 = vadd.f32 0.0, %v891
        %v893 = vpop.f32.mrb[0].mxu0
        %v894 = vadd.f32 0.0, %v893
        %895 = vmatprep.mubr.bf16.mxu0 0
        %896 = vmatmul.mubr.bf16.gmra.mrb[0].mxu0 %v634
        %v897 = vpop.f32.mrb[0].mxu0
        %v898 = vadd.f32 0.0, %v897
        %v899 = vpop.f32.mrb[0].mxu0
        %v900 = vadd.f32 0.0, %v899
        %v901 = vpop.f32.mrb[0].mxu0
        %v902 = vadd.f32 0.0, %v901
        %v903 = vpop.f32.mrb[0].mxu0
        %v904 = vadd.f32 0.0, %v903
        %905 = vmatprep.mubr.bf16.mxu0 0
        %906 = vmatmul.mubr.bf16.gmra.mrb[0].mxu0 %v635
        %v907 = vpop.f32.mrb[0].mxu0
        %v908 = vadd.f32 0.0, %v907
        %v909 = vpop.f32.mrb[0].mxu0
        %v910 = vadd.f32 0.0, %v909
        %v911 = vpop.f32.mrb[0].mxu0
        %v912 = vadd.f32 0.0, %v911
        %v913 = vpop.f32.mrb[0].mxu0
        %v914 = vadd.f32 0.0, %v913
        %915 = vmatprep.mubr.bf16.mxu0 0
        %916 = vmatmul.mubr.bf16.gmra.mrb[0].mxu0 %v636
        %v917 = vpop.f32.mrb[0].mxu0
        %v918 = vadd.f32 0.0, %v917
        %v919 = vpop.f32.mrb[0].mxu0
        %v920 = vadd.f32 0.0, %v919
        %v921 = vpop.f32.mrb[0].mxu0
        %v922 = vadd.f32 0.0, %v921
        %v923 = vpop.f32.mrb[0].mxu0
        %v924 = vadd.f32 0.0, %v923
        %925 = vdwg.mxu0
        %v926 = vld [vmem:[%s2] sm:$0x3]
        %v928 = vlaneseq
        %v929 = vshrl.u32 %v928, 7
        %v930 = vsub.s32 0, %v929
        %v931 = vrot.slane %v926, %v930
        %v932 = vlaneseq
        %v933 = vshrl.u32 %v932, 7
        %v934 = vsub.s32 1, %v933
        %v935 = vrot.slane %v926, %v934
        %v938 = vmul.f32 %v768, %v931
        %v939 = vmul.f32 %v770, %v935
        %v940 = vmul.f32 %v772, %v931
        %v941 = vmul.f32 %v774, %v935
        %v942 = vmul.f32 %v778, %v931
        %v943 = vmul.f32 %v780, %v935
        %v944 = vmul.f32 %v782, %v931
        %v945 = vmul.f32 %v784, %v935
        %v946 = vmul.f32 %v788, %v931
        %v947 = vmul.f32 %v790, %v935
        %v948 = vmul.f32 %v792, %v931
        %v949 = vmul.f32 %v794, %v935
        %v950 = vmul.f32 %v798, %v931
        %v951 = vmul.f32 %v800, %v935
        %v952 = vmul.f32 %v802, %v931
        %v953 = vmul.f32 %v804, %v935
        %v954 = vmul.f32 %v808, %v931
        %v955 = vmul.f32 %v810, %v935
        %v956 = vmul.f32 %v812, %v931
        %v957 = vmul.f32 %v814, %v935
        %v958 = vmul.f32 %v818, %v931
        %v959 = vmul.f32 %v820, %v935
        %v960 = vmul.f32 %v822, %v931
        %v961 = vmul.f32 %v824, %v935
        %v962 = vmul.f32 %v828, %v931
        %v963 = vmul.f32 %v830, %v935
        %v964 = vmul.f32 %v832, %v931
        %v965 = vmul.f32 %v834, %v935
        %v966 = vmul.f32 %v838, %v931
        %v967 = vmul.f32 %v840, %v935
        %v968 = vmul.f32 %v842, %v931
        %v969 = vmul.f32 %v844, %v935
        %v970 = vmul.f32 %v848, %v931
        %v971 = vmul.f32 %v850, %v935
        %v972 = vmul.f32 %v852, %v931
        %v973 = vmul.f32 %v854, %v935
        %v974 = vmul.f32 %v858, %v931
        %v975 = vmul.f32 %v860, %v935
        %v976 = vmul.f32 %v862, %v931
        %v977 = vmul.f32 %v864, %v935
        %v978 = vmul.f32 %v868, %v931
        %v979 = vmul.f32 %v870, %v935
        %v980 = vmul.f32 %v872, %v931
        %v981 = vmul.f32 %v874, %v935
        %v982 = vmul.f32 %v878, %v931
        %v983 = vmul.f32 %v880, %v935
        %v984 = vmul.f32 %v882, %v931
        %v985 = vmul.f32 %v884, %v935
        %v986 = vmul.f32 %v888, %v931
        %v987 = vmul.f32 %v890, %v935
        %v988 = vmul.f32 %v892, %v931
        %v989 = vmul.f32 %v894, %v935
        %v990 = vmul.f32 %v898, %v931
        %v991 = vmul.f32 %v900, %v935
        %v992 = vmul.f32 %v902, %v931
        %v993 = vmul.f32 %v904, %v935
        %v994 = vmul.f32 %v908, %v931
        %v995 = vmul.f32 %v910, %v935
        %v996 = vmul.f32 %v912, %v931
        %v997 = vmul.f32 %v914, %v935
        %v998 = vmul.f32 %v918, %v931
        %v999 = vmul.f32 %v920, %v935
        %v1000 = vmul.f32 %v922, %v931
        %v1001 = vmul.f32 %v924, %v935
        %v1002 = vmax.f32 %v938, 0.0
        %v1003 = vmax.f32 %v939, 0.0
        %v1004 = vmax.f32 %v940, 0.0
        %v1005 = vmax.f32 %v941, 0.0
        %v1006 = vmax.f32 %v942, 0.0
        %v1007 = vmax.f32 %v943, 0.0
        %v1008 = vmax.f32 %v944, 0.0
        %v1009 = vmax.f32 %v945, 0.0
        %v1010 = vmax.f32 %v946, 0.0
        %v1011 = vmax.f32 %v947, 0.0
        %v1012 = vmax.f32 %v948, 0.0
        %v1013 = vmax.f32 %v949, 0.0
        %v1014 = vmax.f32 %v950, 0.0
        %v1015 = vmax.f32 %v951, 0.0
        %v1016 = vmax.f32 %v952, 0.0
        %v1017 = vmax.f32 %v953, 0.0
        %v1018 = vmax.f32 %v954, 0.0
        %v1019 = vmax.f32 %v955, 0.0
        %v1020 = vmax.f32 %v956, 0.0
        %v1021 = vmax.f32 %v957, 0.0
        %v1022 = vmax.f32 %v958, 0.0
        %v1023 = vmax.f32 %v959, 0.0
        %v1024 = vmax.f32 %v960, 0.0
        %v1025 = vmax.f32 %v961, 0.0
        %v1026 = vmax.f32 %v962, 0.0
        %v1027 = vmax.f32 %v963, 0.0
        %v1028 = vmax.f32 %v964, 0.0
        %v1029 = vmax.f32 %v965, 0.0
        %v1030 = vmax.f32 %v966, 0.0
        %v1031 = vmax.f32 %v967, 0.0
        %v1032 = vmax.f32 %v968, 0.0
        %v1033 = vmax.f32 %v969, 0.0
        %v1034 = vmax.f32 %v970, 0.0
        %v1035 = vmax.f32 %v971, 0.0
        %v1036 = vmax.f32 %v972, 0.0
        %v1037 = vmax.f32 %v973, 0.0
        %v1038 = vmax.f32 %v974, 0.0
        %v1039 = vmax.f32 %v975, 0.0
        %v1040 = vmax.f32 %v976, 0.0
        %v1041 = vmax.f32 %v977, 0.0
        %v1042 = vmax.f32 %v978, 0.0
        %v1043 = vmax.f32 %v979, 0.0
        %v1044 = vmax.f32 %v980, 0.0
        %v1045 = vmax.f32 %v981, 0.0
        %v1046 = vmax.f32 %v982, 0.0
        %v1047 = vmax.f32 %v983, 0.0
        %v1048 = vmax.f32 %v984, 0.0
        %v1049 = vmax.f32 %v985, 0.0
        %v1050 = vmax.f32 %v986, 0.0
        %v1051 = vmax.f32 %v987, 0.0
        %v1052 = vmax.f32 %v988, 0.0
        %v1053 = vmax.f32 %v989, 0.0
        %v1054 = vmax.f32 %v990, 0.0
        %v1055 = vmax.f32 %v991, 0.0
        %v1056 = vmax.f32 %v992, 0.0
        %v1057 = vmax.f32 %v993, 0.0
        %v1058 = vmax.f32 %v994, 0.0
        %v1059 = vmax.f32 %v995, 0.0
        %v1060 = vmax.f32 %v996, 0.0
        %v1061 = vmax.f32 %v997, 0.0
        %v1062 = vmax.f32 %v998, 0.0
        %v1063 = vmax.f32 %v999, 0.0
        %v1064 = vmax.f32 %v1000, 0.0
        %v1065 = vmax.f32 %v1001, 0.0
        %v1066 = vmax.f32 %v1002, %v1003
        %v1067 = vmax.f32 %v1066, %v1034
        %v1068 = vmax.f32 %v1067, %v1035
        %1069 = vmax.xlane.f32.xlu0 %v1068
        %v1070 = vpop.xlane.xlu0 %1069
        %v1071 = vmax.f32 %v1004, %v1005
        %v1072 = vmax.f32 %v1071, %v1036
        %v1073 = vmax.f32 %v1072, %v1037
        %1074 = vmax.xlane.f32.xlu0 %v1073
        %v1075 = vpop.xlane.xlu0 %1074
        %v1076 = vmax.f32 %v1006, %v1007
        %v1077 = vmax.f32 %v1076, %v1038
        %v1078 = vmax.f32 %v1077, %v1039
        %1079 = vmax.xlane.f32.xlu0 %v1078
        %v1080 = vpop.xlane.xlu0 %1079
        %v1081 = vmax.f32 %v1008, %v1009
        %v1082 = vmax.f32 %v1081, %v1040
        %v1083 = vmax.f32 %v1082, %v1041
        %1084 = vmax.xlane.f32.xlu0 %v1083
        %v1085 = vpop.xlane.xlu0 %1084
        %v1086 = vmax.f32 %v1010, %v1011
        %v1087 = vmax.f32 %v1086, %v1042
        %v1088 = vmax.f32 %v1087, %v1043
        %1089 = vmax.xlane.f32.xlu0 %v1088
        %v1090 = vpop.xlane.xlu0 %1089
        %v1091 = vmax.f32 %v1012, %v1013
        %v1092 = vmax.f32 %v1091, %v1044
        %v1093 = vmax.f32 %v1092, %v1045
        %1094 = vmax.xlane.f32.xlu0 %v1093
        %v1095 = vpop.xlane.xlu0 %1094
        %v1096 = vmax.f32 %v1014, %v1015
        %v1097 = vmax.f32 %v1096, %v1046
        %v1098 = vmax.f32 %v1097, %v1047
        %1099 = vmax.xlane.f32.xlu0 %v1098
        %v1100 = vpop.xlane.xlu0 %1099
        %v1101 = vmax.f32 %v1016, %v1017
        %v1102 = vmax.f32 %v1101, %v1048
        %v1103 = vmax.f32 %v1102, %v1049
        %1104 = vmax.xlane.f32.xlu0 %v1103
        %v1105 = vpop.xlane.xlu0 %1104
        %v1106 = vmax.f32 %v1018, %v1019
        %v1107 = vmax.f32 %v1106, %v1050
        %v1108 = vmax.f32 %v1107, %v1051
        %1109 = vmax.xlane.f32.xlu0 %v1108
        %v1110 = vpop.xlane.xlu0 %1109
        %v1111 = vmax.f32 %v1020, %v1021
        %v1112 = vmax.f32 %v1111, %v1052
        %v1113 = vmax.f32 %v1112, %v1053
        %1114 = vmax.xlane.f32.xlu0 %v1113
        %v1115 = vpop.xlane.xlu0 %1114
        %v1116 = vmax.f32 %v1022, %v1023
        %v1117 = vmax.f32 %v1116, %v1054
        %v1118 = vmax.f32 %v1117, %v1055
        %1119 = vmax.xlane.f32.xlu0 %v1118
        %v1120 = vpop.xlane.xlu0 %1119
        %v1121 = vmax.f32 %v1024, %v1025
        %v1122 = vmax.f32 %v1121, %v1056
        %v1123 = vmax.f32 %v1122, %v1057
        %1124 = vmax.xlane.f32.xlu0 %v1123
        %v1125 = vpop.xlane.xlu0 %1124
        %v1126 = vmax.f32 %v1026, %v1027
        %v1127 = vmax.f32 %v1126, %v1058
        %v1128 = vmax.f32 %v1127, %v1059
        %1129 = vmax.xlane.f32.xlu0 %v1128
        %v1130 = vpop.xlane.xlu0 %1129
        %v1131 = vmax.f32 %v1028, %v1029
        %v1132 = vmax.f32 %v1131, %v1060
        %v1133 = vmax.f32 %v1132, %v1061
        %1134 = vmax.xlane.f32.xlu0 %v1133
        %v1135 = vpop.xlane.xlu0 %1134
        %v1136 = vmax.f32 %v1030, %v1031
        %v1137 = vmax.f32 %v1136, %v1062
        %v1138 = vmax.f32 %v1137, %v1063
        %1139 = vmax.xlane.f32.xlu0 %v1138
        %v1140 = vpop.xlane.xlu0 %1139
        %v1141 = vmax.f32 %v1032, %v1033
        %v1142 = vmax.f32 %v1141, %v1064
        %v1143 = vmax.f32 %v1142, %v1065
        %1144 = vmax.xlane.f32.xlu0 %v1143
        %v1145 = vpop.xlane.xlu0 %1144
        %v1146 = vmul.f32 %v1070, %v412
        %v1147 = vmul.f32 %v1075, %v412
        %v1148 = vmul.f32 %v1080, %v412
        %v1149 = vmul.f32 %v1085, %v412
        %v1150 = vmul.f32 %v1090, %v412
        %v1151 = vmul.f32 %v1095, %v412
        %v1152 = vmul.f32 %v1100, %v412
        %v1153 = vmul.f32 %v1105, %v412
        %v1154 = vmul.f32 %v1110, %v412
        %v1155 = vmul.f32 %v1115, %v412
        %v1156 = vmul.f32 %v1120, %v412
        %v1157 = vmul.f32 %v1125, %v412
        %v1158 = vmul.f32 %v1130, %v412
        %v1159 = vmul.f32 %v1135, %v412
        %v1160 = vmul.f32 %v1140, %v412
        %v1161 = vmul.f32 %v1145, %v412
        %vm1162 = vcmp.eq.f32.partialorder %v1146, 0.0
        %vm1163 = vcmp.eq.f32.partialorder %v1147, 0.0
        %vm1164 = vcmp.eq.f32.partialorder %v1148, 0.0
        %vm1165 = vcmp.eq.f32.partialorder %v1149, 0.0
        %vm1166 = vcmp.eq.f32.partialorder %v1150, 0.0
        %vm1167 = vcmp.eq.f32.partialorder %v1151, 0.0
        %vm1168 = vcmp.eq.f32.partialorder %v1152, 0.0
        %vm1169 = vcmp.eq.f32.partialorder %v1153, 0.0
        %vm1170 = vcmp.eq.f32.partialorder %v1154, 0.0
        %vm1171 = vcmp.eq.f32.partialorder %v1155, 0.0
        %vm1172 = vcmp.eq.f32.partialorder %v1156, 0.0
        %vm1173 = vcmp.eq.f32.partialorder %v1157, 0.0
        %vm1174 = vcmp.eq.f32.partialorder %v1158, 0.0
        %vm1175 = vcmp.eq.f32.partialorder %v1159, 0.0
        %vm1176 = vcmp.eq.f32.partialorder %v1160, 0.0
        %vm1177 = vcmp.eq.f32.partialorder %v1161, 0.0
        %v1178 = vsel %vm1162, 1.0, %v1146
        %v1179 = vsel %vm1163, 1.0, %v1147
        %v1180 = vsel %vm1164, 1.0, %v1148
        %v1181 = vsel %vm1165, 1.0, %v1149
        %v1182 = vsel %vm1166, 1.0, %v1150
        %v1183 = vsel %vm1167, 1.0, %v1151
        %v1184 = vsel %vm1168, 1.0, %v1152
        %v1185 = vsel %vm1169, 1.0, %v1153
        %v1186 = vsel %vm1170, 1.0, %v1154
        %v1187 = vsel %vm1171, 1.0, %v1155
        %v1188 = vsel %vm1172, 1.0, %v1156
        %v1189 = vsel %vm1173, 1.0, %v1157
        %v1190 = vsel %vm1174, 1.0, %v1158
        %v1191 = vsel %vm1175, 1.0, %v1159
        %v1192 = vsel %vm1176, 1.0, %v1160
        %v1193 = vsel %vm1177, 1.0, %v1161
        %v1194 = vrcp.pop %v1178
        %v1195 = vmul.f32 1.0, %v1194
        %v1196 = vrcp.pop %v1179
        %v1197 = vmul.f32 1.0, %v1196
        %v1198 = vrcp.pop %v1180
        %v1199 = vmul.f32 1.0, %v1198
        %v1200 = vrcp.pop %v1181
        %v1201 = vmul.f32 1.0, %v1200
        %v1202 = vrcp.pop %v1182
        %v1203 = vmul.f32 1.0, %v1202
        %v1204 = vrcp.pop %v1183
        %v1205 = vmul.f32 1.0, %v1204
        %v1206 = vrcp.pop %v1184
        %v1207 = vmul.f32 1.0, %v1206
        %v1208 = vrcp.pop %v1185
        %v1209 = vmul.f32 1.0, %v1208
        %v1210 = vrcp.pop %v1186
        %v1211 = vmul.f32 1.0, %v1210
        %v1212 = vrcp.pop %v1187
        %v1213 = vmul.f32 1.0, %v1212
        %v1214 = vrcp.pop %v1188
        %v1215 = vmul.f32 1.0, %v1214
        %v1216 = vrcp.pop %v1189
        %v1217 = vmul.f32 1.0, %v1216
        %v1218 = vrcp.pop %v1190
        %v1219 = vmul.f32 1.0, %v1218
        %v1220 = vrcp.pop %v1191
        %v1221 = vmul.f32 1.0, %v1220
        %v1222 = vrcp.pop %v1192
        %v1223 = vmul.f32 1.0, %v1222
        %v1224 = vrcp.pop %v1193
        %v1225 = vmul.f32 1.0, %v1224
        %v1226 = vmul.f32 %v1002, %v1195
        %v1227 = vmul.f32 %v1003, %v1195
        %v1228 = vmul.f32 %v1004, %v1197
        %v1229 = vmul.f32 %v1005, %v1197
        %v1230 = vmul.f32 %v1006, %v1199
        %v1231 = vmul.f32 %v1007, %v1199
        %v1232 = vmul.f32 %v1008, %v1201
        %v1233 = vmul.f32 %v1009, %v1201
        %v1234 = vmul.f32 %v1010, %v1203
        %v1235 = vmul.f32 %v1011, %v1203
        %v1236 = vmul.f32 %v1012, %v1205
        %v1237 = vmul.f32 %v1013, %v1205
        %v1238 = vmul.f32 %v1014, %v1207
        %v1239 = vmul.f32 %v1015, %v1207
        %v1240 = vmul.f32 %v1016, %v1209
        %v1241 = vmul.f32 %v1017, %v1209
        %v1242 = vmul.f32 %v1018, %v1211
        %v1243 = vmul.f32 %v1019, %v1211
        %v1244 = vmul.f32 %v1020, %v1213
        %v1245 = vmul.f32 %v1021, %v1213
        %v1246 = vmul.f32 %v1022, %v1215
        %v1247 = vmul.f32 %v1023, %v1215
        %v1248 = vmul.f32 %v1024, %v1217
        %v1249 = vmul.f32 %v1025, %v1217
        %v1250 = vmul.f32 %v1026, %v1219
        %v1251 = vmul.f32 %v1027, %v1219
        %v1252 = vmul.f32 %v1028, %v1221
        %v1253 = vmul.f32 %v1029, %v1221
        %v1254 = vmul.f32 %v1030, %v1223
        %v1255 = vmul.f32 %v1031, %v1223
        %v1256 = vmul.f32 %v1032, %v1225
        %v1257 = vmul.f32 %v1033, %v1225
        %v1258 = vmul.f32 %v1034, %v1195
        %v1259 = vmul.f32 %v1035, %v1195
        %v1260 = vmul.f32 %v1036, %v1197
        %v1261 = vmul.f32 %v1037, %v1197
        %v1262 = vmul.f32 %v1038, %v1199
        %v1263 = vmul.f32 %v1039, %v1199
        %v1264 = vmul.f32 %v1040, %v1201
        %v1265 = vmul.f32 %v1041, %v1201
        %v1266 = vmul.f32 %v1042, %v1203
        %v1267 = vmul.f32 %v1043, %v1203
        %v1268 = vmul.f32 %v1044, %v1205
        %v1269 = vmul.f32 %v1045, %v1205
        %v1270 = vmul.f32 %v1046, %v1207
        %v1271 = vmul.f32 %v1047, %v1207
        %v1272 = vmul.f32 %v1048, %v1209
        %v1273 = vmul.f32 %v1049, %v1209
        %v1274 = vmul.f32 %v1050, %v1211
        %v1275 = vmul.f32 %v1051, %v1211
        %v1276 = vmul.f32 %v1052, %v1213
        %v1277 = vmul.f32 %v1053, %v1213
        %v1278 = vmul.f32 %v1054, %v1215
        %v1279 = vmul.f32 %v1055, %v1215
        %v1280 = vmul.f32 %v1056, %v1217
        %v1281 = vmul.f32 %v1057, %v1217
        %v1282 = vmul.f32 %v1058, %v1219
        %v1283 = vmul.f32 %v1059, %v1219
        %v1284 = vmul.f32 %v1060, %v1221
        %v1285 = vmul.f32 %v1061, %v1221
        %v1286 = vmul.f32 %v1062, %v1223
        %v1287 = vmul.f32 %v1063, %v1223
        %v1288 = vmul.f32 %v1064, %v1225
        %v1289 = vmul.f32 %v1065, %v1225
        %v1290 = vround.ne.pseudo %v1226
        %v1291 = vround.ne.pseudo %v1227
        %v1292 = vround.ne.pseudo %v1228
        %v1293 = vround.ne.pseudo %v1229
        %v1294 = vround.ne.pseudo %v1230
        %v1295 = vround.ne.pseudo %v1231
        %v1296 = vround.ne.pseudo %v1232
        %v1297 = vround.ne.pseudo %v1233
        %v1298 = vround.ne.pseudo %v1234
        %v1299 = vround.ne.pseudo %v1235
        %v1300 = vround.ne.pseudo %v1236
        %v1301 = vround.ne.pseudo %v1237
        %v1302 = vround.ne.pseudo %v1238
        %v1303 = vround.ne.pseudo %v1239
        %v1304 = vround.ne.pseudo %v1240
        %v1305 = vround.ne.pseudo %v1241
        %v1306 = vround.ne.pseudo %v1242
        %v1307 = vround.ne.pseudo %v1243
        %v1308 = vround.ne.pseudo %v1244
        %v1309 = vround.ne.pseudo %v1245
        %v1310 = vround.ne.pseudo %v1246
        %v1311 = vround.ne.pseudo %v1247
        %v1312 = vround.ne.pseudo %v1248
        %v1313 = vround.ne.pseudo %v1249
        %v1314 = vround.ne.pseudo %v1250
        %v1315 = vround.ne.pseudo %v1251
        %v1316 = vround.ne.pseudo %v1252
        %v1317 = vround.ne.pseudo %v1253
        %v1318 = vround.ne.pseudo %v1254
        %v1319 = vround.ne.pseudo %v1255
        %v1320 = vround.ne.pseudo %v1256
        %v1321 = vround.ne.pseudo %v1257
        %v1322 = vround.ne.pseudo %v1258
        %v1323 = vround.ne.pseudo %v1259
        %v1324 = vround.ne.pseudo %v1260
        %v1325 = vround.ne.pseudo %v1261
        %v1326 = vround.ne.pseudo %v1262
        %v1327 = vround.ne.pseudo %v1263
        %v1328 = vround.ne.pseudo %v1264
        %v1329 = vround.ne.pseudo %v1265
        %v1330 = vround.ne.pseudo %v1266
        %v1331 = vround.ne.pseudo %v1267
        %v1332 = vround.ne.pseudo %v1268
        %v1333 = vround.ne.pseudo %v1269
        %v1334 = vround.ne.pseudo %v1270
        %v1335 = vround.ne.pseudo %v1271
        %v1336 = vround.ne.pseudo %v1272
        %v1337 = vround.ne.pseudo %v1273
        %v1338 = vround.ne.pseudo %v1274
        %v1339 = vround.ne.pseudo %v1275
        %v1340 = vround.ne.pseudo %v1276
        %v1341 = vround.ne.pseudo %v1277
        %v1342 = vround.ne.pseudo %v1278
        %v1343 = vround.ne.pseudo %v1279
        %v1344 = vround.ne.pseudo %v1280
        %v1345 = vround.ne.pseudo %v1281
        %v1346 = vround.ne.pseudo %v1282
        %v1347 = vround.ne.pseudo %v1283
        %v1348 = vround.ne.pseudo %v1284
        %v1349 = vround.ne.pseudo %v1285
        %v1350 = vround.ne.pseudo %v1286
        %v1351 = vround.ne.pseudo %v1287
        %v1352 = vround.ne.pseudo %v1288
        %v1353 = vround.ne.pseudo %v1289
        %v1354 = vmax.f32 %v1290, -128.0
        %v1355 = vmax.f32 %v1291, -128.0
        %v1356 = vmax.f32 %v1292, -128.0
        %v1357 = vmax.f32 %v1293, -128.0
        %v1358 = vmax.f32 %v1294, -128.0
        %v1359 = vmax.f32 %v1295, -128.0
        %v1360 = vmax.f32 %v1296, -128.0
        %v1361 = vmax.f32 %v1297, -128.0
        %v1362 = vmax.f32 %v1298, -128.0
        %v1363 = vmax.f32 %v1299, -128.0
        %v1364 = vmax.f32 %v1300, -128.0
        %v1365 = vmax.f32 %v1301, -128.0
        %v1366 = vmax.f32 %v1302, -128.0
        %v1367 = vmax.f32 %v1303, -128.0
        %v1368 = vmax.f32 %v1304, -128.0
        %v1369 = vmax.f32 %v1305, -128.0
        %v1370 = vmax.f32 %v1306, -128.0
        %v1371 = vmax.f32 %v1307, -128.0
        %v1372 = vmax.f32 %v1308, -128.0
        %v1373 = vmax.f32 %v1309, -128.0
        %v1374 = vmax.f32 %v1310, -128.0
        %v1375 = vmax.f32 %v1311, -128.0
        %v1376 = vmax.f32 %v1312, -128.0
        %v1377 = vmax.f32 %v1313, -128.0
        %v1378 = vmax.f32 %v1314, -128.0
        %v1379 = vmax.f32 %v1315, -128.0
        %v1380 = vmax.f32 %v1316, -128.0
        %v1381 = vmax.f32 %v1317, -128.0
        %v1382 = vmax.f32 %v1318, -128.0
        %v1383 = vmax.f32 %v1319, -128.0
        %v1384 = vmax.f32 %v1320, -128.0
        %v1385 = vmax.f32 %v1321, -128.0
        %v1386 = vmax.f32 %v1322, -128.0
        %v1387 = vmax.f32 %v1323, -128.0
        %v1388 = vmax.f32 %v1324, -128.0
        %v1389 = vmax.f32 %v1325, -128.0
        %v1390 = vmax.f32 %v1326, -128.0
        %v1391 = vmax.f32 %v1327, -128.0
        %v1392 = vmax.f32 %v1328, -128.0
        %v1393 = vmax.f32 %v1329, -128.0
        %v1394 = vmax.f32 %v1330, -128.0
        %v1395 = vmax.f32 %v1331, -128.0
        %v1396 = vmax.f32 %v1332, -128.0
        %v1397 = vmax.f32 %v1333, -128.0
        %v1398 = vmax.f32 %v1334, -128.0
        %v1399 = vmax.f32 %v1335, -128.0
        %v1400 = vmax.f32 %v1336, -128.0
        %v1401 = vmax.f32 %v1337, -128.0
        %v1402 = vmax.f32 %v1338, -128.0
        %v1403 = vmax.f32 %v1339, -128.0
        %v1404 = vmax.f32 %v1340, -128.0
        %v1405 = vmax.f32 %v1341, -128.0
        %v1406 = vmax.f32 %v1342, -128.0
        %v1407 = vmax.f32 %v1343, -128.0
        %v1408 = vmax.f32 %v1344, -128.0
        %v1409 = vmax.f32 %v1345, -128.0
        %v1410 = vmax.f32 %v1346, -128.0
        %v1411 = vmax.f32 %v1347, -128.0
        %v1412 = vmax.f32 %v1348, -128.0
        %v1413 = vmax.f32 %v1349, -128.0
        %v1414 = vmax.f32 %v1350, -128.0
        %v1415 = vmax.f32 %v1351, -128.0
        %v1416 = vmax.f32 %v1352, -128.0
        %v1417 = vmax.f32 %v1353, -128.0
        %v1418 = vmin.f32 %v1354, 127.0
        %v1419 = vmin.f32 %v1355, 127.0
        %v1420 = vmin.f32 %v1356, 127.0
        %v1421 = vmin.f32 %v1357, 127.0
        %v1422 = vmin.f32 %v1358, 127.0
        %v1423 = vmin.f32 %v1359, 127.0
        %v1424 = vmin.f32 %v1360, 127.0
        %v1425 = vmin.f32 %v1361, 127.0
        %v1426 = vmin.f32 %v1362, 127.0
        %v1427 = vmin.f32 %v1363, 127.0
        %v1428 = vmin.f32 %v1364, 127.0
        %v1429 = vmin.f32 %v1365, 127.0
        %v1430 = vmin.f32 %v1366, 127.0
        %v1431 = vmin.f32 %v1367, 127.0
        %v1432 = vmin.f32 %v1368, 127.0
        %v1433 = vmin.f32 %v1369, 127.0
        %v1434 = vmin.f32 %v1370, 127.0
        %v1435 = vmin.f32 %v1371, 127.0
        %v1436 = vmin.f32 %v1372, 127.0
        %v1437 = vmin.f32 %v1373, 127.0
        %v1438 = vmin.f32 %v1374, 127.0
        %v1439 = vmin.f32 %v1375, 127.0
        %v1440 = vmin.f32 %v1376, 127.0
        %v1441 = vmin.f32 %v1377, 127.0
        %v1442 = vmin.f32 %v1378, 127.0
        %v1443 = vmin.f32 %v1379, 127.0
        %v1444 = vmin.f32 %v1380, 127.0
        %v1445 = vmin.f32 %v1381, 127.0
        %v1446 = vmin.f32 %v1382, 127.0
        %v1447 = vmin.f32 %v1383, 127.0
        %v1448 = vmin.f32 %v1384, 127.0
        %v1449 = vmin.f32 %v1385, 127.0
        %v1450 = vmin.f32 %v1386, 127.0
        %v1451 = vmin.f32 %v1387, 127.0
        %v1452 = vmin.f32 %v1388, 127.0
        %v1453 = vmin.f32 %v1389, 127.0
        %v1454 = vmin.f32 %v1390, 127.0
        %v1455 = vmin.f32 %v1391, 127.0
        %v1456 = vmin.f32 %v1392, 127.0
        %v1457 = vmin.f32 %v1393, 127.0
        %v1458 = vmin.f32 %v1394, 127.0
        %v1459 = vmin.f32 %v1395, 127.0
        %v1460 = vmin.f32 %v1396, 127.0
        %v1461 = vmin.f32 %v1397, 127.0
        %v1462 = vmin.f32 %v1398, 127.0
        %v1463 = vmin.f32 %v1399, 127.0
        %v1464 = vmin.f32 %v1400, 127.0
        %v1465 = vmin.f32 %v1401, 127.0
        %v1466 = vmin.f32 %v1402, 127.0
        %v1467 = vmin.f32 %v1403, 127.0
        %v1468 = vmin.f32 %v1404, 127.0
        %v1469 = vmin.f32 %v1405, 127.0
        %v1470 = vmin.f32 %v1406, 127.0
        %v1471 = vmin.f32 %v1407, 127.0
        %v1472 = vmin.f32 %v1408, 127.0
        %v1473 = vmin.f32 %v1409, 127.0
        %v1474 = vmin.f32 %v1410, 127.0
        %v1475 = vmin.f32 %v1411, 127.0
        %v1476 = vmin.f32 %v1412, 127.0
        %v1477 = vmin.f32 %v1413, 127.0
        %v1478 = vmin.f32 %v1414, 127.0
        %v1479 = vmin.f32 %v1415, 127.0
        %v1480 = vmin.f32 %v1416, 127.0
        %v1481 = vmin.f32 %v1417, 127.0
        %v1482 = vpack.c.bf16 %v1420, %v1418
        %v1483 = vpack.c.bf16 %v1421, %v1419
        %v1484 = vpack.c.bf16 %v1424, %v1422
        %v1485 = vpack.c.bf16 %v1425, %v1423
        %v1486 = vpack.c.bf16 %v1428, %v1426
        %v1487 = vpack.c.bf16 %v1429, %v1427
        %v1488 = vpack.c.bf16 %v1432, %v1430
        %v1489 = vpack.c.bf16 %v1433, %v1431
        %v1490 = vpack.c.bf16 %v1436, %v1434
        %v1491 = vpack.c.bf16 %v1437, %v1435
        %v1492 = vpack.c.bf16 %v1440, %v1438
        %v1493 = vpack.c.bf16 %v1441, %v1439
        %v1494 = vpack.c.bf16 %v1444, %v1442
        %v1495 = vpack.c.bf16 %v1445, %v1443
        %v1496 = vpack.c.bf16 %v1448, %v1446
        %v1497 = vpack.c.bf16 %v1449, %v1447
        %v1498 = vpack.c.bf16 %v1452, %v1450
        %v1499 = vpack.c.bf16 %v1453, %v1451
        %v1500 = vpack.c.bf16 %v1456, %v1454
        %v1501 = vpack.c.bf16 %v1457, %v1455
        %v1502 = vpack.c.bf16 %v1460, %v1458
        %v1503 = vpack.c.bf16 %v1461, %v1459
        %v1504 = vpack.c.bf16 %v1464, %v1462
        %v1505 = vpack.c.bf16 %v1465, %v1463
        %v1506 = vpack.c.bf16 %v1468, %v1466
        %v1507 = vpack.c.bf16 %v1469, %v1467
        %v1508 = vpack.c.bf16 %v1472, %v1470
        %v1509 = vpack.c.bf16 %v1473, %v1471
        %v1510 = vpack.c.bf16 %v1476, %v1474
        %v1511 = vpack.c.bf16 %v1477, %v1475
        %v1512 = vpack.c.bf16 %v1480, %v1478
        %v1513 = vpack.c.bf16 %v1481, %v1479
        %v1514 = vld [vmem:[#allocation7] sm:$0xf]
        %v1515 = vld [vmem:[#allocation7 + $0x4] sm:$0xf]
        %v1516 = vld [vmem:[#allocation7 + $0x8] sm:$0xf]
        %v1517 = vld [vmem:[#allocation7 + $0xc] sm:$0xf]
        %v1518 = vld [vmem:[#allocation7 + $0x10] sm:$0xf]
        %v1519 = vld [vmem:[#allocation7 + $0x14] sm:$0xf]
        %v1520 = vld [vmem:[#allocation7 + $0x18] sm:$0xf]
        %v1521 = vld [vmem:[#allocation7 + $0x1c] sm:$0xf]
        %v1522 = vld [vmem:[#allocation7 + $0x20] sm:$0xf]
        %v1523 = vld [vmem:[#allocation7 + $0x24] sm:$0xf]
        %v1524 = vld [vmem:[#allocation7 + $0x28] sm:$0xf]
        %v1525 = vld [vmem:[#allocation7 + $0x2c] sm:$0xf]
        %v1526 = vld [vmem:[#allocation7 + $0x30] sm:$0xf]
        %v1527 = vld [vmem:[#allocation7 + $0x34] sm:$0xf]
        %v1528 = vld [vmem:[#allocation7 + $0x38] sm:$0xf]
        %v1529 = vld [vmem:[#allocation7 + $0x3c] sm:$0xf]
        %v1530 = vld [vmem:[#allocation7 + $0x40] sm:$0xf]
        %v1531 = vld [vmem:[#allocation7 + $0x44] sm:$0xf]
        %v1532 = vld [vmem:[#allocation7 + $0x48] sm:$0xf]
        %v1533 = vld [vmem:[#allocation7 + $0x4c] sm:$0xf]
        %v1534 = vld [vmem:[#allocation7 + $0x50] sm:$0xf]
        %v1535 = vld [vmem:[#allocation7 + $0x54] sm:$0xf]
        %v1536 = vld [vmem:[#allocation7 + $0x58] sm:$0xf]
        %v1537 = vld [vmem:[#allocation7 + $0x5c] sm:$0xf]
        %v1538 = vld [vmem:[#allocation7 + $0x60] sm:$0xf]
        %v1539 = vld [vmem:[#allocation7 + $0x64] sm:$0xf]
        %v1540 = vld [vmem:[#allocation7 + $0x68] sm:$0xf]
        %v1541 = vld [vmem:[#allocation7 + $0x6c] sm:$0xf]
        %v1542 = vld [vmem:[#allocation7 + $0x70] sm:$0xf]
        %v1543 = vld [vmem:[#allocation7 + $0x74] sm:$0xf]
        %v1544 = vld [vmem:[#allocation7 + $0x78] sm:$0xf]
        %v1545 = vld [vmem:[#allocation7 + $0x7c] sm:$0xf]
        %v1578 = vunpack.c.l.b16 %v1514
        %v1579 = vunpack.c.l.b16 %v1515
        %v1580 = vunpack.c.l.b16 %v1516
        %v1581 = vunpack.c.l.b16 %v1517
        %v1582 = vunpack.c.l.b16 %v1518
        %v1583 = vunpack.c.l.b16 %v1519
        %v1584 = vunpack.c.l.b16 %v1520
        %v1585 = vunpack.c.l.b16 %v1521
        %v1586 = vunpack.c.l.b16 %v1522
        %v1587 = vunpack.c.l.b16 %v1523
        %v1588 = vunpack.c.l.b16 %v1524
        %v1589 = vunpack.c.l.b16 %v1525
        %v1590 = vunpack.c.l.b16 %v1526
        %v1591 = vunpack.c.l.b16 %v1527
        %v1592 = vunpack.c.l.b16 %v1528
        %v1593 = vunpack.c.l.b16 %v1529
        %v1594 = vunpack.c.l.b16 %v1530
        %v1595 = vunpack.c.l.b16 %v1531
        %v1596 = vunpack.c.l.b16 %v1532
        %v1597 = vunpack.c.l.b16 %v1533
        %v1598 = vunpack.c.l.b16 %v1534
        %v1599 = vunpack.c.l.b16 %v1535
        %v1600 = vunpack.c.l.b16 %v1536
        %v1601 = vunpack.c.l.b16 %v1537
        %v1602 = vunpack.c.l.b16 %v1538
        %v1603 = vunpack.c.l.b16 %v1539
        %v1604 = vunpack.c.l.b16 %v1540
        %v1605 = vunpack.c.l.b16 %v1541
        %v1606 = vunpack.c.l.b16 %v1542
        %v1607 = vunpack.c.l.b16 %v1543
        %v1608 = vunpack.c.l.b16 %v1544
        %v1609 = vunpack.c.l.b16 %v1545
        %v1610 = vpack.c.b16 %v1579, %v1578
        %v1611 = vpack.c.b16 %v1581, %v1580
        %v1612 = vpack.c.b16 %v1583, %v1582
        %v1613 = vpack.c.b16 %v1585, %v1584
        %v1614 = vpack.c.b16 %v1587, %v1586
        %v1615 = vpack.c.b16 %v1589, %v1588
        %v1616 = vpack.c.b16 %v1591, %v1590
        %v1617 = vpack.c.b16 %v1593, %v1592
        %v1618 = vpack.c.b16 %v1595, %v1594
        %v1619 = vpack.c.b16 %v1597, %v1596
        %v1620 = vpack.c.b16 %v1599, %v1598
        %v1621 = vpack.c.b16 %v1601, %v1600
        %v1622 = vpack.c.b16 %v1603, %v1602
        %v1623 = vpack.c.b16 %v1605, %v1604
        %v1624 = vpack.c.b16 %v1607, %v1606
        %v1625 = vpack.c.b16 %v1609, %v1608
        %1642 = vmatprep.subr.bf16.mxu0 0
        %1643 = vmatpush1.bf16.msra.mxu0 %v1610
        %1644 = vmatprep.subr.bf16.mxu0 0
        %1645 = vmatpush1.bf16.msra.mxu0 %v1611
        %1646 = vmatprep.subr.bf16.mxu0 0
        %1647 = vmatpush1.bf16.msra.mxu0 %v1612
        %1648 = vmatprep.subr.bf16.mxu0 0
        %1649 = vmatpush1.bf16.msra.mxu0 %v1613
        %1650 = vmatprep.subr.bf16.mxu0 0
        %1651 = vmatpush1.bf16.msra.mxu0 %v1614
        %1652 = vmatprep.subr.bf16.mxu0 0
        %1653 = vmatpush1.bf16.msra.mxu0 %v1615
        %1654 = vmatprep.subr.bf16.mxu0 0
        %1655 = vmatpush1.bf16.msra.mxu0 %v1616
        %1656 = vmatprep.subr.bf16.mxu0 0
        %1657 = vmatpush1.bf16.msra.mxu0 %v1617
        %1658 = vmatprep.subr.bf16.mxu0 0
        %1659 = vmatpush1.bf16.msra.mxu0 %v1618
        %1660 = vmatprep.subr.bf16.mxu0 0
        %1661 = vmatpush1.bf16.msra.mxu0 %v1619
        %1662 = vmatprep.subr.bf16.mxu0 0
        %1663 = vmatpush1.bf16.msra.mxu0 %v1620
        %1664 = vmatprep.subr.bf16.mxu0 0
        %1665 = vmatpush1.bf16.msra.mxu0 %v1621
        %1666 = vmatprep.subr.bf16.mxu0 0
        %1667 = vmatpush1.bf16.msra.mxu0 %v1622
        %1668 = vmatprep.subr.bf16.mxu0 0
        %1669 = vmatpush1.bf16.msra.mxu0 %v1623
        %1670 = vmatprep.subr.bf16.mxu0 0
        %1671 = vmatpush1.bf16.msra.mxu0 %v1624
        %1672 = vmatprep.subr.bf16.mxu0 0
        %1673 = vmatpush1.bf16.msra.mxu0 %v1625
        %1674 = vmatprep.mubr.bf16.mxu0 %v1483
        %1675 = vmatmul.mubr.bf16.gmra.mrb[0].mxu0 %v1482
        %v1676 = vpop.f32.mrb[0].mxu0
        %v1677 = vadd.f32 0.0, %v1676
        %v1678 = vpop.f32.mrb[0].mxu0
        %v1679 = vpop.f32.mrb[0].mxu0
        %v1680 = vadd.f32 0.0, %v1679
        %v1681 = vpop.f32.mrb[0].mxu0
        %1682 = vmatprep.mubr.bf16.mxu0 %v1485
        %1683 = vmatmul.mubr.bf16.gmra.mrb[0].mxu0 %v1484
        %v1684 = vpop.f32.mrb[0].mxu0
        %v1685 = vadd.f32 0.0, %v1684
        %v1686 = vpop.f32.mrb[0].mxu0
        %v1687 = vpop.f32.mrb[0].mxu0
        %v1688 = vadd.f32 0.0, %v1687
        %v1689 = vpop.f32.mrb[0].mxu0
        %1690 = vmatprep.mubr.bf16.mxu0 %v1487
        %1691 = vmatmul.mubr.bf16.gmra.mrb[0].mxu0 %v1486
        %v1692 = vpop.f32.mrb[0].mxu0
        %v1693 = vadd.f32 0.0, %v1692
        %v1694 = vpop.f32.mrb[0].mxu0
        %v1695 = vpop.f32.mrb[0].mxu0
        %v1696 = vadd.f32 0.0, %v1695
        %v1697 = vpop.f32.mrb[0].mxu0
        %1698 = vmatprep.mubr.bf16.mxu0 %v1489
        %1699 = vmatmul.mubr.bf16.gmra.mrb[0].mxu0 %v1488
        %v1700 = vpop.f32.mrb[0].mxu0
        %v1701 = vadd.f32 0.0, %v1700
        %v1702 = vpop.f32.mrb[0].mxu0
        %v1703 = vpop.f32.mrb[0].mxu0
        %v1704 = vadd.f32 0.0, %v1703
        %v1705 = vpop.f32.mrb[0].mxu0
        %1706 = vmatprep.mubr.bf16.mxu0 %v1491
        %1707 = vmatmul.mubr.bf16.gmra.mrb[0].mxu0 %v1490
        %v1708 = vpop.f32.mrb[0].mxu0
        %v1709 = vadd.f32 0.0, %v1708
        %v1710 = vpop.f32.mrb[0].mxu0
        %v1711 = vpop.f32.mrb[0].mxu0
        %v1712 = vadd.f32 0.0, %v1711
        %v1713 = vpop.f32.mrb[0].mxu0
        %1714 = vmatprep.mubr.bf16.mxu0 %v1493
        %1715 = vmatmul.mubr.bf16.gmra.mrb[0].mxu0 %v1492
        %v1716 = vpop.f32.mrb[0].mxu0
        %v1717 = vadd.f32 0.0, %v1716
        %v1718 = vpop.f32.mrb[0].mxu0
        %v1719 = vpop.f32.mrb[0].mxu0
        %v1720 = vadd.f32 0.0, %v1719
        %v1721 = vpop.f32.mrb[0].mxu0
        %1722 = vmatprep.mubr.bf16.mxu0 %v1495
        %1723 = vmatmul.mubr.bf16.gmra.mrb[0].mxu0 %v1494
        %v1724 = vpop.f32.mrb[0].mxu0
        %v1725 = vadd.f32 0.0, %v1724
        %v1726 = vpop.f32.mrb[0].mxu0
        %v1727 = vpop.f32.mrb[0].mxu0
        %v1728 = vadd.f32 0.0, %v1727
        %v1729 = vpop.f32.mrb[0].mxu0
        %1730 = vmatprep.mubr.bf16.mxu0 %v1497
        %1731 = vmatmul.mubr.bf16.gmra.mrb[0].mxu0 %v1496
        %v1732 = vpop.f32.mrb[0].mxu0
        %v1733 = vadd.f32 0.0, %v1732
        %v1734 = vpop.f32.mrb[0].mxu0
        %v1735 = vpop.f32.mrb[0].mxu0
        %v1736 = vadd.f32 0.0, %v1735
        %v1737 = vpop.f32.mrb[0].mxu0
        %1738 = vmatprep.mubr.bf16.mxu0 %v1499
        %1739 = vmatmul.mubr.bf16.gmra.mrb[0].mxu0 %v1498
        %v1740 = vpop.f32.mrb[0].mxu0
        %v1741 = vadd.f32 0.0, %v1740
        %v1742 = vpop.f32.mrb[0].mxu0
        %v1743 = vpop.f32.mrb[0].mxu0
        %v1744 = vadd.f32 0.0, %v1743
        %v1745 = vpop.f32.mrb[0].mxu0
        %1746 = vmatprep.mubr.bf16.mxu0 %v1501
        %1747 = vmatmul.mubr.bf16.gmra.mrb[0].mxu0 %v1500
        %v1748 = vpop.f32.mrb[0].mxu0
        %v1749 = vadd.f32 0.0, %v1748
        %v1750 = vpop.f32.mrb[0].mxu0
        %v1751 = vpop.f32.mrb[0].mxu0
        %v1752 = vadd.f32 0.0, %v1751
        %v1753 = vpop.f32.mrb[0].mxu0
        %1754 = vmatprep.mubr.bf16.mxu0 %v1503
        %1755 = vmatmul.mubr.bf16.gmra.mrb[0].mxu0 %v1502
        %v1756 = vpop.f32.mrb[0].mxu0
        %v1757 = vadd.f32 0.0, %v1756
        %v1758 = vpop.f32.mrb[0].mxu0
        %v1759 = vpop.f32.mrb[0].mxu0
        %v1760 = vadd.f32 0.0, %v1759
        %v1761 = vpop.f32.mrb[0].mxu0
        %1762 = vmatprep.mubr.bf16.mxu0 %v1505
        %1763 = vmatmul.mubr.bf16.gmra.mrb[0].mxu0 %v1504
        %v1764 = vpop.f32.mrb[0].mxu0
        %v1765 = vadd.f32 0.0, %v1764
        %v1766 = vpop.f32.mrb[0].mxu0
        %v1767 = vpop.f32.mrb[0].mxu0
        %v1768 = vadd.f32 0.0, %v1767
        %v1769 = vpop.f32.mrb[0].mxu0
        %1770 = vmatprep.mubr.bf16.mxu0 %v1507
        %1771 = vmatmul.mubr.bf16.gmra.mrb[0].mxu0 %v1506
        %v1772 = vpop.f32.mrb[0].mxu0
        %v1773 = vadd.f32 0.0, %v1772
        %v1774 = vpop.f32.mrb[0].mxu0
        %v1775 = vpop.f32.mrb[0].mxu0
        %v1776 = vadd.f32 0.0, %v1775
        %v1777 = vpop.f32.mrb[0].mxu0
        %1778 = vmatprep.mubr.bf16.mxu0 %v1509
        %1779 = vmatmul.mubr.bf16.gmra.mrb[0].mxu0 %v1508
        %v1780 = vpop.f32.mrb[0].mxu0
        %v1781 = vadd.f32 0.0, %v1780
        %v1782 = vpop.f32.mrb[0].mxu0
        %v1783 = vpop.f32.mrb[0].mxu0
        %v1784 = vadd.f32 0.0, %v1783
        %v1785 = vpop.f32.mrb[0].mxu0
        %1786 = vmatprep.mubr.bf16.mxu0 %v1511
        %1787 = vmatmul.mubr.bf16.gmra.mrb[0].mxu0 %v1510
        %v1788 = vpop.f32.mrb[0].mxu0
        %v1789 = vadd.f32 0.0, %v1788
        %v1790 = vpop.f32.mrb[0].mxu0
        %v1791 = vpop.f32.mrb[0].mxu0
        %v1792 = vadd.f32 0.0, %v1791
        %v1793 = vpop.f32.mrb[0].mxu0
        %1794 = vmatprep.mubr.bf16.mxu0 %v1513
        %1795 = vmatmul.mubr.bf16.gmra.mrb[0].mxu0 %v1512
        %v1796 = vpop.f32.mrb[0].mxu0
        %v1797 = vadd.f32 0.0, %v1796
        %v1798 = vpop.f32.mrb[0].mxu0
        %v1799 = vpop.f32.mrb[0].mxu0
        %v1800 = vadd.f32 0.0, %v1799
        %v1801 = vpop.f32.mrb[0].mxu0
        %1802 = vdwg.mxu0
        %v1803 = vmul.f32 %v445, %v1178
        %v1804 = vmul.f32 %v446, %v1179
        %v1805 = vmul.f32 %v447, %v1180
        %v1806 = vmul.f32 %v448, %v1181
        %v1807 = vmul.f32 %v449, %v1182
        %v1808 = vmul.f32 %v450, %v1183
        %v1809 = vmul.f32 %v451, %v1184
        %v1810 = vmul.f32 %v452, %v1185
        %v1811 = vmul.f32 %v453, %v1186
        %v1812 = vmul.f32 %v454, %v1187
        %v1813 = vmul.f32 %v455, %v1188
        %v1814 = vmul.f32 %v456, %v1189
        %v1815 = vmul.f32 %v457, %v1190
        %v1816 = vmul.f32 %v458, %v1191
        %v1817 = vmul.f32 %v459, %v1192
        %v1818 = vmul.f32 %v460, %v1193
        %v1819 = vmul.f32 %v1677, %v1803
        %v1820 = vmul.f32 %v1680, %v1804
        %v1821 = vmul.f32 %v1685, %v1805
        %v1822 = vmul.f32 %v1688, %v1806
        %v1823 = vmul.f32 %v1693, %v1807
        %v1824 = vmul.f32 %v1696, %v1808
        %v1825 = vmul.f32 %v1701, %v1809
        %v1826 = vmul.f32 %v1704, %v1810
        %v1827 = vmul.f32 %v1709, %v1811
        %v1828 = vmul.f32 %v1712, %v1812
        %v1829 = vmul.f32 %v1717, %v1813
        %v1830 = vmul.f32 %v1720, %v1814
        %v1831 = vmul.f32 %v1725, %v1815
        %v1832 = vmul.f32 %v1728, %v1816
        %v1833 = vmul.f32 %v1733, %v1817
        %v1834 = vmul.f32 %v1736, %v1818
        %v1835 = vmul.f32 %v1741, %v1803
        %v1836 = vmul.f32 %v1744, %v1804
        %v1837 = vmul.f32 %v1749, %v1805
        %v1838 = vmul.f32 %v1752, %v1806
        %v1839 = vmul.f32 %v1757, %v1807
        %v1840 = vmul.f32 %v1760, %v1808
        %v1841 = vmul.f32 %v1765, %v1809
        %v1842 = vmul.f32 %v1768, %v1810
        %v1843 = vmul.f32 %v1773, %v1811
        %v1844 = vmul.f32 %v1776, %v1812
        %v1845 = vmul.f32 %v1781, %v1813
        %v1846 = vmul.f32 %v1784, %v1814
        %v1847 = vmul.f32 %v1789, %v1815
        %v1848 = vmul.f32 %v1792, %v1816
        %v1849 = vmul.f32 %v1797, %v1817
        %v1850 = vmul.f32 %v1800, %v1818
        %v1851 = vld [vmem:[%s4] sm:$0x1]
        %v1853 = vlaneseq
        %v1854 = vshrl.u32 %v1853, 7
        %v1855 = vsub.s32 0, %v1854
        %v1856 = vrot.slane %v1851, %v1855
        %v1858 = vmul.f32 %v1819, %v1856
        %v1859 = vmul.f32 %v1820, %v1856
        %v1860 = vmul.f32 %v1821, %v1856
        %v1861 = vmul.f32 %v1822, %v1856
        %v1862 = vmul.f32 %v1823, %v1856
        %v1863 = vmul.f32 %v1824, %v1856
        %v1864 = vmul.f32 %v1825, %v1856
        %v1865 = vmul.f32 %v1826, %v1856
        %v1866 = vmul.f32 %v1827, %v1856
        %v1867 = vmul.f32 %v1828, %v1856
        %v1868 = vmul.f32 %v1829, %v1856
        %v1869 = vmul.f32 %v1830, %v1856
        %v1870 = vmul.f32 %v1831, %v1856
        %v1871 = vmul.f32 %v1832, %v1856
        %v1872 = vmul.f32 %v1833, %v1856
        %v1873 = vmul.f32 %v1834, %v1856
        %v1874 = vmul.f32 %v1835, %v1856
        %v1875 = vmul.f32 %v1836, %v1856
        %v1876 = vmul.f32 %v1837, %v1856
        %v1877 = vmul.f32 %v1838, %v1856
        %v1878 = vmul.f32 %v1839, %v1856
        %v1879 = vmul.f32 %v1840, %v1856
        %v1880 = vmul.f32 %v1841, %v1856
        %v1881 = vmul.f32 %v1842, %v1856
        %v1882 = vmul.f32 %v1843, %v1856
        %v1883 = vmul.f32 %v1844, %v1856
        %v1884 = vmul.f32 %v1845, %v1856
        %v1885 = vmul.f32 %v1846, %v1856
        %v1886 = vmul.f32 %v1847, %v1856
        %v1887 = vmul.f32 %v1848, %v1856
        %v1888 = vmul.f32 %v1849, %v1856
        %v1889 = vmul.f32 %v1850, %v1856
        %1890 = vst [vmem:[%s296] sm:$0xff] %v1858
        %1891 = vst [vmem:[%s296 + $0x8] sm:$0xff] %v1859
        %1892 = vst [vmem:[%s296 + $0x10] sm:$0xff] %v1860
        %1893 = vst [vmem:[%s296 + $0x18] sm:$0xff] %v1861
        %1894 = vst [vmem:[%s296 + $0x20] sm:$0xff] %v1862
        %1895 = vst [vmem:[%s296 + $0x28] sm:$0xff] %v1863
        %1896 = vst [vmem:[%s296 + $0x30] sm:$0xff] %v1864
        %1897 = vst [vmem:[%s296 + $0x38] sm:$0xff] %v1865
        %1898 = vst [vmem:[%s296 + $0x40] sm:$0xff] %v1866
        %1899 = vst [vmem:[%s296 + $0x48] sm:$0xff] %v1867
        %1900 = vst [vmem:[%s296 + $0x50] sm:$0xff] %v1868
        %1901 = vst [vmem:[%s296 + $0x58] sm:$0xff] %v1869
        %1902 = vst [vmem:[%s296 + $0x60] sm:$0xff] %v1870
        %1903 = vst [vmem:[%s296 + $0x68] sm:$0xff] %v1871
        %1904 = vst [vmem:[%s296 + $0x70] sm:$0xff] %v1872
        %1905 = vst [vmem:[%s296 + $0x78] sm:$0xff] %v1873
        %1906 = vst [vmem:[%s296 + $0x80] sm:$0xff] %v1874
        %1907 = vst [vmem:[%s296 + $0x88] sm:$0xff] %v1875
        %1908 = vst [vmem:[%s296 + $0x90] sm:$0xff] %v1876
        %1909 = vst [vmem:[%s296 + $0x98] sm:$0xff] %v1877
        %1910 = vst [vmem:[%s296 + $0xa0] sm:$0xff] %v1878
        %1911 = vst [vmem:[%s296 + $0xa8] sm:$0xff] %v1879
        %1912 = vst [vmem:[%s296 + $0xb0] sm:$0xff] %v1880
        %1913 = vst [vmem:[%s296 + $0xb8] sm:$0xff] %v1881
        %1914 = vst [vmem:[%s296 + $0xc0] sm:$0xff] %v1882
        %1915 = vst [vmem:[%s296 + $0xc8] sm:$0xff] %v1883
        %1916 = vst [vmem:[%s296 + $0xd0] sm:$0xff] %v1884
        %1917 = vst [vmem:[%s296 + $0xd8] sm:$0xff] %v1885
        %1918 = vst [vmem:[%s296 + $0xe0] sm:$0xff] %v1886
        %1919 = vst [vmem:[%s296 + $0xe8] sm:$0xff] %v1887
        %1920 = vst [vmem:[%s296 + $0xf0] sm:$0xff] %v1888
        %1921 = vst [vmem:[%s296 + $0xf8] sm:$0xff] %v1889
        %s1922 = sand.u32 %s141, 1
        %s1923 = scalar_lea.sflag [#allocation4], %s1922
        %s1924 = sand.u32 %s141, 1
        %s1925 = smul.addr %s1924, 256
        %s1926 = scalar_lea.vmem [#allocation8], %s1925
        // Predicated region
        $region53: #{tpu_custom_call.1} parent=39 // pred_check
          %p1927 = pneg %p151
        $region54: #{tpu_custom_call.1} parent=39 // pred_check_branch
          %1929 = sbr.rel (%p1927) target = $region56
        $region55: #{tpu_custom_call.1} parent=39 // pred_region
          #allocation12 [shape = 'u32[6]{0}', space=smem, size = 0x18, scoped, tag = 'DMA stride descriptor']
          %s1930 = smul.u32 16, %s23
          %s1932 = ssub.s32 4096, 4096
          %1933 = vsyncadd %s1923, %s1932
          %s1934 = smul.addr %s1930, 128
          %s1935 = scalar_lea.hbm %s5, %s1934
          %s1937 = sshll.u32 1, 14
          %s1938 = sxor.u32 4294967295, %s1937
          %s1941 = sshll.u32 7, 18
          %s1942 = sxor.u32 4294967295, %s1941
          %s1943 = sand.u32 0, %s1942
          %s1945 = sor.u32 %s1943, 0
          %s1947 = sshll.u32 3, 24
          %s1948 = sxor.u32 4294967295, %s1947
          %s1949 = sand.u32 %s1945, %s1948
          %s1951 = sor.u32 %s1949, 0
          %s1952 = sshll.u32 %s1926, 4
          %s1953 = int_to_ptr.vmem [resolvable:$true] %s1952
          %1959 = sst [smem:[#allocation12]] 2048
          %s1960 = scalar_lea.smem [#allocation12], 1
          %1961 = sst [smem:[%s1960]] 4096
          %s1962 = scalar_lea.smem [#allocation12], 2
          %1963 = sst [smem:[%s1962]] 16
          %s1964 = scalar_lea.smem [#allocation12], 3
          %1965 = sst [smem:[%s1964]] 128
          %s1966 = scalar_lea.smem [#allocation12], 4
          %1967 = sst [smem:[%s1966]] 128
          %s1968 = scalar_lea.smem [#allocation12], 5
          %1969 = sst [smem:[%s1968]] 8
          %1971 = dma.general %s1953, 4096, %s1935, %s1923, [#allocation11], [#allocation12], %s1951, 0
        $region56: #{tpu_custom_call.1} parent=39 // pred_fallthru
          _
      $region40: #{tpu_custom_call.1} parent=5 // pred_fallthru
        _
      %p1972 = scmp.le.s32.totalorder 2, %s18
      // Predicated region
      $region57: #{tpu_custom_call.1} parent=5 // pred_check
        %p1973 = pneg %p1972
      $region58: #{tpu_custom_call.1} parent=5 // pred_check_branch
        %1975 = sbr.rel (%p1973) target = $region60
      $region59: #{tpu_custom_call.1} parent=5 // pred_region
        %s1976 = ssub.s32 %s18, 2
        // Predicated region
        $region61: #{tpu_custom_call.1} parent=59 // pred_check
          %p1977 = pneg %p157
        $region62: #{tpu_custom_call.1} parent=59 // pred_check_branch
          %1979 = sbr.rel (%p1977) target = $region64
        $region63: #{tpu_custom_call.1} parent=59 // pred_region
          %s1980 = sand.u32 %s142, 1
          %s1981 = scalar_lea.sflag [#allocation4], %s1980
          %s1982 = sand.u32 %s142, 1
          %s1983 = smul.addr %s1982, 256
          %s1984 = scalar_lea.vmem [#allocation8], %s1983
          %1985 = dma.done %s1981, 4096
        $region64: #{tpu_custom_call.1} parent=59 // pred_fallthru
          _
      $region60: #{tpu_custom_call.1} parent=5 // pred_fallthru
        _
    $region6: #{tpu_custom_call.1} parent=1 // loop_footer
      %s22 = sadd.s32 1, %s18
    $region7: #{tpu_custom_call.1} parent=1 // loop_footer_branch
      %17 = sbr.rel target = $region3
    $region8: #{tpu_custom_call.1} parent=1 // loop_exit
      _
    %1986 = vsyncpa [#allocation3], 1
    %s1987 = scalar_lea.sflag [#allocation3], 1
    %1988 = vsyncpa %s1987, 1
    %1989 = vsyncpa [#allocation6], 1
    %1990 = vsyncpa [#allocation4], 1
    %s1991 = scalar_lea.sflag [#allocation4], 1
    %1992 = vsyncpa %s1991, 1

</llo_original>
